<compile_context>
chip_gen: v7x
topology: tpu7x:2x2x1
jax: 0.10.0
libtpu: 0.0.40
codegen_flags: <defaults>
</compile_context>

<pallas_src>
import math
from functools import partial

import jax
import jax.numpy as jnp
from jax.experimental import pallas as pl
from jax.experimental.pallas import tpu as pltpu

# ----------------------------- model dimensions ------------------------------
INPUT_DIM = 16           # node feature dim          (torch: 181)
EDGE_DIM = 20            # edge feature dim          (torch: 20)
Q_HID_DIM = 32           # GIN hidden dim            (torch: 3000)
Q_NUM_LAYERS = 1
PROJECT_DIM = 32         # projector dim             (torch: 3250)
LSTM_HID_DIM = 32        # GRU hidden dim            (torch: 3500)
LSTM_NUM_LAYERS = 1
LSTM_PROJECT_DIM = 48    # (torch: 3750*3*1)
OUTPUT_DIM = 1
GINE_EPS = 1.0           # GINEConv(..., eps=True) -> eps == 1.0, untrained
BN_EPS = 1e-5
LEAKY_SLOPE = 0.01       # F.leaky_relu default

LANE = 128               # lane-pad every feature axis to 128
IN_P = LANE              # padded INPUT_DIM
ED_P = LANE              # padded EDGE_DIM
HID_P = LANE             # padded Q_HID_DIM
PROJ_P = LANE            # padded PROJECT_DIM
GATE_P = LANE            # all 3 GRU gates (3*32 = 96) packed in ONE 128-lane tile
LP_P = LANE              # padded LSTM_PROJECT_DIM
OUT_P = LANE             # padded OUTPUT_DIM


# --------------------------------- kernel ------------------------------------
def _leaky(x):
    return jnp.where(x >= 0.0, x, LEAKY_SLOPE * x)


def _gine_project(x, ex, src_oh, dstT_oh, pool, we, w1, w2, vec, pw, pb):
    """GINEConv + ReLU + BatchNorm1d(eval) + global_add_pool + projector + leaky_relu.

    `vec` packs [be, b1, b2, gamma, beta, mean, var] into one (8, 128) tile.
    Graph gather / scatter-add / add-pool are one-hot matmuls; the one-hot
    operands are bf16 (exact) so those dots take the native bf16 MXU path.
    """
    be, b1, b2 = vec[0:1, :], vec[1:2, :], vec[2:3, :]
    gamma, beta, mean, var = vec[3:4, :], vec[4:5, :], vec[5:6, :], vec[6:7, :]
    # edge embedding (edge_dim -> in_dim); message = relu(x_j + e)
    e = jnp.dot(ex, we, preferred_element_type=jnp.float32) + be
    x_src = jnp.dot(src_oh, x.astype(jnp.bfloat16), preferred_element_type=jnp.float32)
    msg = jnp.maximum(x_src + e, 0.0)
    # scatter-add to destination nodes; GIN combine with (1 + eps) * x
    aggr = jnp.dot(dstT_oh, msg.astype(jnp.bfloat16), preferred_element_type=jnp.float32)
    h = aggr + (1.0 + GINE_EPS) * x
    # GIN MLP: Linear -> ReLU -> Dropout(identity, eval) -> Linear
    h1 = jnp.maximum(jnp.dot(h, w1, preferred_element_type=jnp.float32) + b1, 0.0)
    h2 = jnp.dot(h1, w2, preferred_element_type=jnp.float32) + b2
    # F.relu after the conv, then BatchNorm1d (eval mode, running stats).
    h2 = jnp.maximum(h2, 0.0)
    z = (h2 - mean) * jax.lax.rsqrt(var + BN_EPS) * gamma + beta
    # global_add_pool, projector, leaky_relu
    pooled = jnp.dot(pool, z.astype(jnp.bfloat16), preferred_element_type=jnp.float32)
    return _leaky(jnp.dot(pooled, pw, preferred_element_type=jnp.float32) + pb)


def _fused_kernel(
    # batched query graph (T query graphs as one block-diagonal graph)
    qx_ref, qex_ref, qsrc_ref, qdstT_ref, qpool_ref,
    # crg graph
    cx_ref, cex_ref, csrc_ref, cdstT_ref, cpool_ref,
    # weights (all VMEM resident)
    gwe_ref, gw1_ref, gw2_ref, gvec_ref,
    qwe_ref, qw1_ref, qw2_ref, qvec_ref,
    gpw_ref, gpb_ref, qpw_ref, qpb_ref,
    wiq_ref, wid_ref, wim_ref, wh_ref, bi_ref, bh_ref,
    lpw_ref, lpb_ref, wml_ref, wmg_ref, bm_ref,
    # output
    out_ref,
):
    # CRG branch (once).
    g = _gine_project(
        cx_ref[...], cex_ref[...], csrc_ref[...], cdstT_ref[...], cpool_ref[...],
        gwe_ref[...], gw1_ref[...], gw2_ref[...], gvec_ref[...],
        gpw_ref[...], gpb_ref[...])                                # (B, PROJ_P)

    # Query branch: all T query graphs share the q_* weights, so the GNN runs
    # ONCE on the block-diagonal concatenation -> (T*B, PROJ_P) pooled embeds.
    q_all = _gine_project(
        qx_ref[...], qex_ref[...], qsrc_ref[...], qdstT_ref[...], qpool_ref[...],
        qwe_ref[...], qw1_ref[...], qw2_ref[...], qvec_ref[...],
        qpw_ref[...], qpb_ref[...])                                # (T*B, PROJ_P)

    wiq, wid, wim = wiq_ref[...], wid_ref[...], wim_ref[...]
    wh, bi, bh = wh_ref[...], bi_ref[...], bh_ref[...]

    bsz = g.shape[0]
    n_steps = q_all.shape[0] // bsz
    hd = LSTM_HID_DIM
    # GRU over [q, q-g, q*g]; the concat is folded into three weight blocks and
    # all 3 gates live in one 128-lane tile at lane offsets 0 / hd / 2*hd.
    # The hidden state is kept at its exact real width (B, hd): no pad lanes
    # exist, so nothing can leak across steps. Static Python unroll (tiny T).
    h = jnp.zeros((bsz, hd), jnp.float32)
    for t in range(n_steps):
        q = q_all[t * bsz:(t + 1) * bsz, :]
        gi = (jnp.dot(q, wiq, preferred_element_type=jnp.float32)
              + jnp.dot(q - g, wid, preferred_element_type=jnp.float32)
              + jnp.dot(q * g, wim, preferred_element_type=jnp.float32)
              + bi)
        gh = jnp.dot(h, wh, preferred_element_type=jnp.float32) + bh
        r = jax.nn.sigmoid(gi[:, 0:hd] + gh[:, 0:hd])
        z = jax.nn.sigmoid(gi[:, hd:2 * hd] + gh[:, hd:2 * hd])
        n = jnp.tanh(gi[:, 2 * hd:3 * hd] + r * gh[:, 2 * hd:3 * hd])
        h = (1.0 - z) * n + z * h

    # heads: lstm projector -> leaky_relu -> matcher([lstm_out, g]) -> sigmoid
    lstm_out = _leaky(
        jnp.dot(h, lpw_ref[...], preferred_element_type=jnp.float32) + lpb_ref[...])
    logit = (jnp.dot(lstm_out, wml_ref[...], preferred_element_type=jnp.float32)
             + jnp.dot(g, wmg_ref[...], preferred_element_type=jnp.float32)
             + bm_ref[...])
    out_ref[...] = jax.nn.sigmoid(logit)


# ------------------------------- wrapper --------------------------------------
def matching_network_forward(qpack, cpack, params):
    B = cpack["pool"].shape[0]
    args = (qpack["x"], qpack["edge_x"], qpack["src_oh"], qpack["dstT_oh"], qpack["pool"],
            cpack["x"], cpack["edge_x"], cpack["src_oh"], cpack["dstT_oh"], cpack["pool"],
            params["g_we"], params["g_w1"], params["g_w2"], params["g_vec"],
            params["q_we"], params["q_w1"], params["q_w2"], params["q_vec"],
            params["g_proj_w"], params["g_proj_b"],
            params["q_proj_w"], params["q_proj_b"],
            params["gru_wi_q"], params["gru_wi_d"], params["gru_wi_m"],
            params["gru_wh"], params["gru_bi"], params["gru_bh"],
            params["lstm_proj_w"], params["lstm_proj_b"],
            params["matcher_w_l"], params["matcher_w_g"], params["matcher_b"])
    vmem_spec = pl.BlockSpec(memory_space=pltpu.MemorySpace.VMEM)
    out = pl.pallas_call(
        _fused_kernel,
        out_shape=jax.ShapeDtypeStruct((B, OUT_P), jnp.float32),
        in_specs=[vmem_spec] * len(args),       # everything resident; single invocation
        out_specs=vmem_spec,
        compiler_params=pltpu.CompilerParams(
            vmem_limit_bytes=32 * 1024 * 1024),  # explicit budget (v5e default is 16 MiB)
    )(*args)
    return out[:, :OUTPUT_DIM]


# ---------------------- deterministic init, data, packing --------------------
def _pad2(a, rows, cols):
    out = jnp.zeros((rows, cols), jnp.float32)
    return out.at[: a.shape[0], : a.shape[1]].set(a)


def _linear_init(key, fan_in, fan_out):
    k1, k2 = jax.random.split(key)
    bound = 1.0 / math.sqrt(fan_in)
    w = jax.random.uniform(k1, (fan_in, fan_out), jnp.float32, -bound, bound)
    b = jax.random.uniform(k2, (1, fan_out), jnp.float32, -bound, bound)
    return w, b


def _gine_params(key, in_dim, hid_dim):
    k = jax.random.split(key, 3)
    we, be = _linear_init(k[0], EDGE_DIM, in_dim)      # GINEConv.lin: edge_dim -> in_dim
    w1, b1 = _linear_init(k[1], in_dim, hid_dim)
    w2, b2 = _linear_init(k[2], hid_dim, hid_dim)
    return dict(we=we, be=be, w1=w1, b1=b1, w2=w2, b2=b2,
                gamma=jnp.ones((1, hid_dim), jnp.float32),
                beta=jnp.zeros((1, hid_dim), jnp.float32),
                mean=jnp.zeros((1, hid_dim), jnp.float32),
                var=jnp.ones((1, hid_dim), jnp.float32))


def _pack_gine(p):
    """Pad GINE weights to 128 lanes and pack all row-vectors into one (8,128) tile."""
    vec = jnp.zeros((8, HID_P), jnp.float32)
    vec = vec.at[0, : p["be"].shape[1]].set(p["be"][0])
    vec = vec.at[1, : Q_HID_DIM].set(p["b1"][0])
    vec = vec.at[2, : Q_HID_DIM].set(p["b2"][0])
    vec = vec.at[3, : Q_HID_DIM].set(p["gamma"][0])
    vec = vec.at[4, : Q_HID_DIM].set(p["beta"][0])
    vec = vec.at[5, : Q_HID_DIM].set(p["mean"][0])
    vec = vec.at[6, : Q_HID_DIM].set(p["var"][0])
    return dict(we=_pad2(p["we"], ED_P, IN_P),
                w1=_pad2(p["w1"], IN_P, HID_P),
                w2=_pad2(p["w2"], HID_P, HID_P),
                vec=vec)


def make_graph(key, num_nodes, num_edges, num_graphs):
    k = jax.random.split(key, 4)
    return dict(
        x=jax.random.normal(k[0], (num_nodes, INPUT_DIM), jnp.float32),
        edge_x=jax.random.normal(k[1], (num_edges, EDGE_DIM), jnp.float32),
        src=jax.random.randint(k[2], (num_edges,), 0, num_nodes),
        dst=jax.random.randint(k[3], (num_edges,), 0, num_nodes),
        batch=jnp.repeat(jnp.arange(num_graphs), num_nodes // num_graphs),
        num_nodes=num_nodes, num_edges=num_edges, num_graphs=num_graphs)


def _onehots(src, dst, batch, num_nodes, num_graphs, dtype):
    # TODO(synk): at real sizes replace dense one-hots with index-based gathers.
    src_oh = jax.nn.one_hot(src, num_nodes, dtype=dtype)        # (E, N) gather
    dstT_oh = jax.nn.one_hot(dst, num_nodes, dtype=dtype).T     # (N, E) scatter-add
    pool = jax.nn.one_hot(batch, num_graphs, dtype=dtype).T     # (B, N) add-pool
    return src_oh, dstT_oh, pool


def pack_crg(g):
    src_oh, dstT_oh, pool = _onehots(g["src"], g["dst"], g["batch"],
                                     g["num_nodes"], g["num_graphs"], jnp.bfloat16)
    return dict(x=_pad2(g["x"], g["num_nodes"], IN_P),
                edge_x=_pad2(g["edge_x"], g["num_edges"], ED_P),
                src_oh=src_oh, dstT_oh=dstT_oh, pool=pool)


def pack_queries_batched(queries):
    """Concatenate the T query graphs into one block-diagonal graph so the
    shared-weight query GNN runs once over all of them (M = T*Nq / T*Eq)."""
    num_t = len(queries)
    nq = queries[0]["num_nodes"]
    eq = queries[0]["num_edges"]
    b = queries[0]["num_graphs"]
    x = jnp.concatenate([q["x"] for q in queries], axis=0)
    ex = jnp.concatenate([q["edge_x"] for q in queries], axis=0)
    src = jnp.concatenate([q["src"] + t * nq for t, q in enumerate(queries)])
    dst = jnp.concatenate([q["dst"] + t * nq for t, q in enumerate(queries)])
    batch = jnp.concatenate([q["batch"] + t * b for t, q in enumerate(queries)])
    src_oh, dstT_oh, pool = _onehots(src, dst, batch, num_t * nq, num_t * b, jnp.bfloat16)
    return dict(x=_pad2(x, num_t * nq, IN_P),
                edge_x=_pad2(ex, num_t * eq, ED_P),
                src_oh=src_oh, dstT_oh=dstT_oh, pool=pool)


# ---------------------------- pure-JAX reference ------------------------------
_DOT = partial(jnp.dot, precision=jax.lax.Precision.HIGHEST)


def _ref_graph(g):
    src_oh, dstT_oh, pool = _onehots(g["src"], g["dst"], g["batch"],
                                     g["num_nodes"], g["num_graphs"], jnp.float32)
    return dict(x=g["x"], edge_x=g["edge_x"],
                src_oh=src_oh, dstT_oh=dstT_oh, pool=pool)


def _ref_gine_project(g, p, pw, pb):
    e = _DOT(g["edge_x"], p["we"]) + p["be"]
    msg = jnp.maximum(_DOT(g["src_oh"], g["x"]) + e, 0.0)
    h = _DOT(g["dstT_oh"], msg) + (1.0 + GINE_EPS) * g["x"]
    h1 = jnp.maximum(_DOT(h, p["w1"]) + p["b1"], 0.0)
    h2 = jnp.maximum(_DOT(h1, p["w2"]) + p["b2"], 0.0)
    z = (h2 - p["mean"]) * jax.lax.rsqrt(p["var"] + BN_EPS) * p["gamma"] + p["beta"]
    y = _DOT(_DOT(g["pool"], z), pw) + pb
    return jnp.where(y >= 0.0, y, LEAKY_SLOPE * y)


def reference_forward(queries, crg, rp):
    g = _ref_gine_project(_ref_graph(crg), rp["g_gin"], rp["g_proj_w"], rp["g_proj_b"])
    h = jnp.zeros((g.shape[0], LSTM_HID_DIM), jnp.float32)
    hd = LSTM_HID_DIM
    for qg in queries:
        q = _ref_gine_project(_ref_graph(qg), rp["q_gin"], rp["q_proj_w"], rp["q_proj_b"])
        xin = jnp.concatenate([q, q - g, q * g], axis=1)
        gi = _DOT(xin, rp["gru_wi"]) + rp["gru_bi"]
        gh = _DOT(h, rp["gru_wh"]) + rp["gru_bh"]
        r = jax.nn.sigmoid(gi[:, :hd] + gh[:, :hd])
        z = jax.nn.sigmoid(gi[:, hd:2 * hd] + gh[:, hd:2 * hd])
        n = jnp.tanh(gi[:, 2 * hd:] + r * gh[:, 2 * hd:])
        h = (1.0 - z) * n + z * h
    lstm_out = _DOT(h, rp["lstm_proj_w"]) + rp["lstm_proj_b"]
    lstm_out = jnp.where(lstm_out >= 0.0, lstm_out, LEAKY_SLOPE * lstm_out)
    logit = _DOT(jnp.concatenate([lstm_out, g], axis=1), rp["matcher_w"]) + rp["matcher_b"]
    return jax.nn.sigmoid(logit)


# ------------------------------------ main ------------------------------------
if __name__ == "__main__":
    key = jax.random.PRNGKey(0)
    k_crg, k_q, k_p = jax.random.split(key, 3)

    B = 2   # graphs per batch (queries[0].batch_size)
    T = 4   # number of query graphs (GRU sequence length)

    crg_raw = make_graph(k_crg, num_nodes=12, num_edges=24, num_graphs=B)
    qkeys = jax.random.split(k_q, T)
    queries_raw = [make_graph(qk, num_nodes=10, num_edges=20, num_graphs=B)
                   for qk in qkeys]

    pk = jax.random.split(k_p, 8)
    # real (unpadded) params, torch-style init
    rp = dict(g_gin=_gine_params(pk[0], INPUT_DIM, Q_HID_DIM),
              q_gin=_gine_params(pk[1], INPUT_DIM, Q_HID_DIM))
    rp["g_proj_w"], rp["g_proj_b"] = _linear_init(pk[2], Q_HID_DIM * Q_NUM_LAYERS, PROJECT_DIM)
    rp["q_proj_w"], rp["q_proj_b"] = _linear_init(pk[3], Q_HID_DIM * Q_NUM_LAYERS, PROJECT_DIM)
    rp["gru_wi"], rp["gru_bi"] = _linear_init(pk[4], PROJECT_DIM * 3, 3 * LSTM_HID_DIM)
    rp["gru_wh"], rp["gru_bh"] = _linear_init(pk[5], LSTM_HID_DIM, 3 * LSTM_HID_DIM)
    rp["lstm_proj_w"], rp["lstm_proj_b"] = _linear_init(
        pk[6], LSTM_HID_DIM * LSTM_NUM_LAYERS, LSTM_PROJECT_DIM)
    rp["matcher_w"], rp["matcher_b"] = _linear_init(
        pk[7], LSTM_PROJECT_DIM + PROJECT_DIM, OUTPUT_DIM)

    # lane-padded / repacked params for the fused kernel
    gpack = _pack_gine(rp["g_gin"])
    qpack_w = _pack_gine(rp["q_gin"])
    P = PROJECT_DIM
    params = dict(
        g_we=gpack["we"], g_w1=gpack["w1"], g_w2=gpack["w2"], g_vec=gpack["vec"],
        q_we=qpack_w["we"], q_w1=qpack_w["w1"], q_w2=qpack_w["w2"], q_vec=qpack_w["vec"],
        g_proj_w=_pad2(rp["g_proj_w"], HID_P, PROJ_P),
        g_proj_b=_pad2(rp["g_proj_b"], 1, PROJ_P),
        q_proj_w=_pad2(rp["q_proj_w"], HID_P, PROJ_P),
        q_proj_b=_pad2(rp["q_proj_b"], 1, PROJ_P),
        # GRU input weight split per concat-part [q | q-g | q*g]; the three
        # gates (3*32 = 96 cols) are packed into ONE 128-lane tile (0/32/64).
        gru_wi_q=_pad2(rp["gru_wi"][0:P, :], PROJ_P, GATE_P),
        gru_wi_d=_pad2(rp["gru_wi"][P:2 * P, :], PROJ_P, GATE_P),
        gru_wi_m=_pad2(rp["gru_wi"][2 * P:3 * P, :], PROJ_P, GATE_P),
        gru_wh=_pad2(rp["gru_wh"], LSTM_HID_DIM, GATE_P),
        gru_bi=_pad2(rp["gru_bi"], 1, GATE_P),
        gru_bh=_pad2(rp["gru_bh"], 1, GATE_P),
        lstm_proj_w=_pad2(rp["lstm_proj_w"], LSTM_HID_DIM, LP_P),
        lstm_proj_b=_pad2(rp["lstm_proj_b"], 1, LP_P),
        # matcher weight split per concat-part [lstm_out | g]
        matcher_w_l=_pad2(rp["matcher_w"][:LSTM_PROJECT_DIM, :], LP_P, OUT_P),
        matcher_w_g=_pad2(rp["matcher_w"][LSTM_PROJECT_DIM:, :], PROJ_P, OUT_P),
        matcher_b=_pad2(rp["matcher_b"], 1, OUT_P),
    )

    cpack = pack_crg(crg_raw)
    qpack = pack_queries_batched(queries_raw)

    out = matching_network_forward(qpack, cpack, params)
    out = jax.block_until_ready(out)

    assert out.shape == (B, OUTPUT_DIM), out.shape
    assert bool(jnp.all(jnp.isfinite(out)))
    assert bool(jnp.all((out > 0.0) & (out < 1.0)))   # sigmoid output range

    ref = reference_forward(queries_raw, crg_raw, rp)
    assert bool(jnp.allclose(out, ref, atol=2e-2)), (out, ref)

    print("KERNEL_OK")
</pallas_src>

<mosaic_0001>
module attributes {stable_mosaic.version = 11 : i64} {
  func.func @_fused_kernel(%arg0: memref<40x128xf32, #tpu.memory_space<vmem>>, %arg1: memref<80x128xf32, #tpu.memory_space<vmem>>, %arg2: memref<80x40xbf16, #tpu.memory_space<vmem>>, %arg3: memref<40x80xbf16, #tpu.memory_space<vmem>>, %arg4: memref<8x40xbf16, #tpu.memory_space<vmem>>, %arg5: memref<12x128xf32, #tpu.memory_space<vmem>>, %arg6: memref<24x128xf32, #tpu.memory_space<vmem>>, %arg7: memref<24x12xbf16, #tpu.memory_space<vmem>>, %arg8: memref<12x24xbf16, #tpu.memory_space<vmem>>, %arg9: memref<2x12xbf16, #tpu.memory_space<vmem>>, %arg10: memref<128x128xf32, #tpu.memory_space<vmem>>, %arg11: memref<128x128xf32, #tpu.memory_space<vmem>>, %arg12: memref<128x128xf32, #tpu.memory_space<vmem>>, %arg13: memref<8x128xf32, #tpu.memory_space<vmem>>, %arg14: memref<128x128xf32, #tpu.memory_space<vmem>>, %arg15: memref<128x128xf32, #tpu.memory_space<vmem>>, %arg16: memref<128x128xf32, #tpu.memory_space<vmem>>, %arg17: memref<8x128xf32, #tpu.memory_space<vmem>>, %arg18: memref<128x128xf32, #tpu.memory_space<vmem>>, %arg19: memref<1x128xf32, #tpu.memory_space<vmem>>, %arg20: memref<128x128xf32, #tpu.memory_space<vmem>>, %arg21: memref<1x128xf32, #tpu.memory_space<vmem>>, %arg22: memref<128x128xf32, #tpu.memory_space<vmem>>, %arg23: memref<128x128xf32, #tpu.memory_space<vmem>>, %arg24: memref<128x128xf32, #tpu.memory_space<vmem>>, %arg25: memref<32x128xf32, #tpu.memory_space<vmem>>, %arg26: memref<1x128xf32, #tpu.memory_space<vmem>>, %arg27: memref<1x128xf32, #tpu.memory_space<vmem>>, %arg28: memref<32x128xf32, #tpu.memory_space<vmem>>, %arg29: memref<1x128xf32, #tpu.memory_space<vmem>>, %arg30: memref<128x128xf32, #tpu.memory_space<vmem>>, %arg31: memref<128x128xf32, #tpu.memory_space<vmem>>, %arg32: memref<1x128xf32, #tpu.memory_space<vmem>>, %arg33: memref<2x128xf32, #tpu.memory_space<vmem>>) attributes {dimension_semantics = [], scalar_prefetch = 0 : i64, scratch_operands = 0 : i64, tpu.core_type = #tpu.core_type<tc>} {
    %c0 = arith.constant 0 : index
    %c0_0 = arith.constant 0 : index
    %0 = vector.load %arg5[%c0, %c0_0] : memref<12x128xf32, #tpu.memory_space<vmem>>, vector<12x128xf32>
    %c0_1 = arith.constant 0 : index
    %c0_2 = arith.constant 0 : index
    %1 = vector.load %arg6[%c0_1, %c0_2] : memref<24x128xf32, #tpu.memory_space<vmem>>, vector<24x128xf32>
    %c0_3 = arith.constant 0 : index
    %c0_4 = arith.constant 0 : index
    %2 = vector.load %arg7[%c0_3, %c0_4] : memref<24x12xbf16, #tpu.memory_space<vmem>>, vector<24x12xbf16>
    %c0_5 = arith.constant 0 : index
    %c0_6 = arith.constant 0 : index
    %3 = vector.load %arg8[%c0_5, %c0_6] : memref<12x24xbf16, #tpu.memory_space<vmem>>, vector<12x24xbf16>
    %c0_7 = arith.constant 0 : index
    %c0_8 = arith.constant 0 : index
    %4 = vector.load %arg9[%c0_7, %c0_8] : memref<2x12xbf16, #tpu.memory_space<vmem>>, vector<2x12xbf16>
    %c0_9 = arith.constant 0 : index
    %c0_10 = arith.constant 0 : index
    %5 = vector.load %arg10[%c0_9, %c0_10] : memref<128x128xf32, #tpu.memory_space<vmem>>, vector<128x128xf32>
    %c0_11 = arith.constant 0 : index
    %c0_12 = arith.constant 0 : index
    %6 = vector.load %arg11[%c0_11, %c0_12] : memref<128x128xf32, #tpu.memory_space<vmem>>, vector<128x128xf32>
    %c0_13 = arith.constant 0 : index
    %c0_14 = arith.constant 0 : index
    %7 = vector.load %arg12[%c0_13, %c0_14] : memref<128x128xf32, #tpu.memory_space<vmem>>, vector<128x128xf32>
    %c0_15 = arith.constant 0 : index
    %c0_16 = arith.constant 0 : index
    %8 = vector.load %arg13[%c0_15, %c0_16] : memref<8x128xf32, #tpu.memory_space<vmem>>, vector<8x128xf32>
    %c0_17 = arith.constant 0 : index
    %c0_18 = arith.constant 0 : index
    %9 = vector.load %arg18[%c0_17, %c0_18] : memref<128x128xf32, #tpu.memory_space<vmem>>, vector<128x128xf32>
    %c0_19 = arith.constant 0 : index
    %c0_20 = arith.constant 0 : index
    %10 = vector.load %arg19[%c0_19, %c0_20] : memref<1x128xf32, #tpu.memory_space<vmem>>, vector<1x128xf32>
    %11 = vector.extract_strided_slice %8 {offsets = [0, 0], sizes = [1, 128], strides = [1, 1]} : vector<8x128xf32> to vector<1x128xf32>
    %12 = vector.extract_strided_slice %8 {offsets = [1, 0], sizes = [1, 128], strides = [1, 1]} : vector<8x128xf32> to vector<1x128xf32>
    %13 = vector.extract_strided_slice %8 {offsets = [2, 0], sizes = [1, 128], strides = [1, 1]} : vector<8x128xf32> to vector<1x128xf32>
    %14 = vector.extract_strided_slice %8 {offsets = [3, 0], sizes = [1, 128], strides = [1, 1]} : vector<8x128xf32> to vector<1x128xf32>
    %15 = vector.extract_strided_slice %8 {offsets = [4, 0], sizes = [1, 128], strides = [1, 1]} : vector<8x128xf32> to vector<1x128xf32>
    %16 = vector.extract_strided_slice %8 {offsets = [5, 0], sizes = [1, 128], strides = [1, 1]} : vector<8x128xf32> to vector<1x128xf32>
    %17 = vector.extract_strided_slice %8 {offsets = [6, 0], sizes = [1, 128], strides = [1, 1]} : vector<8x128xf32> to vector<1x128xf32>
    %cst = arith.constant dense<0.000000e+00> : vector<24x128xf32>
    %18 = tpu.matmul %1, %5, %cst {dimension_numbers = #tpu.dot_dimension_numbers<[1], [0], [0], [1], [0, 0, 1, 1], [], []>} : vector<24x128xf32>, vector<128x128xf32>, vector<24x128xf32> -> vector<24x128xf32>
    %19 = vector.broadcast %11 : vector<1x128xf32> to vector<24x128xf32>
    %20 = arith.addf %18, %19 : vector<24x128xf32>
    %21 = arith.truncf %0 : vector<12x128xf32> to vector<12x128xbf16>
    %cst_21 = arith.constant dense<0.000000e+00> : vector<24x128xf32>
    %22 = tpu.matmul %2, %21, %cst_21 {dimension_numbers = #tpu.dot_dimension_numbers<[1], [0], [0], [1], [0, 0, 1, 1], [], []>} : vector<24x12xbf16>, vector<12x128xbf16>, vector<24x128xf32> -> vector<24x128xf32>
    %23 = arith.addf %22, %20 : vector<24x128xf32>
    %cst_22 = arith.constant 0.000000e+00 : f32
    %24 = vector.broadcast %cst_22 : f32 to vector<24x128xf32>
    %25 = arith.maximumf %23, %24 : vector<24x128xf32>
    %26 = arith.truncf %25 : vector<24x128xf32> to vector<24x128xbf16>
    %cst_23 = arith.constant dense<0.000000e+00> : vector<12x128xf32>
    %27 = tpu.matmul %3, %26, %cst_23 {dimension_numbers = #tpu.dot_dimension_numbers<[1], [0], [0], [1], [0, 0, 1, 1], [], []>} : vector<12x24xbf16>, vector<24x128xbf16>, vector<12x128xf32> -> vector<12x128xf32>
    %cst_24 = arith.constant 2.000000e+00 : f32
    %28 = vector.broadcast %cst_24 : f32 to vector<12x128xf32>
    %29 = arith.mulf %28, %0 : vector<12x128xf32>
    %30 = arith.addf %27, %29 : vector<12x128xf32>
    %cst_25 = arith.constant dense<0.000000e+00> : vector<12x128xf32>
    %31 = tpu.matmul %30, %6, %cst_25 {dimension_numbers = #tpu.dot_dimension_numbers<[1], [0], [0], [1], [0, 0, 1, 1], [], []>} : vector<12x128xf32>, vector<128x128xf32>, vector<12x128xf32> -> vector<12x128xf32>
    %32 = vector.broadcast %12 : vector<1x128xf32> to vector<12x128xf32>
    %33 = arith.addf %31, %32 : vector<12x128xf32>
    %cst_26 = arith.constant 0.000000e+00 : f32
    %34 = vector.broadcast %cst_26 : f32 to vector<12x128xf32>
    %35 = arith.maximumf %33, %34 : vector<12x128xf32>
    %cst_27 = arith.constant dense<0.000000e+00> : vector<12x128xf32>
    %36 = tpu.matmul %35, %7, %cst_27 {dimension_numbers = #tpu.dot_dimension_numbers<[1], [0], [0], [1], [0, 0, 1, 1], [], []>} : vector<12x128xf32>, vector<128x128xf32>, vector<12x128xf32> -> vector<12x128xf32>
    %37 = vector.broadcast %13 : vector<1x128xf32> to vector<12x128xf32>
    %38 = arith.addf %36, %37 : vector<12x128xf32>
    %cst_28 = arith.constant 0.000000e+00 : f32
    %39 = vector.broadcast %cst_28 : f32 to vector<12x128xf32>
    %40 = arith.maximumf %38, %39 : vector<12x128xf32>
    %41 = vector.broadcast %16 : vector<1x128xf32> to vector<12x128xf32>
    %42 = arith.subf %40, %41 : vector<12x128xf32>
    %cst_29 = arith.constant 9.99999974E-6 : f32
    %43 = vector.broadcast %cst_29 : f32 to vector<1x128xf32>
    %44 = arith.addf %17, %43 : vector<1x128xf32>
    %45 = math.rsqrt %44 : vector<1x128xf32>
    %46 = vector.broadcast %45 : vector<1x128xf32> to vector<12x128xf32>
    %47 = arith.mulf %42, %46 : vector<12x128xf32>
    %48 = vector.broadcast %14 : vector<1x128xf32> to vector<12x128xf32>
    %49 = arith.mulf %47, %48 : vector<12x128xf32>
    %50 = vector.broadcast %15 : vector<1x128xf32> to vector<12x128xf32>
    %51 = arith.addf %49, %50 : vector<12x128xf32>
    %52 = arith.truncf %51 : vector<12x128xf32> to vector<12x128xbf16>
    %cst_30 = arith.constant dense<0.000000e+00> : vector<2x128xf32>
    %53 = tpu.matmul %4, %52, %cst_30 {dimension_numbers = #tpu.dot_dimension_numbers<[1], [0], [0], [1], [0, 0, 1, 1], [], []>} : vector<2x12xbf16>, vector<12x128xbf16>, vector<2x128xf32> -> vector<2x128xf32>
    %cst_31 = arith.constant dense<0.000000e+00> : vector<2x128xf32>
    %54 = tpu.matmul %53, %9, %cst_31 {dimension_numbers = #tpu.dot_dimension_numbers<[1], [0], [0], [1], [0, 0, 1, 1], [], []>} : vector<2x128xf32>, vector<128x128xf32>, vector<2x128xf32> -> vector<2x128xf32>
    %55 = vector.broadcast %10 : vector<1x128xf32> to vector<2x128xf32>
    %56 = arith.addf %54, %55 : vector<2x128xf32>
    %cst_32 = arith.constant 0.000000e+00 : f32
    %57 = vector.broadcast %cst_32 : f32 to vector<2x128xf32>
    %58 = arith.cmpf oge, %56, %57 : vector<2x128xf32>
    %cst_33 = arith.constant 0.00999999977 : f32
    %59 = vector.broadcast %cst_33 : f32 to vector<2x128xf32>
    %60 = arith.mulf %59, %56 : vector<2x128xf32>
    %61 = arith.select %58, %56, %60 : vector<2x128xi1>, vector<2x128xf32>
    %c0_34 = arith.constant 0 : index
    %c0_35 = arith.constant 0 : index
    %62 = vector.load %arg0[%c0_34, %c0_35] : memref<40x128xf32, #tpu.memory_space<vmem>>, vector<40x128xf32>
    %c0_36 = arith.constant 0 : index
    %c0_37 = arith.constant 0 : index
    %63 = vector.load %arg1[%c0_36, %c0_37] : memref<80x128xf32, #tpu.memory_space<vmem>>, vector<80x128xf32>
    %c0_38 = arith.constant 0 : index
    %c0_39 = arith.constant 0 : index
    %64 = vector.load %arg2[%c0_38, %c0_39] : memref<80x40xbf16, #tpu.memory_space<vmem>>, vector<80x40xbf16>
    %c0_40 = arith.constant 0 : index
    %c0_41 = arith.constant 0 : index
    %65 = vector.load %arg3[%c0_40, %c0_41] : memref<40x80xbf16, #tpu.memory_space<vmem>>, vector<40x80xbf16>
    %c0_42 = arith.constant 0 : index
    %c0_43 = arith.constant 0 : index
    %66 = vector.load %arg4[%c0_42, %c0_43] : memref<8x40xbf16, #tpu.memory_space<vmem>>, vector<8x40xbf16>
    %c0_44 = arith.constant 0 : index
    %c0_45 = arith.constant 0 : index
    %67 = vector.load %arg14[%c0_44, %c0_45] : memref<128x128xf32, #tpu.memory_space<vmem>>, vector<128x128xf32>
    %c0_46 = arith.constant 0 : index
    %c0_47 = arith.constant 0 : index
    %68 = vector.load %arg15[%c0_46, %c0_47] : memref<128x128xf32, #tpu.memory_space<vmem>>, vector<128x128xf32>
    %c0_48 = arith.constant 0 : index
    %c0_49 = arith.constant 0 : index
    %69 = vector.load %arg16[%c0_48, %c0_49] : memref<128x128xf32, #tpu.memory_space<vmem>>, vector<128x128xf32>
    %c0_50 = arith.constant 0 : index
    %c0_51 = arith.constant 0 : index
    %70 = vector.load %arg17[%c0_50, %c0_51] : memref<8x128xf32, #tpu.memory_space<vmem>>, vector<8x128xf32>
    %c0_52 = arith.constant 0 : index
    %c0_53 = arith.constant 0 : index
    %71 = vector.load %arg20[%c0_52, %c0_53] : memref<128x128xf32, #tpu.memory_space<vmem>>, vector<128x128xf32>
    %c0_54 = arith.constant 0 : index
    %c0_55 = arith.constant 0 : index
    %72 = vector.load %arg21[%c0_54, %c0_55] : memref<1x128xf32, #tpu.memory_space<vmem>>, vector<1x128xf32>
    %73 = vector.extract_strided_slice %70 {offsets = [0, 0], sizes = [1, 128], strides = [1, 1]} : vector<8x128xf32> to vector<1x128xf32>
    %74 = vector.extract_strided_slice %70 {offsets = [1, 0], sizes = [1, 128], strides = [1, 1]} : vector<8x128xf32> to vector<1x128xf32>
    %75 = vector.extract_strided_slice %70 {offsets = [2, 0], sizes = [1, 128], strides = [1, 1]} : vector<8x128xf32> to vector<1x128xf32>
    %76 = vector.extract_strided_slice %70 {offsets = [3, 0], sizes = [1, 128], strides = [1, 1]} : vector<8x128xf32> to vector<1x128xf32>
    %77 = vector.extract_strided_slice %70 {offsets = [4, 0], sizes = [1, 128], strides = [1, 1]} : vector<8x128xf32> to vector<1x128xf32>
    %78 = vector.extract_strided_slice %70 {offsets = [5, 0], sizes = [1, 128], strides = [1, 1]} : vector<8x128xf32> to vector<1x128xf32>
    %79 = vector.extract_strided_slice %70 {offsets = [6, 0], sizes = [1, 128], strides = [1, 1]} : vector<8x128xf32> to vector<1x128xf32>
    %cst_56 = arith.constant dense<0.000000e+00> : vector<80x128xf32>
    %80 = tpu.matmul %63, %67, %cst_56 {dimension_numbers = #tpu.dot_dimension_numbers<[1], [0], [0], [1], [0, 0, 1, 1], [], []>} : vector<80x128xf32>, vector<128x128xf32>, vector<80x128xf32> -> vector<80x128xf32>
    %81 = vector.broadcast %73 : vector<1x128xf32> to vector<80x128xf32>
    %82 = arith.addf %80, %81 : vector<80x128xf32>
    %83 = arith.truncf %62 : vector<40x128xf32> to vector<40x128xbf16>
    %cst_57 = arith.constant dense<0.000000e+00> : vector<80x128xf32>
    %84 = tpu.matmul %64, %83, %cst_57 {dimension_numbers = #tpu.dot_dimension_numbers<[1], [0], [0], [1], [0, 0, 1, 1], [], []>} : vector<80x40xbf16>, vector<40x128xbf16>, vector<80x128xf32> -> vector<80x128xf32>
    %85 = arith.addf %84, %82 : vector<80x128xf32>
    %cst_58 = arith.constant 0.000000e+00 : f32
    %86 = vector.broadcast %cst_58 : f32 to vector<80x128xf32>
    %87 = arith.maximumf %85, %86 : vector<80x128xf32>
    %88 = arith.truncf %87 : vector<80x128xf32> to vector<80x128xbf16>
    %cst_59 = arith.constant dense<0.000000e+00> : vector<40x128xf32>
    %89 = tpu.matmul %65, %88, %cst_59 {dimension_numbers = #tpu.dot_dimension_numbers<[1], [0], [0], [1], [0, 0, 1, 1], [], []>} : vector<40x80xbf16>, vector<80x128xbf16>, vector<40x128xf32> -> vector<40x128xf32>
    %cst_60 = arith.constant 2.000000e+00 : f32
    %90 = vector.broadcast %cst_60 : f32 to vector<40x128xf32>
    %91 = arith.mulf %90, %62 : vector<40x128xf32>
    %92 = arith.addf %89, %91 : vector<40x128xf32>
    %cst_61 = arith.constant dense<0.000000e+00> : vector<40x128xf32>
    %93 = tpu.matmul %92, %68, %cst_61 {dimension_numbers = #tpu.dot_dimension_numbers<[1], [0], [0], [1], [0, 0, 1, 1], [], []>} : vector<40x128xf32>, vector<128x128xf32>, vector<40x128xf32> -> vector<40x128xf32>
    %94 = vector.broadcast %74 : vector<1x128xf32> to vector<40x128xf32>
    %95 = arith.addf %93, %94 : vector<40x128xf32>
    %cst_62 = arith.constant 0.000000e+00 : f32
    %96 = vector.broadcast %cst_62 : f32 to vector<40x128xf32>
    %97 = arith.maximumf %95, %96 : vector<40x128xf32>
    %cst_63 = arith.constant dense<0.000000e+00> : vector<40x128xf32>
    %98 = tpu.matmul %97, %69, %cst_63 {dimension_numbers = #tpu.dot_dimension_numbers<[1], [0], [0], [1], [0, 0, 1, 1], [], []>} : vector<40x128xf32>, vector<128x128xf32>, vector<40x128xf32> -> vector<40x128xf32>
    %99 = vector.broadcast %75 : vector<1x128xf32> to vector<40x128xf32>
    %100 = arith.addf %98, %99 : vector<40x128xf32>
    %cst_64 = arith.constant 0.000000e+00 : f32
    %101 = vector.broadcast %cst_64 : f32 to vector<40x128xf32>
    %102 = arith.maximumf %100, %101 : vector<40x128xf32>
    %103 = vector.broadcast %78 : vector<1x128xf32> to vector<40x128xf32>
    %104 = arith.subf %102, %103 : vector<40x128xf32>
    %cst_65 = arith.constant 9.99999974E-6 : f32
    %105 = vector.broadcast %cst_65 : f32 to vector<1x128xf32>
    %106 = arith.addf %79, %105 : vector<1x128xf32>
    %107 = math.rsqrt %106 : vector<1x128xf32>
    %108 = vector.broadcast %107 : vector<1x128xf32> to vector<40x128xf32>
    %109 = arith.mulf %104, %108 : vector<40x128xf32>
    %110 = vector.broadcast %76 : vector<1x128xf32> to vector<40x128xf32>
    %111 = arith.mulf %109, %110 : vector<40x128xf32>
    %112 = vector.broadcast %77 : vector<1x128xf32> to vector<40x128xf32>
    %113 = arith.addf %111, %112 : vector<40x128xf32>
    %114 = arith.truncf %113 : vector<40x128xf32> to vector<40x128xbf16>
    %cst_66 = arith.constant dense<0.000000e+00> : vector<8x128xf32>
    %115 = tpu.matmul %66, %114, %cst_66 {dimension_numbers = #tpu.dot_dimension_numbers<[1], [0], [0], [1], [0, 0, 1, 1], [], []>} : vector<8x40xbf16>, vector<40x128xbf16>, vector<8x128xf32> -> vector<8x128xf32>
    %cst_67 = arith.constant dense<0.000000e+00> : vector<8x128xf32>
    %116 = tpu.matmul %115, %71, %cst_67 {dimension_numbers = #tpu.dot_dimension_numbers<[1], [0], [0], [1], [0, 0, 1, 1], [], []>} : vector<8x128xf32>, vector<128x128xf32>, vector<8x128xf32> -> vector<8x128xf32>
    %117 = vector.broadcast %72 : vector<1x128xf32> to vector<8x128xf32>
    %118 = arith.addf %116, %117 : vector<8x128xf32>
    %cst_68 = arith.constant 0.000000e+00 : f32
    %119 = vector.broadcast %cst_68 : f32 to vector<8x128xf32>
    %120 = arith.cmpf oge, %118, %119 : vector<8x128xf32>
    %cst_69 = arith.constant 0.00999999977 : f32
    %121 = vector.broadcast %cst_69 : f32 to vector<8x128xf32>
    %122 = arith.mulf %121, %118 : vector<8x128xf32>
    %123 = arith.select %120, %118, %122 : vector<8x128xi1>, vector<8x128xf32>
    %c0_70 = arith.constant 0 : index
    %c0_71 = arith.constant 0 : index
    %124 = vector.load %arg22[%c0_70, %c0_71] : memref<128x128xf32, #tpu.memory_space<vmem>>, vector<128x128xf32>
    %c0_72 = arith.constant 0 : index
    %c0_73 = arith.constant 0 : index
    %125 = vector.load %arg23[%c0_72, %c0_73] : memref<128x128xf32, #tpu.memory_space<vmem>>, vector<128x128xf32>
    %c0_74 = arith.constant 0 : index
    %c0_75 = arith.constant 0 : index
    %126 = vector.load %arg24[%c0_74, %c0_75] : memref<128x128xf32, #tpu.memory_space<vmem>>, vector<128x128xf32>
    %c0_76 = arith.constant 0 : index
    %c0_77 = arith.constant 0 : index
    %127 = vector.load %arg25[%c0_76, %c0_77] : memref<32x128xf32, #tpu.memory_space<vmem>>, vector<32x128xf32>
    %c0_78 = arith.constant 0 : index
    %c0_79 = arith.constant 0 : index
    %128 = vector.load %arg26[%c0_78, %c0_79] : memref<1x128xf32, #tpu.memory_space<vmem>>, vector<1x128xf32>
    %c0_80 = arith.constant 0 : index
    %c0_81 = arith.constant 0 : index
    %129 = vector.load %arg27[%c0_80, %c0_81] : memref<1x128xf32, #tpu.memory_space<vmem>>, vector<1x128xf32>
    %cst_82 = arith.constant 0.000000e+00 : f32
    %130 = vector.broadcast %cst_82 : f32 to vector<2x32xf32>
    %131 = vector.extract_strided_slice %123 {offsets = [0, 0], sizes = [2, 128], strides = [1, 1]} : vector<8x128xf32> to vector<2x128xf32>
    %cst_83 = arith.constant dense<0.000000e+00> : vector<2x128xf32>
    %132 = tpu.matmul %131, %124, %cst_83 {dimension_numbers = #tpu.dot_dimension_numbers<[1], [0], [0], [1], [0, 0, 1, 1], [], []>} : vector<2x128xf32>, vector<128x128xf32>, vector<2x128xf32> -> vector<2x128xf32>
    %133 = arith.subf %131, %61 : vector<2x128xf32>
    %cst_84 = arith.constant dense<0.000000e+00> : vector<2x128xf32>
    %134 = tpu.matmul %133, %125, %cst_84 {dimension_numbers = #tpu.dot_dimension_numbers<[1], [0], [0], [1], [0, 0, 1, 1], [], []>} : vector<2x128xf32>, vector<128x128xf32>, vector<2x128xf32> -> vector<2x128xf32>
    %135 = arith.addf %132, %134 : vector<2x128xf32>
    %136 = arith.mulf %131, %61 : vector<2x128xf32>
    %cst_85 = arith.constant dense<0.000000e+00> : vector<2x128xf32>
    %137 = tpu.matmul %136, %126, %cst_85 {dimension_numbers = #tpu.dot_dimension_numbers<[1], [0], [0], [1], [0, 0, 1, 1], [], []>} : vector<2x128xf32>, vector<128x128xf32>, vector<2x128xf32> -> vector<2x128xf32>
    %138 = arith.addf %135, %137 : vector<2x128xf32>
    %139 = vector.broadcast %128 : vector<1x128xf32> to vector<2x128xf32>
    %140 = arith.addf %138, %139 : vector<2x128xf32>
    %cst_86 = arith.constant dense<0.000000e+00> : vector<2x128xf32>
    %141 = tpu.matmul %130, %127, %cst_86 {dimension_numbers = #tpu.dot_dimension_numbers<[1], [0], [0], [1], [0, 0, 1, 1], [], []>} : vector<2x32xf32>, vector<32x128xf32>, vector<2x128xf32> -> vector<2x128xf32>
    %142 = vector.broadcast %129 : vector<1x128xf32> to vector<2x128xf32>
    %143 = arith.addf %141, %142 : vector<2x128xf32>
    %144 = vector.extract_strided_slice %140 {offsets = [0, 0], sizes = [2, 32], strides = [1, 1]} : vector<2x128xf32> to vector<2x32xf32>
    %145 = vector.extract_strided_slice %143 {offsets = [0, 0], sizes = [2, 32], strides = [1, 1]} : vector<2x128xf32> to vector<2x32xf32>
    %146 = arith.addf %144, %145 : vector<2x32xf32>
    %147 = arith.negf %146 : vector<2x32xf32>
    %148 = math.exp %147 : vector<2x32xf32>
    %cst_87 = arith.constant 1.000000e+00 : f32
    %149 = vector.broadcast %cst_87 : f32 to vector<2x32xf32>
    %150 = arith.addf %149, %148 : vector<2x32xf32>
    %151 = arith.divf %149, %150 : vector<2x32xf32>
    %152 = vector.extract_strided_slice %140 {offsets = [0, 32], sizes = [2, 32], strides = [1, 1]} : vector<2x128xf32> to vector<2x32xf32>
    %153 = vector.extract_strided_slice %143 {offsets = [0, 32], sizes = [2, 32], strides = [1, 1]} : vector<2x128xf32> to vector<2x32xf32>
    %154 = arith.addf %152, %153 : vector<2x32xf32>
    %155 = arith.negf %154 : vector<2x32xf32>
    %156 = math.exp %155 : vector<2x32xf32>
    %cst_88 = arith.constant 1.000000e+00 : f32
    %157 = vector.broadcast %cst_88 : f32 to vector<2x32xf32>
    %158 = arith.addf %157, %156 : vector<2x32xf32>
    %159 = arith.divf %157, %158 : vector<2x32xf32>
    %160 = vector.extract_strided_slice %140 {offsets = [0, 64], sizes = [2, 32], strides = [1, 1]} : vector<2x128xf32> to vector<2x32xf32>
    %161 = vector.extract_strided_slice %143 {offsets = [0, 64], sizes = [2, 32], strides = [1, 1]} : vector<2x128xf32> to vector<2x32xf32>
    %162 = arith.mulf %151, %161 : vector<2x32xf32>
    %163 = arith.addf %160, %162 : vector<2x32xf32>
    %164 = math.tanh %163 : vector<2x32xf32>
    %cst_89 = arith.constant 1.000000e+00 : f32
    %165 = vector.broadcast %cst_89 : f32 to vector<2x32xf32>
    %166 = arith.subf %165, %159 : vector<2x32xf32>
    %167 = arith.mulf %166, %164 : vector<2x32xf32>
    %168 = arith.mulf %159, %130 : vector<2x32xf32>
    %169 = arith.addf %167, %168 : vector<2x32xf32>
    %170 = vector.extract_strided_slice %123 {offsets = [2, 0], sizes = [2, 128], strides = [1, 1]} : vector<8x128xf32> to vector<2x128xf32>
    %cst_90 = arith.constant dense<0.000000e+00> : vector<2x128xf32>
    %171 = tpu.matmul %170, %124, %cst_90 {dimension_numbers = #tpu.dot_dimension_numbers<[1], [0], [0], [1], [0, 0, 1, 1], [], []>} : vector<2x128xf32>, vector<128x128xf32>, vector<2x128xf32> -> vector<2x128xf32>
    %172 = arith.subf %170, %61 : vector<2x128xf32>
    %cst_91 = arith.constant dense<0.000000e+00> : vector<2x128xf32>
    %173 = tpu.matmul %172, %125, %cst_91 {dimension_numbers = #tpu.dot_dimension_numbers<[1], [0], [0], [1], [0, 0, 1, 1], [], []>} : vector<2x128xf32>, vector<128x128xf32>, vector<2x128xf32> -> vector<2x128xf32>
    %174 = arith.addf %171, %173 : vector<2x128xf32>
    %175 = arith.mulf %170, %61 : vector<2x128xf32>
    %cst_92 = arith.constant dense<0.000000e+00> : vector<2x128xf32>
    %176 = tpu.matmul %175, %126, %cst_92 {dimension_numbers = #tpu.dot_dimension_numbers<[1], [0], [0], [1], [0, 0, 1, 1], [], []>} : vector<2x128xf32>, vector<128x128xf32>, vector<2x128xf32> -> vector<2x128xf32>
    %177 = arith.addf %174, %176 : vector<2x128xf32>
    %178 = vector.broadcast %128 : vector<1x128xf32> to vector<2x128xf32>
    %179 = arith.addf %177, %178 : vector<2x128xf32>
    %cst_93 = arith.constant dense<0.000000e+00> : vector<2x128xf32>
    %180 = tpu.matmul %169, %127, %cst_93 {dimension_numbers = #tpu.dot_dimension_numbers<[1], [0], [0], [1], [0, 0, 1, 1], [], []>} : vector<2x32xf32>, vector<32x128xf32>, vector<2x128xf32> -> vector<2x128xf32>
    %181 = vector.broadcast %129 : vector<1x128xf32> to vector<2x128xf32>
    %182 = arith.addf %180, %181 : vector<2x128xf32>
    %183 = vector.extract_strided_slice %179 {offsets = [0, 0], sizes = [2, 32], strides = [1, 1]} : vector<2x128xf32> to vector<2x32xf32>
    %184 = vector.extract_strided_slice %182 {offsets = [0, 0], sizes = [2, 32], strides = [1, 1]} : vector<2x128xf32> to vector<2x32xf32>
    %185 = arith.addf %183, %184 : vector<2x32xf32>
    %186 = arith.negf %185 : vector<2x32xf32>
    %187 = math.exp %186 : vector<2x32xf32>
    %cst_94 = arith.constant 1.000000e+00 : f32
    %188 = vector.broadcast %cst_94 : f32 to vector<2x32xf32>
    %189 = arith.addf %188, %187 : vector<2x32xf32>
    %190 = arith.divf %188, %189 : vector<2x32xf32>
    %191 = vector.extract_strided_slice %179 {offsets = [0, 32], sizes = [2, 32], strides = [1, 1]} : vector<2x128xf32> to vector<2x32xf32>
    %192 = vector.extract_strided_slice %182 {offsets = [0, 32], sizes = [2, 32], strides = [1, 1]} : vector<2x128xf32> to vector<2x32xf32>
    %193 = arith.addf %191, %192 : vector<2x32xf32>
    %194 = arith.negf %193 : vector<2x32xf32>
    %195 = math.exp %194 : vector<2x32xf32>
    %cst_95 = arith.constant 1.000000e+00 : f32
    %196 = vector.broadcast %cst_95 : f32 to vector<2x32xf32>
    %197 = arith.addf %196, %195 : vector<2x32xf32>
    %198 = arith.divf %196, %197 : vector<2x32xf32>
    %199 = vector.extract_strided_slice %179 {offsets = [0, 64], sizes = [2, 32], strides = [1, 1]} : vector<2x128xf32> to vector<2x32xf32>
    %200 = vector.extract_strided_slice %182 {offsets = [0, 64], sizes = [2, 32], strides = [1, 1]} : vector<2x128xf32> to vector<2x32xf32>
    %201 = arith.mulf %190, %200 : vector<2x32xf32>
    %202 = arith.addf %199, %201 : vector<2x32xf32>
    %203 = math.tanh %202 : vector<2x32xf32>
    %cst_96 = arith.constant 1.000000e+00 : f32
    %204 = vector.broadcast %cst_96 : f32 to vector<2x32xf32>
    %205 = arith.subf %204, %198 : vector<2x32xf32>
    %206 = arith.mulf %205, %203 : vector<2x32xf32>
    %207 = arith.mulf %198, %169 : vector<2x32xf32>
    %208 = arith.addf %206, %207 : vector<2x32xf32>
    %209 = vector.extract_strided_slice %123 {offsets = [4, 0], sizes = [2, 128], strides = [1, 1]} : vector<8x128xf32> to vector<2x128xf32>
    %cst_97 = arith.constant dense<0.000000e+00> : vector<2x128xf32>
    %210 = tpu.matmul %209, %124, %cst_97 {dimension_numbers = #tpu.dot_dimension_numbers<[1], [0], [0], [1], [0, 0, 1, 1], [], []>} : vector<2x128xf32>, vector<128x128xf32>, vector<2x128xf32> -> vector<2x128xf32>
    %211 = arith.subf %209, %61 : vector<2x128xf32>
    %cst_98 = arith.constant dense<0.000000e+00> : vector<2x128xf32>
    %212 = tpu.matmul %211, %125, %cst_98 {dimension_numbers = #tpu.dot_dimension_numbers<[1], [0], [0], [1], [0, 0, 1, 1], [], []>} : vector<2x128xf32>, vector<128x128xf32>, vector<2x128xf32> -> vector<2x128xf32>
    %213 = arith.addf %210, %212 : vector<2x128xf32>
    %214 = arith.mulf %209, %61 : vector<2x128xf32>
    %cst_99 = arith.constant dense<0.000000e+00> : vector<2x128xf32>
    %215 = tpu.matmul %214, %126, %cst_99 {dimension_numbers = #tpu.dot_dimension_numbers<[1], [0], [0], [1], [0, 0, 1, 1], [], []>} : vector<2x128xf32>, vector<128x128xf32>, vector<2x128xf32> -> vector<2x128xf32>
    %216 = arith.addf %213, %215 : vector<2x128xf32>
    %217 = vector.broadcast %128 : vector<1x128xf32> to vector<2x128xf32>
    %218 = arith.addf %216, %217 : vector<2x128xf32>
    %cst_100 = arith.constant dense<0.000000e+00> : vector<2x128xf32>
    %219 = tpu.matmul %208, %127, %cst_100 {dimension_numbers = #tpu.dot_dimension_numbers<[1], [0], [0], [1], [0, 0, 1, 1], [], []>} : vector<2x32xf32>, vector<32x128xf32>, vector<2x128xf32> -> vector<2x128xf32>
    %220 = vector.broadcast %129 : vector<1x128xf32> to vector<2x128xf32>
    %221 = arith.addf %219, %220 : vector<2x128xf32>
    %222 = vector.extract_strided_slice %218 {offsets = [0, 0], sizes = [2, 32], strides = [1, 1]} : vector<2x128xf32> to vector<2x32xf32>
    %223 = vector.extract_strided_slice %221 {offsets = [0, 0], sizes = [2, 32], strides = [1, 1]} : vector<2x128xf32> to vector<2x32xf32>
    %224 = arith.addf %222, %223 : vector<2x32xf32>
    %225 = arith.negf %224 : vector<2x32xf32>
    %226 = math.exp %225 : vector<2x32xf32>
    %cst_101 = arith.constant 1.000000e+00 : f32
    %227 = vector.broadcast %cst_101 : f32 to vector<2x32xf32>
    %228 = arith.addf %227, %226 : vector<2x32xf32>
    %229 = arith.divf %227, %228 : vector<2x32xf32>
    %230 = vector.extract_strided_slice %218 {offsets = [0, 32], sizes = [2, 32], strides = [1, 1]} : vector<2x128xf32> to vector<2x32xf32>
    %231 = vector.extract_strided_slice %221 {offsets = [0, 32], sizes = [2, 32], strides = [1, 1]} : vector<2x128xf32> to vector<2x32xf32>
    %232 = arith.addf %230, %231 : vector<2x32xf32>
    %233 = arith.negf %232 : vector<2x32xf32>
    %234 = math.exp %233 : vector<2x32xf32>
    %cst_102 = arith.constant 1.000000e+00 : f32
    %235 = vector.broadcast %cst_102 : f32 to vector<2x32xf32>
    %236 = arith.addf %235, %234 : vector<2x32xf32>
    %237 = arith.divf %235, %236 : vector<2x32xf32>
    %238 = vector.extract_strided_slice %218 {offsets = [0, 64], sizes = [2, 32], strides = [1, 1]} : vector<2x128xf32> to vector<2x32xf32>
    %239 = vector.extract_strided_slice %221 {offsets = [0, 64], sizes = [2, 32], strides = [1, 1]} : vector<2x128xf32> to vector<2x32xf32>
    %240 = arith.mulf %229, %239 : vector<2x32xf32>
    %241 = arith.addf %238, %240 : vector<2x32xf32>
    %242 = math.tanh %241 : vector<2x32xf32>
    %cst_103 = arith.constant 1.000000e+00 : f32
    %243 = vector.broadcast %cst_103 : f32 to vector<2x32xf32>
    %244 = arith.subf %243, %237 : vector<2x32xf32>
    %245 = arith.mulf %244, %242 : vector<2x32xf32>
    %246 = arith.mulf %237, %208 : vector<2x32xf32>
    %247 = arith.addf %245, %246 : vector<2x32xf32>
    %248 = vector.extract_strided_slice %123 {offsets = [6, 0], sizes = [2, 128], strides = [1, 1]} : vector<8x128xf32> to vector<2x128xf32>
    %cst_104 = arith.constant dense<0.000000e+00> : vector<2x128xf32>
    %249 = tpu.matmul %248, %124, %cst_104 {dimension_numbers = #tpu.dot_dimension_numbers<[1], [0], [0], [1], [0, 0, 1, 1], [], []>} : vector<2x128xf32>, vector<128x128xf32>, vector<2x128xf32> -> vector<2x128xf32>
    %250 = arith.subf %248, %61 : vector<2x128xf32>
    %cst_105 = arith.constant dense<0.000000e+00> : vector<2x128xf32>
    %251 = tpu.matmul %250, %125, %cst_105 {dimension_numbers = #tpu.dot_dimension_numbers<[1], [0], [0], [1], [0, 0, 1, 1], [], []>} : vector<2x128xf32>, vector<128x128xf32>, vector<2x128xf32> -> vector<2x128xf32>
    %252 = arith.addf %249, %251 : vector<2x128xf32>
    %253 = arith.mulf %248, %61 : vector<2x128xf32>
    %cst_106 = arith.constant dense<0.000000e+00> : vector<2x128xf32>
    %254 = tpu.matmul %253, %126, %cst_106 {dimension_numbers = #tpu.dot_dimension_numbers<[1], [0], [0], [1], [0, 0, 1, 1], [], []>} : vector<2x128xf32>, vector<128x128xf32>, vector<2x128xf32> -> vector<2x128xf32>
    %255 = arith.addf %252, %254 : vector<2x128xf32>
    %256 = vector.broadcast %128 : vector<1x128xf32> to vector<2x128xf32>
    %257 = arith.addf %255, %256 : vector<2x128xf32>
    %cst_107 = arith.constant dense<0.000000e+00> : vector<2x128xf32>
    %258 = tpu.matmul %247, %127, %cst_107 {dimension_numbers = #tpu.dot_dimension_numbers<[1], [0], [0], [1], [0, 0, 1, 1], [], []>} : vector<2x32xf32>, vector<32x128xf32>, vector<2x128xf32> -> vector<2x128xf32>
    %259 = vector.broadcast %129 : vector<1x128xf32> to vector<2x128xf32>
    %260 = arith.addf %258, %259 : vector<2x128xf32>
    %261 = vector.extract_strided_slice %257 {offsets = [0, 0], sizes = [2, 32], strides = [1, 1]} : vector<2x128xf32> to vector<2x32xf32>
    %262 = vector.extract_strided_slice %260 {offsets = [0, 0], sizes = [2, 32], strides = [1, 1]} : vector<2x128xf32> to vector<2x32xf32>
    %263 = arith.addf %261, %262 : vector<2x32xf32>
    %264 = arith.negf %263 : vector<2x32xf32>
    %265 = math.exp %264 : vector<2x32xf32>
    %cst_108 = arith.constant 1.000000e+00 : f32
    %266 = vector.broadcast %cst_108 : f32 to vector<2x32xf32>
    %267 = arith.addf %266, %265 : vector<2x32xf32>
    %268 = arith.divf %266, %267 : vector<2x32xf32>
    %269 = vector.extract_strided_slice %257 {offsets = [0, 32], sizes = [2, 32], strides = [1, 1]} : vector<2x128xf32> to vector<2x32xf32>
    %270 = vector.extract_strided_slice %260 {offsets = [0, 32], sizes = [2, 32], strides = [1, 1]} : vector<2x128xf32> to vector<2x32xf32>
    %271 = arith.addf %269, %270 : vector<2x32xf32>
    %272 = arith.negf %271 : vector<2x32xf32>
    %273 = math.exp %272 : vector<2x32xf32>
    %cst_109 = arith.constant 1.000000e+00 : f32
    %274 = vector.broadcast %cst_109 : f32 to vector<2x32xf32>
    %275 = arith.addf %274, %273 : vector<2x32xf32>
    %276 = arith.divf %274, %275 : vector<2x32xf32>
    %277 = vector.extract_strided_slice %257 {offsets = [0, 64], sizes = [2, 32], strides = [1, 1]} : vector<2x128xf32> to vector<2x32xf32>
    %278 = vector.extract_strided_slice %260 {offsets = [0, 64], sizes = [2, 32], strides = [1, 1]} : vector<2x128xf32> to vector<2x32xf32>
    %279 = arith.mulf %268, %278 : vector<2x32xf32>
    %280 = arith.addf %277, %279 : vector<2x32xf32>
    %281 = math.tanh %280 : vector<2x32xf32>
    %cst_110 = arith.constant 1.000000e+00 : f32
    %282 = vector.broadcast %cst_110 : f32 to vector<2x32xf32>
    %283 = arith.subf %282, %276 : vector<2x32xf32>
    %284 = arith.mulf %283, %281 : vector<2x32xf32>
    %285 = arith.mulf %276, %247 : vector<2x32xf32>
    %286 = arith.addf %284, %285 : vector<2x32xf32>
    %c0_111 = arith.constant 0 : index
    %c0_112 = arith.constant 0 : index
    %287 = vector.load %arg28[%c0_111, %c0_112] : memref<32x128xf32, #tpu.memory_space<vmem>>, vector<32x128xf32>
    %cst_113 = arith.constant dense<0.000000e+00> : vector<2x128xf32>
    %288 = tpu.matmul %286, %287, %cst_113 {dimension_numbers = #tpu.dot_dimension_numbers<[1], [0], [0], [1], [0, 0, 1, 1], [], []>} : vector<2x32xf32>, vector<32x128xf32>, vector<2x128xf32> -> vector<2x128xf32>
    %c0_114 = arith.constant 0 : index
    %c0_115 = arith.constant 0 : index
    %289 = vector.load %arg29[%c0_114, %c0_115] : memref<1x128xf32, #tpu.memory_space<vmem>>, vector<1x128xf32>
    %290 = vector.broadcast %289 : vector<1x128xf32> to vector<2x128xf32>
    %291 = arith.addf %288, %290 : vector<2x128xf32>
    %cst_116 = arith.constant 0.000000e+00 : f32
    %292 = vector.broadcast %cst_116 : f32 to vector<2x128xf32>
    %293 = arith.cmpf oge, %291, %292 : vector<2x128xf32>
    %cst_117 = arith.constant 0.00999999977 : f32
    %294 = vector.broadcast %cst_117 : f32 to vector<2x128xf32>
    %295 = arith.mulf %294, %291 : vector<2x128xf32>
    %296 = arith.select %293, %291, %295 : vector<2x128xi1>, vector<2x128xf32>
    %c0_118 = arith.constant 0 : index
    %c0_119 = arith.constant 0 : index
    %297 = vector.load %arg30[%c0_118, %c0_119] : memref<128x128xf32, #tpu.memory_space<vmem>>, vector<128x128xf32>
    %cst_120 = arith.constant dense<0.000000e+00> : vector<2x128xf32>
    %298 = tpu.matmul %296, %297, %cst_120 {dimension_numbers = #tpu.dot_dimension_numbers<[1], [0], [0], [1], [0, 0, 1, 1], [], []>} : vector<2x128xf32>, vector<128x128xf32>, vector<2x128xf32> -> vector<2x128xf32>
    %c0_121 = arith.constant 0 : index
    %c0_122 = arith.constant 0 : index
    %299 = vector.load %arg31[%c0_121, %c0_122] : memref<128x128xf32, #tpu.memory_space<vmem>>, vector<128x128xf32>
    %cst_123 = arith.constant dense<0.000000e+00> : vector<2x128xf32>
    %300 = tpu.matmul %61, %299, %cst_123 {dimension_numbers = #tpu.dot_dimension_numbers<[1], [0], [0], [1], [0, 0, 1, 1], [], []>} : vector<2x128xf32>, vector<128x128xf32>, vector<2x128xf32> -> vector<2x128xf32>
    %301 = arith.addf %298, %300 : vector<2x128xf32>
    %c0_124 = arith.constant 0 : index
    %c0_125 = arith.constant 0 : index
    %302 = vector.load %arg32[%c0_124, %c0_125] : memref<1x128xf32, #tpu.memory_space<vmem>>, vector<1x128xf32>
    %303 = vector.broadcast %302 : vector<1x128xf32> to vector<2x128xf32>
    %304 = arith.addf %301, %303 : vector<2x128xf32>
    %305 = arith.negf %304 : vector<2x128xf32>
    %306 = math.exp %305 : vector<2x128xf32>
    %cst_126 = arith.constant 1.000000e+00 : f32
    %307 = vector.broadcast %cst_126 : f32 to vector<2x128xf32>
    %308 = arith.addf %307, %306 : vector<2x128xf32>
    %309 = arith.divf %307, %308 : vector<2x128xf32>
    %c0_127 = arith.constant 0 : index
    %c0_128 = arith.constant 0 : index
    %310 = vector.load %arg33[%c0_127, %c0_128] : memref<2x128xf32, #tpu.memory_space<vmem>>, vector<2x128xf32>
    tpu.vector_store %arg33[%c0_127, %c0_128], %309 {strides = array<i32>} : memref<2x128xf32, #tpu.memory_space<vmem>>, vector<2x128xf32>,
    return
  }
}

</mosaic_0001>

<llo_original>
// kernel: tpu_custom_call.1
$region0: #{tpu_custom_call.1}
  #allocation0 [shape = 'u32[]', space=smem, size = 0x4, offset = 0x4, fixed_abs, tag = 'smem constant byte address 0x4 - core index']
  #allocation1 [shape = 'u32[144,128]{1,0:T(1,128)}', space=vmem, size = 0x12000, scoped, tag = 'internal scratch']
  %s0 = inlined_call_operand.smem [shape: u32[34], index: -1, kind: input, shape index: {}]
  %s1 = sld [smem:[%s0]]
  %s2 = scalar_lea.smem %s0, 1
  %s3 = sld [smem:[%s2]]
  %s4 = scalar_lea.smem %s0, 2
  %s5 = sld [smem:[%s4]]
  %s6 = scalar_lea.smem %s0, 3
  %s7 = sld [smem:[%s6]]
  %s8 = scalar_lea.smem %s0, 4
  %s9 = sld [smem:[%s8]]
  %s10 = scalar_lea.smem %s0, 5
  %s11 = sld [smem:[%s10]]
  %s12 = scalar_lea.smem %s0, 6
  %s13 = sld [smem:[%s12]]
  %s14 = scalar_lea.smem %s0, 7
  %s15 = sld [smem:[%s14]]
  %s16 = scalar_lea.smem %s0, 8
  %s17 = sld [smem:[%s16]]
  %s18 = scalar_lea.smem %s0, 9
  %s19 = sld [smem:[%s18]]
  %s20 = scalar_lea.smem %s0, 10
  %s21 = sld [smem:[%s20]]
  %s22 = scalar_lea.smem %s0, 11
  %s23 = sld [smem:[%s22]]
  %s24 = scalar_lea.smem %s0, 12
  %s25 = sld [smem:[%s24]]
  %s26 = scalar_lea.smem %s0, 13
  %s27 = sld [smem:[%s26]]
  %s28 = scalar_lea.smem %s0, 14
  %s29 = sld [smem:[%s28]]
  %s30 = scalar_lea.smem %s0, 15
  %s31 = sld [smem:[%s30]]
  %s32 = scalar_lea.smem %s0, 16
  %s33 = sld [smem:[%s32]]
  %s34 = scalar_lea.smem %s0, 17
  %s35 = sld [smem:[%s34]]
  %s36 = scalar_lea.smem %s0, 18
  %s37 = sld [smem:[%s36]]
  %s38 = scalar_lea.smem %s0, 19
  %s39 = sld [smem:[%s38]]
  %s40 = scalar_lea.smem %s0, 20
  %s41 = sld [smem:[%s40]]
  %s42 = scalar_lea.smem %s0, 21
  %s43 = sld [smem:[%s42]]
  %s44 = scalar_lea.smem %s0, 22
  %s45 = sld [smem:[%s44]]
  %s46 = scalar_lea.smem %s0, 23
  %s47 = sld [smem:[%s46]]
  %s48 = scalar_lea.smem %s0, 24
  %s49 = sld [smem:[%s48]]
  %s50 = scalar_lea.smem %s0, 25
  %s51 = sld [smem:[%s50]]
  %s52 = scalar_lea.smem %s0, 26
  %s53 = sld [smem:[%s52]]
  %s54 = scalar_lea.smem %s0, 27
  %s55 = sld [smem:[%s54]]
  %s56 = scalar_lea.smem %s0, 28
  %s57 = sld [smem:[%s56]]
  %s58 = scalar_lea.smem %s0, 29
  %s59 = sld [smem:[%s58]]
  %s60 = scalar_lea.smem %s0, 30
  %s61 = sld [smem:[%s60]]
  %s62 = scalar_lea.smem %s0, 31
  %s63 = sld [smem:[%s62]]
  %s64 = scalar_lea.smem %s0, 32
  %s65 = sld [smem:[%s64]]
  %s66 = scalar_lea.smem %s0, 33
  %s67 = sld [smem:[%s66]]
  %s68 = sld [smem:[#allocation0]]
  $region230: #{tpu_custom_call.1} parent=0
    _
  %s70 = ssub.s32 1, %s68
  %s71 = scalar_select 0, %s70, %s68
  $region1: #{tpu_custom_call.1} parent=0
    #allocation2 [shape = 'u8[20480]{0}', space=vmem, size = 0x5000, scoped, tag = 'input window, operand 0, single buffered']
    #allocation3 [shape = 's32[1]{0}', space=sflag, size = 0x4, scoped, tag = 'scoped memory for tpu_custom_call.1']
    #allocation4 [shape = 's32[1]{0}', space=sflag, size = 0x4, scoped, tag = 'scoped memory for tpu_custom_call.1']
    #allocation5 [shape = 'u8[40960]{0}', space=vmem, size = 0xa000, scoped, tag = 'input window, operand 1, single buffered']
    #allocation6 [shape = 's32[1]{0}', space=sflag, size = 0x4, scoped, tag = 'scoped memory for tpu_custom_call.1']
    #allocation7 [shape = 'u8[10240]{0}', space=vmem, size = 0x2800, scoped, tag = 'input window, operand 3, single buffered']
    #allocation8 [shape = 'u8[2048]{0}', space=vmem, size = 0x800, scoped, tag = 'input window, operand 4, single buffered']
    #allocation9 [shape = 's32[1]{0}', space=sflag, size = 0x4, scoped, tag = 'scoped memory for tpu_custom_call.1']
    #allocation10 [shape = 'u8[8192]{0}', space=vmem, size = 0x2000, scoped, tag = 'input window, operand 5, single buffered']
    #allocation11 [shape = 'u8[12288]{0}', space=vmem, size = 0x3000, scoped, tag = 'input window, operand 6, single buffered']
    #allocation12 [shape = 's32[1]{0}', space=sflag, size = 0x4, scoped, tag = 'scoped memory for tpu_custom_call.1']
    #allocation13 [shape = 'u8[4096]{0}', space=vmem, size = 0x1000, scoped, tag = 'input window, operand 8, single buffered']
    #allocation14 [shape = 'u8[65536]{0}', space=vmem, size = 0x10000, scoped, tag = 'input window, operand 10, single buffered']
    #allocation15 [shape = 's32[1]{0}', space=sflag, size = 0x4, scoped, tag = 'scoped memory for tpu_custom_call.1']
    #allocation16 [shape = 'u8[65536]{0}', space=vmem, size = 0x10000, scoped, tag = 'input window, operand 11, single buffered']
    #allocation17 [shape = 'u8[65536]{0}', space=vmem, size = 0x10000, scoped, tag = 'input window, operand 12, single buffered']
    #allocation18 [shape = 's32[1]{0}', space=sflag, size = 0x4, scoped, tag = 'scoped memory for tpu_custom_call.1']
    #allocation19 [shape = 'u8[4096]{0}', space=vmem, size = 0x1000, scoped, tag = 'input window, operand 13, single buffered']
    #allocation20 [shape = 'u8[65536]{0}', space=vmem, size = 0x10000, scoped, tag = 'input window, operand 15, single buffered']
    #allocation21 [shape = 's32[1]{0}', space=sflag, size = 0x4, scoped, tag = 'scoped memory for tpu_custom_call.1']
    #allocation22 [shape = 'u8[65536]{0}', space=vmem, size = 0x10000, scoped, tag = 'input window, operand 16, single buffered']
    #allocation23 [shape = 'u8[4096]{0}', space=vmem, size = 0x1000, scoped, tag = 'input window, operand 17, single buffered']
    #allocation24 [shape = 's32[1]{0}', space=sflag, size = 0x4, scoped, tag = 'scoped memory for tpu_custom_call.1']
    #allocation25 [shape = 'u8[65536]{0}', space=vmem, size = 0x10000, scoped, tag = 'input window, operand 18, single buffered']
    #allocation26 [shape = 'u8[65536]{0}', space=vmem, size = 0x10000, scoped, tag = 'input window, operand 20, single buffered']
    #allocation27 [shape = 's32[1]{0}', space=sflag, size = 0x4, scoped, tag = 'scoped memory for tpu_custom_call.1']
    #allocation28 [shape = 'u8[65536]{0}', space=vmem, size = 0x10000, scoped, tag = 'input window, operand 22, single buffered']
    #allocation29 [shape = 'u8[65536]{0}', space=vmem, size = 0x10000, scoped, tag = 'input window, operand 23, single buffered']
    #allocation30 [shape = 's32[1]{0}', space=sflag, size = 0x4, scoped, tag = 'scoped memory for tpu_custom_call.1']
    #allocation31 [shape = 'u8[65536]{0}', space=vmem, size = 0x10000, scoped, tag = 'input window, operand 24, single buffered']
    #allocation32 [shape = 'u8[16384]{0}', space=vmem, size = 0x4000, scoped, tag = 'input window, operand 28, single buffered']
    #allocation33 [shape = 's32[1]{0}', space=sflag, size = 0x4, scoped, tag = 'scoped memory for tpu_custom_call.1']
    #allocation34 [shape = 'u8[65536]{0}', space=vmem, size = 0x10000, scoped, tag = 'input window, operand 30, single buffered']
    #allocation35 [shape = 'u8[65536]{0}', space=vmem, size = 0x10000, scoped, tag = 'input window, operand 31, single buffered']
    #allocation36 [shape = 's32[1]{0}', space=sflag, size = 0x4, scoped, tag = 'scoped memory for tpu_custom_call.1']
    #allocation37 [shape = 'u8[1024]{0}', space=vmem, size = 0x400, scoped, tag = 'output window, operand 0, single buffered']
    %72 = vsyncpa [#allocation3], 0
    %73 = vsyncpa [#allocation6], 0
    %74 = vsyncpa [#allocation9], 0
    %75 = vsyncpa [#allocation12], 0
    %76 = vsyncpa [#allocation15], 0
    %77 = vsyncpa [#allocation18], 0
    %78 = vsyncpa [#allocation21], 0
    %79 = vsyncpa [#allocation24], 0
    %80 = vsyncpa [#allocation27], 0
    %81 = vsyncpa [#allocation30], 0
    %82 = vsyncpa [#allocation33], 0
    %83 = vsyncpa [#allocation36], 0
    %84 = vsyncpa [#allocation4], 0
    // Predicated region
    $region2: #{tpu_custom_call.1} parent=1 // pred_check
      _
    $region3: #{tpu_custom_call.1} parent=1 // pred_check_branch
      %86 = sbr.rel (0) target = $region5
    $region4: #{tpu_custom_call.1} parent=1 // pred_region
      %s88 = ssub.s32 640, 640
      %89 = vsyncadd [#allocation3], %s88
      %s90 = sshll.u32 [#allocation2], 4
      %s91 = int_to_ptr.vmem [resolvable:$true] %s90
      %96 = dma.hbm_to_vmem [thread:$0]  %s1, 640, %s91, [#allocation3], 128, 128, 8
    $region5: #{tpu_custom_call.1} parent=1 // pred_fallthru
      _
    // Predicated region
    $region6: #{tpu_custom_call.1} parent=1 // pred_check
      _
    $region7: #{tpu_custom_call.1} parent=1 // pred_check_branch
      %98 = sbr.rel (0) target = $region9
    $region8: #{tpu_custom_call.1} parent=1 // pred_region
      %s100 = ssub.s32 1280, 1280
      %101 = vsyncadd [#allocation6], %s100
      %s102 = sshll.u32 [#allocation5], 4
      %s103 = int_to_ptr.vmem [resolvable:$true] %s102
      %108 = dma.hbm_to_vmem [thread:$0]  %s3, 1280, %s103, [#allocation6], 128, 128, 8
    $region9: #{tpu_custom_call.1} parent=1 // pred_fallthru
      _
    // Predicated region
    $region10: #{tpu_custom_call.1} parent=1 // pred_check
      _
    $region11: #{tpu_custom_call.1} parent=1 // pred_check_branch
      %110 = sbr.rel (0) target = $region13
    $region12: #{tpu_custom_call.1} parent=1 // pred_region
      _
    $region13: #{tpu_custom_call.1} parent=1 // pred_fallthru
      _
    // Predicated region
    $region14: #{tpu_custom_call.1} parent=1 // pred_check
      _
    $region15: #{tpu_custom_call.1} parent=1 // pred_check_branch
      %112 = sbr.rel (0) target = $region17
    $region16: #{tpu_custom_call.1} parent=1 // pred_region
      %s114 = ssub.s32 320, 320
      %115 = vsyncadd [#allocation6], %s114
      %s116 = sshll.u32 [#allocation7], 4
      %s117 = int_to_ptr.vmem [resolvable:$true] %s116
      %122 = dma.hbm_to_vmem [thread:$0]  %s7, 320, %s117, [#allocation6], 64, 64, 4
    $region17: #{tpu_custom_call.1} parent=1 // pred_fallthru
      _
    // Predicated region
    $region18: #{tpu_custom_call.1} parent=1 // pred_check
      _
    $region19: #{tpu_custom_call.1} parent=1 // pred_check_branch
      %124 = sbr.rel (0) target = $region21
    $region20: #{tpu_custom_call.1} parent=1 // pred_region
      %s126 = ssub.s32 64, 64
      %127 = vsyncadd [#allocation9], %s126
      %s129 = sshll.u32 [#allocation8], 4
      %s130 = int_to_ptr.vmem [resolvable:$true] %s129
      %132 = dma.hbm_to_vmem [thread:$0]  %s9, 64, %s130, [#allocation9]
    $region21: #{tpu_custom_call.1} parent=1 // pred_fallthru
      _
    // Predicated region
    $region22: #{tpu_custom_call.1} parent=1 // pred_check
      _
    $region23: #{tpu_custom_call.1} parent=1 // pred_check_branch
      %134 = sbr.rel (0) target = $region25
    $region24: #{tpu_custom_call.1} parent=1 // pred_region
      %s136 = ssub.s32 256, 256
      %137 = vsyncadd [#allocation9], %s136
      %s138 = sshll.u32 [#allocation10], 4
      %s139 = int_to_ptr.vmem [resolvable:$true] %s138
      %144 = dma.hbm_to_vmem [thread:$0]  %s11, 256, %s139, [#allocation9], 128, 128, 8
    $region25: #{tpu_custom_call.1} parent=1 // pred_fallthru
      _
    // Predicated region
    $region26: #{tpu_custom_call.1} parent=1 // pred_check
      _
    $region27: #{tpu_custom_call.1} parent=1 // pred_check_branch
      %146 = sbr.rel (0) target = $region29
    $region28: #{tpu_custom_call.1} parent=1 // pred_region
      %s148 = ssub.s32 384, 384
      %149 = vsyncadd [#allocation12], %s148
      %s150 = sshll.u32 [#allocation11], 4
      %s151 = int_to_ptr.vmem [resolvable:$true] %s150
      %156 = dma.hbm_to_vmem [thread:$0]  %s13, 384, %s151, [#allocation12], 128, 128, 8
    $region29: #{tpu_custom_call.1} parent=1 // pred_fallthru
      _
    // Predicated region
    $region30: #{tpu_custom_call.1} parent=1 // pred_check
      _
    $region31: #{tpu_custom_call.1} parent=1 // pred_check_branch
      %158 = sbr.rel (0) target = $region33
    $region32: #{tpu_custom_call.1} parent=1 // pred_region
      _
    $region33: #{tpu_custom_call.1} parent=1 // pred_fallthru
      _
    // Predicated region
    $region34: #{tpu_custom_call.1} parent=1 // pred_check
      _
    $region35: #{tpu_custom_call.1} parent=1 // pred_check_branch
      %160 = sbr.rel (0) target = $region37
    $region36: #{tpu_custom_call.1} parent=1 // pred_region
      %s162 = ssub.s32 128, 128
      %163 = vsyncadd [#allocation12], %s162
      %s164 = sshll.u32 [#allocation13], 4
      %s165 = int_to_ptr.vmem [resolvable:$true] %s164
      %170 = dma.hbm_to_vmem [thread:$0]  %s17, 128, %s165, [#allocation12], 64, 64, 4
    $region37: #{tpu_custom_call.1} parent=1 // pred_fallthru
      _
    // Predicated region
    $region38: #{tpu_custom_call.1} parent=1 // pred_check
      _
    $region39: #{tpu_custom_call.1} parent=1 // pred_check_branch
      %172 = sbr.rel (0) target = $region41
    $region40: #{tpu_custom_call.1} parent=1 // pred_region
      _
    $region41: #{tpu_custom_call.1} parent=1 // pred_fallthru
      _
    // Predicated region
    $region42: #{tpu_custom_call.1} parent=1 // pred_check
      _
    $region43: #{tpu_custom_call.1} parent=1 // pred_check_branch
      %174 = sbr.rel (0) target = $region45
    $region44: #{tpu_custom_call.1} parent=1 // pred_region
      %s176 = ssub.s32 2048, 2048
      %177 = vsyncadd [#allocation15], %s176
      %s178 = sshll.u32 [#allocation14], 4
      %s179 = int_to_ptr.vmem [resolvable:$true] %s178
      %184 = dma.hbm_to_vmem [thread:$0]  %s21, 2048, %s179, [#allocation15], 128, 128, 8
    $region45: #{tpu_custom_call.1} parent=1 // pred_fallthru
      _
    // Predicated region
    $region46: #{tpu_custom_call.1} parent=1 // pred_check
      _
    $region47: #{tpu_custom_call.1} parent=1 // pred_check_branch
      %186 = sbr.rel (0) target = $region49
    $region48: #{tpu_custom_call.1} parent=1 // pred_region
      %s188 = ssub.s32 2048, 2048
      %189 = vsyncadd [#allocation15], %s188
      %s190 = sshll.u32 [#allocation16], 4
      %s191 = int_to_ptr.vmem [resolvable:$true] %s190
      %196 = dma.hbm_to_vmem [thread:$0]  %s23, 2048, %s191, [#allocation15], 128, 128, 8
    $region49: #{tpu_custom_call.1} parent=1 // pred_fallthru
      _
    // Predicated region
    $region50: #{tpu_custom_call.1} parent=1 // pred_check
      _
    $region51: #{tpu_custom_call.1} parent=1 // pred_check_branch
      %198 = sbr.rel (0) target = $region53
    $region52: #{tpu_custom_call.1} parent=1 // pred_region
      %s200 = ssub.s32 2048, 2048
      %201 = vsyncadd [#allocation18], %s200
      %s202 = sshll.u32 [#allocation17], 4
      %s203 = int_to_ptr.vmem [resolvable:$true] %s202
      %208 = dma.hbm_to_vmem [thread:$0]  %s25, 2048, %s203, [#allocation18], 128, 128, 8
    $region53: #{tpu_custom_call.1} parent=1 // pred_fallthru
      _
    // Predicated region
    $region54: #{tpu_custom_call.1} parent=1 // pred_check
      _
    $region55: #{tpu_custom_call.1} parent=1 // pred_check_branch
      %210 = sbr.rel (0) target = $region57
    $region56: #{tpu_custom_call.1} parent=1 // pred_region
      %s212 = ssub.s32 128, 128
      %213 = vsyncadd [#allocation18], %s212
      %s215 = sshll.u32 [#allocation19], 4
      %s216 = int_to_ptr.vmem [resolvable:$true] %s215
      %218 = dma.hbm_to_vmem [thread:$0]  %s27, 128, %s216, [#allocation18]
    $region57: #{tpu_custom_call.1} parent=1 // pred_fallthru
      _
    // Predicated region
    $region58: #{tpu_custom_call.1} parent=1 // pred_check
      _
    $region59: #{tpu_custom_call.1} parent=1 // pred_check_branch
      %220 = sbr.rel (0) target = $region61
    $region60: #{tpu_custom_call.1} parent=1 // pred_region
      _
    $region61: #{tpu_custom_call.1} parent=1 // pred_fallthru
      _
    // Predicated region
    $region62: #{tpu_custom_call.1} parent=1 // pred_check
      _
    $region63: #{tpu_custom_call.1} parent=1 // pred_check_branch
      %222 = sbr.rel (0) target = $region65
    $region64: #{tpu_custom_call.1} parent=1 // pred_region
      %s224 = ssub.s32 2048, 2048
      %225 = vsyncadd [#allocation21], %s224
      %s226 = sshll.u32 [#allocation20], 4
      %s227 = int_to_ptr.vmem [resolvable:$true] %s226
      %232 = dma.hbm_to_vmem [thread:$0]  %s31, 2048, %s227, [#allocation21], 128, 128, 8
    $region65: #{tpu_custom_call.1} parent=1 // pred_fallthru
      _
    // Predicated region
    $region66: #{tpu_custom_call.1} parent=1 // pred_check
      _
    $region67: #{tpu_custom_call.1} parent=1 // pred_check_branch
      %234 = sbr.rel (0) target = $region69
    $region68: #{tpu_custom_call.1} parent=1 // pred_region
      %s236 = ssub.s32 2048, 2048
      %237 = vsyncadd [#allocation21], %s236
      %s238 = sshll.u32 [#allocation22], 4
      %s239 = int_to_ptr.vmem [resolvable:$true] %s238
      %244 = dma.hbm_to_vmem [thread:$0]  %s33, 2048, %s239, [#allocation21], 128, 128, 8
    $region69: #{tpu_custom_call.1} parent=1 // pred_fallthru
      _
    // Predicated region
    $region70: #{tpu_custom_call.1} parent=1 // pred_check
      _
    $region71: #{tpu_custom_call.1} parent=1 // pred_check_branch
      %246 = sbr.rel (0) target = $region73
    $region72: #{tpu_custom_call.1} parent=1 // pred_region
      %s248 = ssub.s32 128, 128
      %249 = vsyncadd [#allocation24], %s248
      %s251 = sshll.u32 [#allocation23], 4
      %s252 = int_to_ptr.vmem [resolvable:$true] %s251
      %254 = dma.hbm_to_vmem [thread:$0]  %s35, 128, %s252, [#allocation24]
    $region73: #{tpu_custom_call.1} parent=1 // pred_fallthru
      _
    // Predicated region
    $region74: #{tpu_custom_call.1} parent=1 // pred_check
      _
    $region75: #{tpu_custom_call.1} parent=1 // pred_check_branch
      %256 = sbr.rel (0) target = $region77
    $region76: #{tpu_custom_call.1} parent=1 // pred_region
      %s258 = ssub.s32 2048, 2048
      %259 = vsyncadd [#allocation24], %s258
      %s260 = sshll.u32 [#allocation25], 4
      %s261 = int_to_ptr.vmem [resolvable:$true] %s260
      %266 = dma.hbm_to_vmem [thread:$0]  %s37, 2048, %s261, [#allocation24], 128, 128, 8
    $region77: #{tpu_custom_call.1} parent=1 // pred_fallthru
      _
    // Predicated region
    $region78: #{tpu_custom_call.1} parent=1 // pred_check
      _
    $region79: #{tpu_custom_call.1} parent=1 // pred_check_branch
      %268 = sbr.rel (0) target = $region81
    $region80: #{tpu_custom_call.1} parent=1 // pred_region
      _
    $region81: #{tpu_custom_call.1} parent=1 // pred_fallthru
      _
    // Predicated region
    $region82: #{tpu_custom_call.1} parent=1 // pred_check
      _
    $region83: #{tpu_custom_call.1} parent=1 // pred_check_branch
      %270 = sbr.rel (0) target = $region85
    $region84: #{tpu_custom_call.1} parent=1 // pred_region
      %s272 = ssub.s32 2048, 2048
      %273 = vsyncadd [#allocation27], %s272
      %s274 = sshll.u32 [#allocation26], 4
      %s275 = int_to_ptr.vmem [resolvable:$true] %s274
      %280 = dma.hbm_to_vmem [thread:$0]  %s41, 2048, %s275, [#allocation27], 128, 128, 8
    $region85: #{tpu_custom_call.1} parent=1 // pred_fallthru
      _
    // Predicated region
    $region86: #{tpu_custom_call.1} parent=1 // pred_check
      _
    $region87: #{tpu_custom_call.1} parent=1 // pred_check_branch
      %282 = sbr.rel (0) target = $region89
    $region88: #{tpu_custom_call.1} parent=1 // pred_region
      _
    $region89: #{tpu_custom_call.1} parent=1 // pred_fallthru
      _
    // Predicated region
    $region90: #{tpu_custom_call.1} parent=1 // pred_check
      _
    $region91: #{tpu_custom_call.1} parent=1 // pred_check_branch
      %284 = sbr.rel (0) target = $region93
    $region92: #{tpu_custom_call.1} parent=1 // pred_region
      %s286 = ssub.s32 2048, 2048
      %287 = vsyncadd [#allocation27], %s286
      %s288 = sshll.u32 [#allocation28], 4
      %s289 = int_to_ptr.vmem [resolvable:$true] %s288
      %294 = dma.hbm_to_vmem [thread:$0]  %s45, 2048, %s289, [#allocation27], 128, 128, 8
    $region93: #{tpu_custom_call.1} parent=1 // pred_fallthru
      _
    // Predicated region
    $region94: #{tpu_custom_call.1} parent=1 // pred_check
      _
    $region95: #{tpu_custom_call.1} parent=1 // pred_check_branch
      %296 = sbr.rel (0) target = $region97
    $region96: #{tpu_custom_call.1} parent=1 // pred_region
      %s298 = ssub.s32 2048, 2048
      %299 = vsyncadd [#allocation30], %s298
      %s300 = sshll.u32 [#allocation29], 4
      %s301 = int_to_ptr.vmem [resolvable:$true] %s300
      %306 = dma.hbm_to_vmem [thread:$0]  %s47, 2048, %s301, [#allocation30], 128, 128, 8
    $region97: #{tpu_custom_call.1} parent=1 // pred_fallthru
      _
    // Predicated region
    $region98: #{tpu_custom_call.1} parent=1 // pred_check
      _
    $region99: #{tpu_custom_call.1} parent=1 // pred_check_branch
      %308 = sbr.rel (0) target = $region101
    $region100: #{tpu_custom_call.1} parent=1 // pred_region
      %s310 = ssub.s32 2048, 2048
      %311 = vsyncadd [#allocation30], %s310
      %s312 = sshll.u32 [#allocation31], 4
      %s313 = int_to_ptr.vmem [resolvable:$true] %s312
      %318 = dma.hbm_to_vmem [thread:$0]  %s49, 2048, %s313, [#allocation30], 128, 128, 8
    $region101: #{tpu_custom_call.1} parent=1 // pred_fallthru
      _
    // Predicated region
    $region102: #{tpu_custom_call.1} parent=1 // pred_check
      _
    $region103: #{tpu_custom_call.1} parent=1 // pred_check_branch
      %320 = sbr.rel (0) target = $region105
    $region104: #{tpu_custom_call.1} parent=1 // pred_region
      _
    $region105: #{tpu_custom_call.1} parent=1 // pred_fallthru
      _
    // Predicated region
    $region106: #{tpu_custom_call.1} parent=1 // pred_check
      _
    $region107: #{tpu_custom_call.1} parent=1 // pred_check_branch
      %322 = sbr.rel (0) target = $region109
    $region108: #{tpu_custom_call.1} parent=1 // pred_region
      _
    $region109: #{tpu_custom_call.1} parent=1 // pred_fallthru
      _
    // Predicated region
    $region110: #{tpu_custom_call.1} parent=1 // pred_check
      _
    $region111: #{tpu_custom_call.1} parent=1 // pred_check_branch
      %324 = sbr.rel (0) target = $region113
    $region112: #{tpu_custom_call.1} parent=1 // pred_region
      _
    $region113: #{tpu_custom_call.1} parent=1 // pred_fallthru
      _
    // Predicated region
    $region114: #{tpu_custom_call.1} parent=1 // pred_check
      _
    $region115: #{tpu_custom_call.1} parent=1 // pred_check_branch
      %326 = sbr.rel (0) target = $region117
    $region116: #{tpu_custom_call.1} parent=1 // pred_region
      %s328 = ssub.s32 512, 512
      %329 = vsyncadd [#allocation33], %s328
      %s330 = sshll.u32 [#allocation32], 4
      %s331 = int_to_ptr.vmem [resolvable:$true] %s330
      %336 = dma.hbm_to_vmem [thread:$0]  %s57, 512, %s331, [#allocation33], 128, 128, 8
    $region117: #{tpu_custom_call.1} parent=1 // pred_fallthru
      _
    // Predicated region
    $region118: #{tpu_custom_call.1} parent=1 // pred_check
      _
    $region119: #{tpu_custom_call.1} parent=1 // pred_check_branch
      %338 = sbr.rel (0) target = $region121
    $region120: #{tpu_custom_call.1} parent=1 // pred_region
      _
    $region121: #{tpu_custom_call.1} parent=1 // pred_fallthru
      _
    // Predicated region
    $region122: #{tpu_custom_call.1} parent=1 // pred_check
      _
    $region123: #{tpu_custom_call.1} parent=1 // pred_check_branch
      %340 = sbr.rel (0) target = $region125
    $region124: #{tpu_custom_call.1} parent=1 // pred_region
      %s342 = ssub.s32 2048, 2048
      %343 = vsyncadd [#allocation33], %s342
      %s344 = sshll.u32 [#allocation34], 4
      %s345 = int_to_ptr.vmem [resolvable:$true] %s344
      %350 = dma.hbm_to_vmem [thread:$0]  %s61, 2048, %s345, [#allocation33], 128, 128, 8
    $region125: #{tpu_custom_call.1} parent=1 // pred_fallthru
      _
    // Predicated region
    $region126: #{tpu_custom_call.1} parent=1 // pred_check
      _
    $region127: #{tpu_custom_call.1} parent=1 // pred_check_branch
      %352 = sbr.rel (0) target = $region129
    $region128: #{tpu_custom_call.1} parent=1 // pred_region
      %s354 = ssub.s32 2048, 2048
      %355 = vsyncadd [#allocation36], %s354
      %s356 = sshll.u32 [#allocation35], 4
      %s357 = int_to_ptr.vmem [resolvable:$true] %s356
      %362 = dma.hbm_to_vmem [thread:$0]  %s63, 2048, %s357, [#allocation36], 128, 128, 8
    $region129: #{tpu_custom_call.1} parent=1 // pred_fallthru
      _
    // Predicated region
    $region130: #{tpu_custom_call.1} parent=1 // pred_check
      _
    $region131: #{tpu_custom_call.1} parent=1 // pred_check_branch
      %364 = sbr.rel (0) target = $region133
    $region132: #{tpu_custom_call.1} parent=1 // pred_region
      _
    $region133: #{tpu_custom_call.1} parent=1 // pred_fallthru
      _
    // Predicated region
    $region134: #{tpu_custom_call.1} parent=1 // pred_check
      _
    $region135: #{tpu_custom_call.1} parent=1 // pred_check_branch
      %366 = sbr.rel (0) target = $region137
    $region136: #{tpu_custom_call.1} parent=1 // pred_region
      %367 = dma.done [#allocation3], 640
    $region137: #{tpu_custom_call.1} parent=1 // pred_fallthru
      _
    // Predicated region
    $region138: #{tpu_custom_call.1} parent=1 // pred_check
      _
    $region139: #{tpu_custom_call.1} parent=1 // pred_check_branch
      %369 = sbr.rel (0) target = $region141
    $region140: #{tpu_custom_call.1} parent=1 // pred_region
      %370 = dma.done [#allocation6], 1280
    $region141: #{tpu_custom_call.1} parent=1 // pred_fallthru
      _
    // Predicated region
    $region142: #{tpu_custom_call.1} parent=1 // pred_check
      _
    $region143: #{tpu_custom_call.1} parent=1 // pred_check_branch
      %372 = sbr.rel (0) target = $region145
    $region144: #{tpu_custom_call.1} parent=1 // pred_region
      %373 = dma.done [#allocation6], 320
    $region145: #{tpu_custom_call.1} parent=1 // pred_fallthru
      _
    // Predicated region
    $region146: #{tpu_custom_call.1} parent=1 // pred_check
      _
    $region147: #{tpu_custom_call.1} parent=1 // pred_check_branch
      %375 = sbr.rel (0) target = $region149
    $region148: #{tpu_custom_call.1} parent=1 // pred_region
      %376 = dma.done [#allocation9], 64
    $region149: #{tpu_custom_call.1} parent=1 // pred_fallthru
      _
    // Predicated region
    $region150: #{tpu_custom_call.1} parent=1 // pred_check
      _
    $region151: #{tpu_custom_call.1} parent=1 // pred_check_branch
      %378 = sbr.rel (0) target = $region153
    $region152: #{tpu_custom_call.1} parent=1 // pred_region
      %379 = dma.done [#allocation9], 256
    $region153: #{tpu_custom_call.1} parent=1 // pred_fallthru
      _
    // Predicated region
    $region154: #{tpu_custom_call.1} parent=1 // pred_check
      _
    $region155: #{tpu_custom_call.1} parent=1 // pred_check_branch
      %381 = sbr.rel (0) target = $region157
    $region156: #{tpu_custom_call.1} parent=1 // pred_region
      %382 = dma.done [#allocation12], 384
    $region157: #{tpu_custom_call.1} parent=1 // pred_fallthru
      _
    // Predicated region
    $region158: #{tpu_custom_call.1} parent=1 // pred_check
      _
    $region159: #{tpu_custom_call.1} parent=1 // pred_check_branch
      %384 = sbr.rel (0) target = $region161
    $region160: #{tpu_custom_call.1} parent=1 // pred_region
      %385 = dma.done [#allocation12], 128
    $region161: #{tpu_custom_call.1} parent=1 // pred_fallthru
      _
    // Predicated region
    $region162: #{tpu_custom_call.1} parent=1 // pred_check
      _
    $region163: #{tpu_custom_call.1} parent=1 // pred_check_branch
      %387 = sbr.rel (0) target = $region165
    $region164: #{tpu_custom_call.1} parent=1 // pred_region
      %388 = dma.done [#allocation15], 2048
    $region165: #{tpu_custom_call.1} parent=1 // pred_fallthru
      _
    // Predicated region
    $region166: #{tpu_custom_call.1} parent=1 // pred_check
      _
    $region167: #{tpu_custom_call.1} parent=1 // pred_check_branch
      %390 = sbr.rel (0) target = $region169
    $region168: #{tpu_custom_call.1} parent=1 // pred_region
      %391 = dma.done [#allocation15], 2048
    $region169: #{tpu_custom_call.1} parent=1 // pred_fallthru
      _
    // Predicated region
    $region170: #{tpu_custom_call.1} parent=1 // pred_check
      _
    $region171: #{tpu_custom_call.1} parent=1 // pred_check_branch
      %393 = sbr.rel (0) target = $region173
    $region172: #{tpu_custom_call.1} parent=1 // pred_region
      %394 = dma.done [#allocation18], 2048
    $region173: #{tpu_custom_call.1} parent=1 // pred_fallthru
      _
    // Predicated region
    $region174: #{tpu_custom_call.1} parent=1 // pred_check
      _
    $region175: #{tpu_custom_call.1} parent=1 // pred_check_branch
      %396 = sbr.rel (0) target = $region177
    $region176: #{tpu_custom_call.1} parent=1 // pred_region
      %397 = dma.done [#allocation18], 128
    $region177: #{tpu_custom_call.1} parent=1 // pred_fallthru
      _
    // Predicated region
    $region178: #{tpu_custom_call.1} parent=1 // pred_check
      _
    $region179: #{tpu_custom_call.1} parent=1 // pred_check_branch
      %399 = sbr.rel (0) target = $region181
    $region180: #{tpu_custom_call.1} parent=1 // pred_region
      %400 = dma.done [#allocation21], 2048
    $region181: #{tpu_custom_call.1} parent=1 // pred_fallthru
      _
    // Predicated region
    $region182: #{tpu_custom_call.1} parent=1 // pred_check
      _
    $region183: #{tpu_custom_call.1} parent=1 // pred_check_branch
      %402 = sbr.rel (0) target = $region185
    $region184: #{tpu_custom_call.1} parent=1 // pred_region
      %403 = dma.done [#allocation21], 2048
    $region185: #{tpu_custom_call.1} parent=1 // pred_fallthru
      _
    // Predicated region
    $region186: #{tpu_custom_call.1} parent=1 // pred_check
      _
    $region187: #{tpu_custom_call.1} parent=1 // pred_check_branch
      %405 = sbr.rel (0) target = $region189
    $region188: #{tpu_custom_call.1} parent=1 // pred_region
      %406 = dma.done [#allocation24], 128
    $region189: #{tpu_custom_call.1} parent=1 // pred_fallthru
      _
    // Predicated region
    $region190: #{tpu_custom_call.1} parent=1 // pred_check
      _
    $region191: #{tpu_custom_call.1} parent=1 // pred_check_branch
      %408 = sbr.rel (0) target = $region193
    $region192: #{tpu_custom_call.1} parent=1 // pred_region
      %409 = dma.done [#allocation24], 2048
    $region193: #{tpu_custom_call.1} parent=1 // pred_fallthru
      _
    // Predicated region
    $region194: #{tpu_custom_call.1} parent=1 // pred_check
      _
    $region195: #{tpu_custom_call.1} parent=1 // pred_check_branch
      %411 = sbr.rel (0) target = $region197
    $region196: #{tpu_custom_call.1} parent=1 // pred_region
      %412 = dma.done [#allocation27], 2048
    $region197: #{tpu_custom_call.1} parent=1 // pred_fallthru
      _
    // Predicated region
    $region198: #{tpu_custom_call.1} parent=1 // pred_check
      _
    $region199: #{tpu_custom_call.1} parent=1 // pred_check_branch
      %414 = sbr.rel (0) target = $region201
    $region200: #{tpu_custom_call.1} parent=1 // pred_region
      %415 = dma.done [#allocation27], 2048
    $region201: #{tpu_custom_call.1} parent=1 // pred_fallthru
      _
    // Predicated region
    $region202: #{tpu_custom_call.1} parent=1 // pred_check
      _
    $region203: #{tpu_custom_call.1} parent=1 // pred_check_branch
      %417 = sbr.rel (0) target = $region205
    $region204: #{tpu_custom_call.1} parent=1 // pred_region
      %418 = dma.done [#allocation30], 2048
    $region205: #{tpu_custom_call.1} parent=1 // pred_fallthru
      _
    // Predicated region
    $region206: #{tpu_custom_call.1} parent=1 // pred_check
      _
    $region207: #{tpu_custom_call.1} parent=1 // pred_check_branch
      %420 = sbr.rel (0) target = $region209
    $region208: #{tpu_custom_call.1} parent=1 // pred_region
      %421 = dma.done [#allocation30], 2048
    $region209: #{tpu_custom_call.1} parent=1 // pred_fallthru
      _
    // Predicated region
    $region210: #{tpu_custom_call.1} parent=1 // pred_check
      _
    $region211: #{tpu_custom_call.1} parent=1 // pred_check_branch
      %423 = sbr.rel (0) target = $region213
    $region212: #{tpu_custom_call.1} parent=1 // pred_region
      %424 = dma.done [#allocation33], 512
    $region213: #{tpu_custom_call.1} parent=1 // pred_fallthru
      _
    // Predicated region
    $region214: #{tpu_custom_call.1} parent=1 // pred_check
      _
    $region215: #{tpu_custom_call.1} parent=1 // pred_check_branch
      %426 = sbr.rel (0) target = $region217
    $region216: #{tpu_custom_call.1} parent=1 // pred_region
      %427 = dma.done [#allocation33], 2048
    $region217: #{tpu_custom_call.1} parent=1 // pred_fallthru
      _
    // Predicated region
    $region218: #{tpu_custom_call.1} parent=1 // pred_check
      _
    $region219: #{tpu_custom_call.1} parent=1 // pred_check_branch
      %429 = sbr.rel (0) target = $region221
    $region220: #{tpu_custom_call.1} parent=1 // pred_region
      %430 = dma.done [#allocation36], 2048
    $region221: #{tpu_custom_call.1} parent=1 // pred_fallthru
      _
    %v432 = vld [vmem:[#allocation10] sm:$0xff]
    %v433 = vld [vmem:[#allocation10 + $0x8] sm:$0xf]
    %v434 = vld [vmem:[#allocation11] sm:$0xff]
    %v435 = vld [vmem:[#allocation11 + $0x8] sm:$0xff]
    %v436 = vld [vmem:[#allocation11 + $0x10] sm:$0xff]
    %v437 = vld [vmem:[%s15] sm:$0xf]
    %v438 = vld [vmem:[%s15 + $0x4] sm:$0xf]
    %v439 = vld [vmem:[%s15 + $0x8] sm:$0xf]
    %v440 = vld [vmem:[#allocation13] sm:$0xf]
    %v441 = vld [vmem:[#allocation13 + $0x4] sm:$0x3]
    %v442 = vld [vmem:[%s19] sm:$0x1]
    %v443 = vld [vmem:[#allocation14] sm:$0xff]
    %v444 = vld [vmem:[#allocation14 + $0x8] sm:$0xff]
    %v445 = vld [vmem:[#allocation14 + $0x10] sm:$0xff]
    %v446 = vld [vmem:[#allocation14 + $0x18] sm:$0xff]
    %v447 = vld [vmem:[#allocation14 + $0x20] sm:$0xff]
    %v448 = vld [vmem:[#allocation14 + $0x28] sm:$0xff]
    %v449 = vld [vmem:[#allocation14 + $0x30] sm:$0xff]
    %v450 = vld [vmem:[#allocation14 + $0x38] sm:$0xff]
    %v451 = vld [vmem:[#allocation14 + $0x40] sm:$0xff]
    %v452 = vld [vmem:[#allocation14 + $0x48] sm:$0xff]
    %v453 = vld [vmem:[#allocation14 + $0x50] sm:$0xff]
    %v454 = vld [vmem:[#allocation14 + $0x58] sm:$0xff]
    %v455 = vld [vmem:[#allocation14 + $0x60] sm:$0xff]
    %v456 = vld [vmem:[#allocation14 + $0x68] sm:$0xff]
    %v457 = vld [vmem:[#allocation14 + $0x70] sm:$0xff]
    %v458 = vld [vmem:[#allocation14 + $0x78] sm:$0xff]
    %v459 = vld [vmem:[#allocation16] sm:$0xff]
    %v460 = vld [vmem:[#allocation16 + $0x8] sm:$0xff]
    %v461 = vld [vmem:[#allocation16 + $0x10] sm:$0xff]
    %v462 = vld [vmem:[#allocation16 + $0x18] sm:$0xff]
    %v463 = vld [vmem:[#allocation16 + $0x20] sm:$0xff]
    %v464 = vld [vmem:[#allocation16 + $0x28] sm:$0xff]
    %v465 = vld [vmem:[#allocation16 + $0x30] sm:$0xff]
    %v466 = vld [vmem:[#allocation16 + $0x38] sm:$0xff]
    %v467 = vld [vmem:[#allocation16 + $0x40] sm:$0xff]
    %v468 = vld [vmem:[#allocation16 + $0x48] sm:$0xff]
    %v469 = vld [vmem:[#allocation16 + $0x50] sm:$0xff]
    %v470 = vld [vmem:[#allocation16 + $0x58] sm:$0xff]
    %v471 = vld [vmem:[#allocation16 + $0x60] sm:$0xff]
    %v472 = vld [vmem:[#allocation16 + $0x68] sm:$0xff]
    %v473 = vld [vmem:[#allocation16 + $0x70] sm:$0xff]
    %v474 = vld [vmem:[#allocation16 + $0x78] sm:$0xff]
    %v475 = vld [vmem:[#allocation17] sm:$0xff]
    %v476 = vld [vmem:[#allocation17 + $0x8] sm:$0xff]
    %v477 = vld [vmem:[#allocation17 + $0x10] sm:$0xff]
    %v478 = vld [vmem:[#allocation17 + $0x18] sm:$0xff]
    %v479 = vld [vmem:[#allocation17 + $0x20] sm:$0xff]
    %v480 = vld [vmem:[#allocation17 + $0x28] sm:$0xff]
    %v481 = vld [vmem:[#allocation17 + $0x30] sm:$0xff]
    %v482 = vld [vmem:[#allocation17 + $0x38] sm:$0xff]
    %v483 = vld [vmem:[#allocation17 + $0x40] sm:$0xff]
    %v484 = vld [vmem:[#allocation17 + $0x48] sm:$0xff]
    %v485 = vld [vmem:[#allocation17 + $0x50] sm:$0xff]
    %v486 = vld [vmem:[#allocation17 + $0x58] sm:$0xff]
    %v487 = vld [vmem:[#allocation17 + $0x60] sm:$0xff]
    %v488 = vld [vmem:[#allocation17 + $0x68] sm:$0xff]
    %v489 = vld [vmem:[#allocation17 + $0x70] sm:$0xff]
    %v490 = vld [vmem:[#allocation17 + $0x78] sm:$0xff]
    %v491 = vld [vmem:[#allocation19] sm:$0xff]
    %v492 = vld [vmem:[#allocation25] sm:$0xff]
    %v493 = vld [vmem:[#allocation25 + $0x8] sm:$0xff]
    %v494 = vld [vmem:[#allocation25 + $0x10] sm:$0xff]
    %v495 = vld [vmem:[#allocation25 + $0x18] sm:$0xff]
    %v496 = vld [vmem:[#allocation25 + $0x20] sm:$0xff]
    %v497 = vld [vmem:[#allocation25 + $0x28] sm:$0xff]
    %v498 = vld [vmem:[#allocation25 + $0x30] sm:$0xff]
    %v499 = vld [vmem:[#allocation25 + $0x38] sm:$0xff]
    %v500 = vld [vmem:[#allocation25 + $0x40] sm:$0xff]
    %v501 = vld [vmem:[#allocation25 + $0x48] sm:$0xff]
    %v502 = vld [vmem:[#allocation25 + $0x50] sm:$0xff]
    %v503 = vld [vmem:[#allocation25 + $0x58] sm:$0xff]
    %v504 = vld [vmem:[#allocation25 + $0x60] sm:$0xff]
    %v505 = vld [vmem:[#allocation25 + $0x68] sm:$0xff]
    %v506 = vld [vmem:[#allocation25 + $0x70] sm:$0xff]
    %v507 = vld [vmem:[#allocation25 + $0x78] sm:$0xff]
    %v508 = vld [vmem:[%s39] sm:$0x1]
    %v509 = vlaneseq
    %v510 = vshrl.u32 %v509, 7
    %v511 = vsub.s32 0, %v510
    %v512 = vrot.slane %v491, %v511
    %513 = vmatprep.subr.mxu0 0.0
    %514 = vmatpush1.msra.mxu0 %v443
    %515 = vmatprep.subr.mxu0 0.0
    %516 = vmatpush1.msra.mxu0 %v444
    %517 = vmatprep.subr.mxu0 0.0
    %518 = vmatpush1.msra.mxu0 %v445
    %519 = vmatprep.subr.mxu0 0.0
    %520 = vmatpush1.msra.mxu0 %v446
    %521 = vmatprep.subr.mxu0 0.0
    %522 = vmatpush1.msra.mxu0 %v447
    %523 = vmatprep.subr.mxu0 0.0
    %524 = vmatpush1.msra.mxu0 %v448
    %525 = vmatprep.subr.mxu0 0.0
    %526 = vmatpush1.msra.mxu0 %v449
    %527 = vmatprep.subr.mxu0 0.0
    %528 = vmatpush1.msra.mxu0 %v450
    %529 = vmatprep.subr.mxu0 0.0
    %530 = vmatpush1.msra.mxu0 %v451
    %531 = vmatprep.subr.mxu0 0.0
    %532 = vmatpush1.msra.mxu0 %v452
    %533 = vmatprep.subr.mxu0 0.0
    %534 = vmatpush1.msra.mxu0 %v453
    %535 = vmatprep.subr.mxu0 0.0
    %536 = vmatpush1.msra.mxu0 %v454
    %537 = vmatprep.subr.mxu0 0.0
    %538 = vmatpush1.msra.mxu0 %v455
    %539 = vmatprep.subr.mxu0 0.0
    %540 = vmatpush1.msra.mxu0 %v456
    %541 = vmatprep.subr.mxu0 0.0
    %542 = vmatpush1.msra.mxu0 %v457
    %543 = vmatprep.subr.mxu0 0.0
    %544 = vmatpush1.msra.mxu0 %v458
    %545 = vmatprep.subr.mxu0 0.0
    %546 = vmatpush1.msra.mxu0 0.0
    %547 = vmatprep.subr.mxu0 0.0
    %548 = vmatpush1.msra.mxu0 0.0
    %549 = vmatprep.subr.mxu0 0.0
    %550 = vmatpush1.msra.mxu0 0.0
    %551 = vmatprep.subr.mxu0 0.0
    %552 = vmatpush1.msra.mxu0 0.0
    %553 = vmatprep.subr.mxu0 0.0
    %554 = vmatpush1.msra.mxu0 0.0
    %555 = vmatprep.subr.mxu0 0.0
    %556 = vmatpush1.msra.mxu0 0.0
    %557 = vmatprep.subr.mxu0 0.0
    %558 = vmatpush1.msra.mxu0 0.0
    %559 = vmatprep.subr.mxu0 0.0
    %560 = vmatpush1.msra.mxu0 0.0
    %561 = vmatprep.subr.mxu0 0.0
    %562 = vmatpush1.msra.mxu0 0.0
    %563 = vmatprep.subr.mxu0 0.0
    %564 = vmatpush1.msra.mxu0 0.0
    %565 = vmatprep.subr.mxu0 0.0
    %566 = vmatpush1.msra.mxu0 0.0
    %567 = vmatprep.subr.mxu0 0.0
    %568 = vmatpush1.msra.mxu0 0.0
    %569 = vmatprep.subr.mxu0 0.0
    %570 = vmatpush1.msra.mxu0 0.0
    %571 = vmatprep.subr.mxu0 0.0
    %572 = vmatpush1.msra.mxu0 0.0
    %573 = vmatprep.subr.mxu0 0.0
    %574 = vmatpush1.msra.mxu0 0.0
    %575 = vmatprep.subr.mxu0 0.0
    %576 = vmatpush1.msra.mxu0 0.0
    %577 = vmatprep.mubr.f32.mxu0 0.0
    %578 = vmatmul.mubr.f32.gmra.mrb[0].mxu0 %v434
    %v579 = vpop.f32.mrb[0].mxu0
    %v580 = vadd.f32 %v512, %v579
    %v581 = vpop.f32.mrb[0].mxu0
    %582 = vmatprep.mubr.f32.mxu0 0.0
    %583 = vmatmul.mubr.f32.gmra.mrb[0].mxu0 %v435
    %v584 = vpop.f32.mrb[0].mxu0
    %v585 = vadd.f32 %v512, %v584
    %v586 = vpop.f32.mrb[0].mxu0
    %587 = vmatprep.mubr.f32.mxu0 0.0
    %588 = vmatmul.mubr.f32.gmra.mrb[0].mxu0 %v436
    %v589 = vpop.f32.mrb[0].mxu0
    %v590 = vadd.f32 %v512, %v589
    %v591 = vpop.f32.mrb[0].mxu0
    %592 = vdwg.mxu0
    %v593 = vpack.c.bf16 %v433, %v432
    %v597 = vunpack.c.l.b16 %v437
    %v598 = vunpack.c.l.b16 %v438
    %v599 = vunpack.c.l.b16 %v439
    %v600 = vpack.c.b16 %v598, %v597
    %v601 = vpack.c.b16 %v599, %v599
    %vm602 = vcmask 97280
    %v604 = vsel %vm602, %v600, 0
    %v607 = vsel %vm602, %v601, 0
    %vm609 = vcmask 1045504
    %v611 = vsel %vm609, %v593, 0
    %613 = vmatprep.subr.bf16.mxu0 0
    %614 = vmatpush1.bf16.msra.mxu0 %v611
    %615 = vmatprep.subr.bf16.mxu0 0
    %616 = vmatpush1.bf16.msra.mxu0 0
    %617 = vmatprep.subr.bf16.mxu0 0
    %618 = vmatpush1.bf16.msra.mxu0 0
    %619 = vmatprep.subr.bf16.mxu0 0
    %620 = vmatpush1.bf16.msra.mxu0 0
    %621 = vmatprep.subr.bf16.mxu0 0
    %622 = vmatpush1.bf16.msra.mxu0 0
    %623 = vmatprep.subr.bf16.mxu0 0
    %624 = vmatpush1.bf16.msra.mxu0 0
    %625 = vmatprep.subr.bf16.mxu0 0
    %626 = vmatpush1.bf16.msra.mxu0 0
    %627 = vmatprep.subr.bf16.mxu0 0
    %628 = vmatpush1.bf16.msra.mxu0 0
    %629 = vmatprep.subr.bf16.mxu0 0
    %630 = vmatpush1.bf16.msra.mxu0 0
    %631 = vmatprep.subr.bf16.mxu0 0
    %632 = vmatpush1.bf16.msra.mxu0 0
    %633 = vmatprep.subr.bf16.mxu0 0
    %634 = vmatpush1.bf16.msra.mxu0 0
    %635 = vmatprep.subr.bf16.mxu0 0
    %636 = vmatpush1.bf16.msra.mxu0 0
    %637 = vmatprep.subr.bf16.mxu0 0
    %638 = vmatpush1.bf16.msra.mxu0 0
    %639 = vmatprep.subr.bf16.mxu0 0
    %640 = vmatpush1.bf16.msra.mxu0 0
    %641 = vmatprep.subr.bf16.mxu0 0
    %642 = vmatpush1.bf16.msra.mxu0 0
    %643 = vmatprep.subr.bf16.mxu0 0
    %644 = vmatpush1.bf16.msra.mxu0 0
    %645 = vmatprep.mubr.bf16.mxu0 0
    %646 = vmatmul.mubr.bf16.gmra.mrb[0].mxu0 %v604
    %v647 = vpop.f32.mrb[0].mxu0
    %v648 = vadd.f32 %v580, %v647
    %v649 = vpop.f32.mrb[0].mxu0
    %v650 = vpop.f32.mrb[0].mxu0
    %v651 = vadd.f32 %v585, %v650
    %v652 = vpop.f32.mrb[0].mxu0
    %653 = vmatprep.mubr.bf16.mxu0 0
    %654 = vmatmul.mubr.bf16.gmra.mrb[0].mxu0 %v607
    %v655 = vpop.f32.mrb[0].mxu0
    %v656 = vadd.f32 %v590, %v655
    %v657 = vpop.f32.mrb[0].mxu0
    %v658 = vpop.f32.mrb[0].mxu0
    %v659 = vpop.f32.mrb[0].mxu0
    %660 = vdwg.mxu0
    %v661 = vmax.f32 %v648, 0.0
    %v662 = vmax.f32 %v651, 0.0
    %v663 = vmax.f32 %v656, 0.0
    %v664 = vpack.c.bf16 %v662, %v661
    %v665 = vpack.c.bf16 %v663, %v663
    %v666 = vmul.f32 %v432, 2.0
    %v667 = vmul.f32 %v433, 2.0
    %v670 = vunpack.c.l.b16 %v440
    %v671 = vunpack.c.l.b16 %v441
    %v672 = vpack.c.b16 %v671, %v670
    %vm673 = vcmask 195584
    %v675 = vsel %vm673, %v672, 0
    %vm677 = vcmask 1043456
    %v679 = vsel %vm677, %v665, 0
    %681 = vmatprep.subr.bf16.mxu0 0
    %682 = vmatpush1.bf16.msra.mxu0 %v664
    %683 = vmatprep.subr.bf16.mxu0 0
    %684 = vmatpush1.bf16.msra.mxu0 %v679
    %685 = vmatprep.subr.bf16.mxu0 0
    %686 = vmatpush1.bf16.msra.mxu0 0
    %687 = vmatprep.subr.bf16.mxu0 0
    %688 = vmatpush1.bf16.msra.mxu0 0
    %689 = vmatprep.subr.bf16.mxu0 0
    %690 = vmatpush1.bf16.msra.mxu0 0
    %691 = vmatprep.subr.bf16.mxu0 0
    %692 = vmatpush1.bf16.msra.mxu0 0
    %693 = vmatprep.subr.bf16.mxu0 0
    %694 = vmatpush1.bf16.msra.mxu0 0
    %695 = vmatprep.subr.bf16.mxu0 0
    %696 = vmatpush1.bf16.msra.mxu0 0
    %697 = vmatprep.subr.bf16.mxu0 0
    %698 = vmatpush1.bf16.msra.mxu0 0
    %699 = vmatprep.subr.bf16.mxu0 0
    %700 = vmatpush1.bf16.msra.mxu0 0
    %701 = vmatprep.subr.bf16.mxu0 0
    %702 = vmatpush1.bf16.msra.mxu0 0
    %703 = vmatprep.subr.bf16.mxu0 0
    %704 = vmatpush1.bf16.msra.mxu0 0
    %705 = vmatprep.subr.bf16.mxu0 0
    %706 = vmatpush1.bf16.msra.mxu0 0
    %707 = vmatprep.subr.bf16.mxu0 0
    %708 = vmatpush1.bf16.msra.mxu0 0
    %709 = vmatprep.subr.bf16.mxu0 0
    %710 = vmatpush1.bf16.msra.mxu0 0
    %711 = vmatprep.subr.bf16.mxu0 0
    %712 = vmatpush1.bf16.msra.mxu0 0
    %713 = vmatprep.mubr.bf16.mxu0 0
    %714 = vmatmul.mubr.bf16.gmra.mrb[0].mxu0 %v675
    %v715 = vpop.f32.mrb[0].mxu0
    %v716 = vadd.f32 %v666, %v715
    %v717 = vpop.f32.mrb[0].mxu0
    %v718 = vpop.f32.mrb[0].mxu0
    %v719 = vadd.f32 %v667, %v718
    %v720 = vpop.f32.mrb[0].mxu0
    %721 = vdwg.mxu0
    %v722 = vlaneseq
    %v723 = vshrl.u32 %v722, 7
    %v724 = vsub.s32 1, %v723
    %v725 = vrot.slane %v491, %v724
    %726 = vmatprep.subr.mxu0 0.0
    %727 = vmatpush1.msra.mxu0 %v459
    %728 = vmatprep.subr.mxu0 0.0
    %729 = vmatpush1.msra.mxu0 %v460
    %730 = vmatprep.subr.mxu0 0.0
    %731 = vmatpush1.msra.mxu0 %v461
    %732 = vmatprep.subr.mxu0 0.0
    %733 = vmatpush1.msra.mxu0 %v462
    %734 = vmatprep.subr.mxu0 0.0
    %735 = vmatpush1.msra.mxu0 %v463
    %736 = vmatprep.subr.mxu0 0.0
    %737 = vmatpush1.msra.mxu0 %v464
    %738 = vmatprep.subr.mxu0 0.0
    %739 = vmatpush1.msra.mxu0 %v465
    %740 = vmatprep.subr.mxu0 0.0
    %741 = vmatpush1.msra.mxu0 %v466
    %742 = vmatprep.subr.mxu0 0.0
    %743 = vmatpush1.msra.mxu0 %v467
    %744 = vmatprep.subr.mxu0 0.0
    %745 = vmatpush1.msra.mxu0 %v468
    %746 = vmatprep.subr.mxu0 0.0
    %747 = vmatpush1.msra.mxu0 %v469
    %748 = vmatprep.subr.mxu0 0.0
    %749 = vmatpush1.msra.mxu0 %v470
    %750 = vmatprep.subr.mxu0 0.0
    %751 = vmatpush1.msra.mxu0 %v471
    %752 = vmatprep.subr.mxu0 0.0
    %753 = vmatpush1.msra.mxu0 %v472
    %754 = vmatprep.subr.mxu0 0.0
    %755 = vmatpush1.msra.mxu0 %v473
    %756 = vmatprep.subr.mxu0 0.0
    %757 = vmatpush1.msra.mxu0 %v474
    %758 = vmatprep.subr.mxu0 0.0
    %759 = vmatpush1.msra.mxu0 0.0
    %760 = vmatprep.subr.mxu0 0.0
    %761 = vmatpush1.msra.mxu0 0.0
    %762 = vmatprep.subr.mxu0 0.0
    %763 = vmatpush1.msra.mxu0 0.0
    %764 = vmatprep.subr.mxu0 0.0
    %765 = vmatpush1.msra.mxu0 0.0
    %766 = vmatprep.subr.mxu0 0.0
    %767 = vmatpush1.msra.mxu0 0.0
    %768 = vmatprep.subr.mxu0 0.0
    %769 = vmatpush1.msra.mxu0 0.0
    %770 = vmatprep.subr.mxu0 0.0
    %771 = vmatpush1.msra.mxu0 0.0
    %772 = vmatprep.subr.mxu0 0.0
    %773 = vmatpush1.msra.mxu0 0.0
    %774 = vmatprep.subr.mxu0 0.0
    %775 = vmatpush1.msra.mxu0 0.0
    %776 = vmatprep.subr.mxu0 0.0
    %777 = vmatpush1.msra.mxu0 0.0
    %778 = vmatprep.subr.mxu0 0.0
    %779 = vmatpush1.msra.mxu0 0.0
    %780 = vmatprep.subr.mxu0 0.0
    %781 = vmatpush1.msra.mxu0 0.0
    %782 = vmatprep.subr.mxu0 0.0
    %783 = vmatpush1.msra.mxu0 0.0
    %784 = vmatprep.subr.mxu0 0.0
    %785 = vmatpush1.msra.mxu0 0.0
    %786 = vmatprep.subr.mxu0 0.0
    %787 = vmatpush1.msra.mxu0 0.0
    %788 = vmatprep.subr.mxu0 0.0
    %789 = vmatpush1.msra.mxu0 0.0
    %790 = vmatprep.mubr.f32.mxu0 0.0
    %791 = vmatmul.mubr.f32.gmra.mrb[0].mxu0 %v716
    %v792 = vpop.f32.mrb[0].mxu0
    %v793 = vadd.f32 %v725, %v792
    %v794 = vpop.f32.mrb[0].mxu0
    %795 = vmatprep.mubr.f32.mxu0 0.0
    %796 = vmatmul.mubr.f32.gmra.mrb[0].mxu0 %v719
    %v797 = vpop.f32.mrb[0].mxu0
    %v798 = vadd.f32 %v725, %v797
    %v799 = vpop.f32.mrb[0].mxu0
    %800 = vdwg.mxu0
    %v801 = vmax.f32 %v793, 0.0
    %v802 = vmax.f32 %v798, 0.0
    %v803 = vlaneseq
    %v804 = vshrl.u32 %v803, 7
    %v805 = vsub.s32 2, %v804
    %v806 = vrot.slane %v491, %v805
    %807 = vmatprep.subr.mxu0 0.0
    %808 = vmatpush1.msra.mxu0 %v475
    %809 = vmatprep.subr.mxu0 0.0
    %810 = vmatpush1.msra.mxu0 %v476
    %811 = vmatprep.subr.mxu0 0.0
    %812 = vmatpush1.msra.mxu0 %v477
    %813 = vmatprep.subr.mxu0 0.0
    %814 = vmatpush1.msra.mxu0 %v478
    %815 = vmatprep.subr.mxu0 0.0
    %816 = vmatpush1.msra.mxu0 %v479
    %817 = vmatprep.subr.mxu0 0.0
    %818 = vmatpush1.msra.mxu0 %v480
    %819 = vmatprep.subr.mxu0 0.0
    %820 = vmatpush1.msra.mxu0 %v481
    %821 = vmatprep.subr.mxu0 0.0
    %822 = vmatpush1.msra.mxu0 %v482
    %823 = vmatprep.subr.mxu0 0.0
    %824 = vmatpush1.msra.mxu0 %v483
    %825 = vmatprep.subr.mxu0 0.0
    %826 = vmatpush1.msra.mxu0 %v484
    %827 = vmatprep.subr.mxu0 0.0
    %828 = vmatpush1.msra.mxu0 %v485
    %829 = vmatprep.subr.mxu0 0.0
    %830 = vmatpush1.msra.mxu0 %v486
    %831 = vmatprep.subr.mxu0 0.0
    %832 = vmatpush1.msra.mxu0 %v487
    %833 = vmatprep.subr.mxu0 0.0
    %834 = vmatpush1.msra.mxu0 %v488
    %835 = vmatprep.subr.mxu0 0.0
    %836 = vmatpush1.msra.mxu0 %v489
    %837 = vmatprep.subr.mxu0 0.0
    %838 = vmatpush1.msra.mxu0 %v490
    %839 = vmatprep.subr.mxu0 0.0
    %840 = vmatpush1.msra.mxu0 0.0
    %841 = vmatprep.subr.mxu0 0.0
    %842 = vmatpush1.msra.mxu0 0.0
    %843 = vmatprep.subr.mxu0 0.0
    %844 = vmatpush1.msra.mxu0 0.0
    %845 = vmatprep.subr.mxu0 0.0
    %846 = vmatpush1.msra.mxu0 0.0
    %847 = vmatprep.subr.mxu0 0.0
    %848 = vmatpush1.msra.mxu0 0.0
    %849 = vmatprep.subr.mxu0 0.0
    %850 = vmatpush1.msra.mxu0 0.0
    %851 = vmatprep.subr.mxu0 0.0
    %852 = vmatpush1.msra.mxu0 0.0
    %853 = vmatprep.subr.mxu0 0.0
    %854 = vmatpush1.msra.mxu0 0.0
    %855 = vmatprep.subr.mxu0 0.0
    %856 = vmatpush1.msra.mxu0 0.0
    %857 = vmatprep.subr.mxu0 0.0
    %858 = vmatpush1.msra.mxu0 0.0
    %859 = vmatprep.subr.mxu0 0.0
    %860 = vmatpush1.msra.mxu0 0.0
    %861 = vmatprep.subr.mxu0 0.0
    %862 = vmatpush1.msra.mxu0 0.0
    %863 = vmatprep.subr.mxu0 0.0
    %864 = vmatpush1.msra.mxu0 0.0
    %865 = vmatprep.subr.mxu0 0.0
    %866 = vmatpush1.msra.mxu0 0.0
    %867 = vmatprep.subr.mxu0 0.0
    %868 = vmatpush1.msra.mxu0 0.0
    %869 = vmatprep.subr.mxu0 0.0
    %870 = vmatpush1.msra.mxu0 0.0
    %871 = vmatprep.mubr.f32.mxu0 0.0
    %872 = vmatmul.mubr.f32.gmra.mrb[0].mxu0 %v801
    %v873 = vpop.f32.mrb[0].mxu0
    %v874 = vadd.f32 %v806, %v873
    %v875 = vpop.f32.mrb[0].mxu0
    %876 = vmatprep.mubr.f32.mxu0 0.0
    %877 = vmatmul.mubr.f32.gmra.mrb[0].mxu0 %v802
    %v878 = vpop.f32.mrb[0].mxu0
    %v879 = vadd.f32 %v806, %v878
    %v880 = vpop.f32.mrb[0].mxu0
    %881 = vdwg.mxu0
    %v882 = vmax.f32 %v874, 0.0
    %v883 = vmax.f32 %v879, 0.0
    %v884 = vlaneseq
    %v885 = vshrl.u32 %v884, 7
    %v886 = vsub.s32 5, %v885
    %v887 = vrot.slane %v491, %v886
    %v888 = vsub.f32 %v882, %v887
    %v889 = vsub.f32 %v883, %v887
    %v890 = vadd.f32 %v491, 1e-05
    %v891 = vrsqrt.pop %v890
    %v892 = vlaneseq
    %v893 = vshrl.u32 %v892, 7
    %v894 = vsub.s32 6, %v893
    %v895 = vrot.slane %v891, %v894
    %v896 = vmul.f32 %v888, %v895
    %v897 = vmul.f32 %v889, %v895
    %v898 = vlaneseq
    %v899 = vshrl.u32 %v898, 7
    %v900 = vsub.s32 3, %v899
    %v901 = vrot.slane %v491, %v900
    %v902 = vmul.f32 %v896, %v901
    %v903 = vmul.f32 %v897, %v901
    %v904 = vlaneseq
    %v905 = vshrl.u32 %v904, 7
    %v906 = vsub.s32 4, %v905
    %v907 = vrot.slane %v491, %v906
    %v908 = vadd.f32 %v902, %v907
    %v909 = vadd.f32 %v903, %v907
    %v910 = vpack.c.bf16 %v909, %v908
    %v912 = vsel %vm602, %v442, 0
    %v915 = vsel %vm609, %v910, 0
    %917 = vmatprep.subr.bf16.mxu0 0
    %918 = vmatpush1.bf16.msra.mxu0 %v915
    %919 = vmatprep.subr.bf16.mxu0 0
    %920 = vmatpush1.bf16.msra.mxu0 0
    %921 = vmatprep.subr.bf16.mxu0 0
    %922 = vmatpush1.bf16.msra.mxu0 0
    %923 = vmatprep.subr.bf16.mxu0 0
    %924 = vmatpush1.bf16.msra.mxu0 0
    %925 = vmatprep.subr.bf16.mxu0 0
    %926 = vmatpush1.bf16.msra.mxu0 0
    %927 = vmatprep.subr.bf16.mxu0 0
    %928 = vmatpush1.bf16.msra.mxu0 0
    %929 = vmatprep.subr.bf16.mxu0 0
    %930 = vmatpush1.bf16.msra.mxu0 0
    %931 = vmatprep.subr.bf16.mxu0 0
    %932 = vmatpush1.bf16.msra.mxu0 0
    %933 = vmatprep.subr.bf16.mxu0 0
    %934 = vmatpush1.bf16.msra.mxu0 0
    %935 = vmatprep.subr.bf16.mxu0 0
    %936 = vmatpush1.bf16.msra.mxu0 0
    %937 = vmatprep.subr.bf16.mxu0 0
    %938 = vmatpush1.bf16.msra.mxu0 0
    %939 = vmatprep.subr.bf16.mxu0 0
    %940 = vmatpush1.bf16.msra.mxu0 0
    %941 = vmatprep.subr.bf16.mxu0 0
    %942 = vmatpush1.bf16.msra.mxu0 0
    %943 = vmatprep.subr.bf16.mxu0 0
    %944 = vmatpush1.bf16.msra.mxu0 0
    %945 = vmatprep.subr.bf16.mxu0 0
    %946 = vmatpush1.bf16.msra.mxu0 0
    %947 = vmatprep.subr.bf16.mxu0 0
    %948 = vmatpush1.bf16.msra.mxu0 0
    %949 = vmatprep.mubr.bf16.mxu0 0
    %950 = vmatmul.mubr.bf16.gmra.mrb[0].mxu0 %v912
    %v951 = vpop.f32.mrb[0].mxu0
    %v952 = vadd.f32 0.0, %v951
    %v953 = vpop.f32.mrb[0].mxu0
    %v954 = vpop.f32.mrb[0].mxu0
    %v955 = vpop.f32.mrb[0].mxu0
    %956 = vdwg.mxu0
    %v958 = vlaneseq
    %v959 = vshrl.u32 %v958, 7
    %v960 = vsub.s32 0, %v959
    %v961 = vrot.slane %v508, %v960
    %963 = vmatprep.subr.mxu0 0.0
    %964 = vmatpush1.msra.mxu0 %v492
    %965 = vmatprep.subr.mxu0 0.0
    %966 = vmatpush1.msra.mxu0 %v493
    %967 = vmatprep.subr.mxu0 0.0
    %968 = vmatpush1.msra.mxu0 %v494
    %969 = vmatprep.subr.mxu0 0.0
    %970 = vmatpush1.msra.mxu0 %v495
    %971 = vmatprep.subr.mxu0 0.0
    %972 = vmatpush1.msra.mxu0 %v496
    %973 = vmatprep.subr.mxu0 0.0
    %974 = vmatpush1.msra.mxu0 %v497
    %975 = vmatprep.subr.mxu0 0.0
    %976 = vmatpush1.msra.mxu0 %v498
    %977 = vmatprep.subr.mxu0 0.0
    %978 = vmatpush1.msra.mxu0 %v499
    %979 = vmatprep.subr.mxu0 0.0
    %980 = vmatpush1.msra.mxu0 %v500
    %981 = vmatprep.subr.mxu0 0.0
    %982 = vmatpush1.msra.mxu0 %v501
    %983 = vmatprep.subr.mxu0 0.0
    %984 = vmatpush1.msra.mxu0 %v502
    %985 = vmatprep.subr.mxu0 0.0
    %986 = vmatpush1.msra.mxu0 %v503
    %987 = vmatprep.subr.mxu0 0.0
    %988 = vmatpush1.msra.mxu0 %v504
    %989 = vmatprep.subr.mxu0 0.0
    %990 = vmatpush1.msra.mxu0 %v505
    %991 = vmatprep.subr.mxu0 0.0
    %992 = vmatpush1.msra.mxu0 %v506
    %993 = vmatprep.subr.mxu0 0.0
    %994 = vmatpush1.msra.mxu0 %v507
    %995 = vmatprep.subr.mxu0 0.0
    %996 = vmatpush1.msra.mxu0 0.0
    %997 = vmatprep.subr.mxu0 0.0
    %998 = vmatpush1.msra.mxu0 0.0
    %999 = vmatprep.subr.mxu0 0.0
    %1000 = vmatpush1.msra.mxu0 0.0
    %1001 = vmatprep.subr.mxu0 0.0
    %1002 = vmatpush1.msra.mxu0 0.0
    %1003 = vmatprep.subr.mxu0 0.0
    %1004 = vmatpush1.msra.mxu0 0.0
    %1005 = vmatprep.subr.mxu0 0.0
    %1006 = vmatpush1.msra.mxu0 0.0
    %1007 = vmatprep.subr.mxu0 0.0
    %1008 = vmatpush1.msra.mxu0 0.0
    %1009 = vmatprep.subr.mxu0 0.0
    %1010 = vmatpush1.msra.mxu0 0.0
    %1011 = vmatprep.subr.mxu0 0.0
    %1012 = vmatpush1.msra.mxu0 0.0
    %1013 = vmatprep.subr.mxu0 0.0
    %1014 = vmatpush1.msra.mxu0 0.0
    %1015 = vmatprep.subr.mxu0 0.0
    %1016 = vmatpush1.msra.mxu0 0.0
    %1017 = vmatprep.subr.mxu0 0.0
    %1018 = vmatpush1.msra.mxu0 0.0
    %1019 = vmatprep.subr.mxu0 0.0
    %1020 = vmatpush1.msra.mxu0 0.0
    %1021 = vmatprep.subr.mxu0 0.0
    %1022 = vmatpush1.msra.mxu0 0.0
    %1023 = vmatprep.subr.mxu0 0.0
    %1024 = vmatpush1.msra.mxu0 0.0
    %1025 = vmatprep.subr.mxu0 0.0
    %1026 = vmatpush1.msra.mxu0 0.0
    %1027 = vmatprep.mubr.f32.mxu0 0.0
    %1028 = vmatmul.mubr.f32.gmra.mrb[0].mxu0 %v952
    %v1029 = vpop.f32.mrb[0].mxu0
    %v1030 = vadd.f32 %v961, %v1029
    %v1031 = vpop.f32.mrb[0].mxu0
    %1032 = vdwg.mxu0
    %vm1033 = vcmp.ge.f32.partialorder %v1030, 0.0
    %v1034 = vmul.f32 %v1030, 0.01
    %v1035 = vsel %vm1033, %v1030, %v1034
    %v1036 = vld [vmem:[#allocation2] sm:$0xff]
    %v1037 = vld [vmem:[#allocation2 + $0x8] sm:$0xff]
    %v1038 = vld [vmem:[#allocation2 + $0x10] sm:$0xff]
    %v1039 = vld [vmem:[#allocation2 + $0x18] sm:$0xff]
    %v1040 = vld [vmem:[#allocation2 + $0x20] sm:$0xff]
    %v1041 = vld [vmem:[#allocation5] sm:$0xff]
    %v1042 = vld [vmem:[#allocation5 + $0x8] sm:$0xff]
    %v1043 = vld [vmem:[#allocation5 + $0x10] sm:$0xff]
    %v1044 = vld [vmem:[#allocation5 + $0x18] sm:$0xff]
    %v1045 = vld [vmem:[#allocation5 + $0x20] sm:$0xff]
    %v1046 = vld [vmem:[#allocation5 + $0x28] sm:$0xff]
    %v1047 = vld [vmem:[#allocation5 + $0x30] sm:$0xff]
    %v1048 = vld [vmem:[#allocation5 + $0x38] sm:$0xff]
    %v1049 = vld [vmem:[#allocation5 + $0x40] sm:$0xff]
    %v1050 = vld [vmem:[#allocation5 + $0x48] sm:$0xff]
    %v1051 = vld [vmem:[%s5] sm:$0xf]
    %v1052 = vld [vmem:[%s5 + $0x4] sm:$0xf]
    %v1053 = vld [vmem:[%s5 + $0x8] sm:$0xf]
    %v1054 = vld [vmem:[%s5 + $0xc] sm:$0xf]
    %v1055 = vld [vmem:[%s5 + $0x10] sm:$0xf]
    %v1056 = vld [vmem:[%s5 + $0x14] sm:$0xf]
    %v1057 = vld [vmem:[%s5 + $0x18] sm:$0xf]
    %v1058 = vld [vmem:[%s5 + $0x1c] sm:$0xf]
    %v1059 = vld [vmem:[%s5 + $0x20] sm:$0xf]
    %v1060 = vld [vmem:[%s5 + $0x24] sm:$0xf]
    %v1061 = vld [vmem:[#allocation7] sm:$0xf]
    %v1062 = vld [vmem:[#allocation7 + $0x4] sm:$0xf]
    %v1063 = vld [vmem:[#allocation7 + $0x8] sm:$0xf]
    %v1064 = vld [vmem:[#allocation7 + $0xc] sm:$0xf]
    %v1065 = vld [vmem:[#allocation7 + $0x10] sm:$0xf]
    %v1066 = vld [vmem:[#allocation8] sm:$0xf]
    %v1067 = vld [vmem:[%s29] sm:$0xff]
    %v1068 = vld [vmem:[%s29 + $0x8] sm:$0xff]
    %v1069 = vld [vmem:[%s29 + $0x10] sm:$0xff]
    %v1070 = vld [vmem:[%s29 + $0x18] sm:$0xff]
    %v1071 = vld [vmem:[%s29 + $0x20] sm:$0xff]
    %v1072 = vld [vmem:[%s29 + $0x28] sm:$0xff]
    %v1073 = vld [vmem:[%s29 + $0x30] sm:$0xff]
    %v1074 = vld [vmem:[%s29 + $0x38] sm:$0xff]
    %v1075 = vld [vmem:[%s29 + $0x40] sm:$0xff]
    %v1076 = vld [vmem:[%s29 + $0x48] sm:$0xff]
    %v1077 = vld [vmem:[%s29 + $0x50] sm:$0xff]
    %v1078 = vld [vmem:[%s29 + $0x58] sm:$0xff]
    %v1079 = vld [vmem:[%s29 + $0x60] sm:$0xff]
    %v1080 = vld [vmem:[%s29 + $0x68] sm:$0xff]
    %v1081 = vld [vmem:[%s29 + $0x70] sm:$0xff]
    %v1082 = vld [vmem:[%s29 + $0x78] sm:$0xff]
    %v1083 = vld [vmem:[#allocation20] sm:$0xff]
    %v1084 = vld [vmem:[#allocation20 + $0x8] sm:$0xff]
    %v1085 = vld [vmem:[#allocation20 + $0x10] sm:$0xff]
    %v1086 = vld [vmem:[#allocation20 + $0x18] sm:$0xff]
    %v1087 = vld [vmem:[#allocation20 + $0x20] sm:$0xff]
    %v1088 = vld [vmem:[#allocation20 + $0x28] sm:$0xff]
    %v1089 = vld [vmem:[#allocation20 + $0x30] sm:$0xff]
    %v1090 = vld [vmem:[#allocation20 + $0x38] sm:$0xff]
    %v1091 = vld [vmem:[#allocation20 + $0x40] sm:$0xff]
    %v1092 = vld [vmem:[#allocation20 + $0x48] sm:$0xff]
    %v1093 = vld [vmem:[#allocation20 + $0x50] sm:$0xff]
    %v1094 = vld [vmem:[#allocation20 + $0x58] sm:$0xff]
    %v1095 = vld [vmem:[#allocation20 + $0x60] sm:$0xff]
    %v1096 = vld [vmem:[#allocation20 + $0x68] sm:$0xff]
    %v1097 = vld [vmem:[#allocation20 + $0x70] sm:$0xff]
    %v1098 = vld [vmem:[#allocation20 + $0x78] sm:$0xff]
    %v1099 = vld [vmem:[#allocation22] sm:$0xff]
    %v1100 = vld [vmem:[#allocation22 + $0x8] sm:$0xff]
    %v1101 = vld [vmem:[#allocation22 + $0x10] sm:$0xff]
    %v1102 = vld [vmem:[#allocation22 + $0x18] sm:$0xff]
    %v1103 = vld [vmem:[#allocation22 + $0x20] sm:$0xff]
    %v1104 = vld [vmem:[#allocation22 + $0x28] sm:$0xff]
    %v1105 = vld [vmem:[#allocation22 + $0x30] sm:$0xff]
    %v1106 = vld [vmem:[#allocation22 + $0x38] sm:$0xff]
    %v1107 = vld [vmem:[#allocation22 + $0x40] sm:$0xff]
    %v1108 = vld [vmem:[#allocation22 + $0x48] sm:$0xff]
    %v1109 = vld [vmem:[#allocation22 + $0x50] sm:$0xff]
    %v1110 = vld [vmem:[#allocation22 + $0x58] sm:$0xff]
    %v1111 = vld [vmem:[#allocation22 + $0x60] sm:$0xff]
    %v1112 = vld [vmem:[#allocation22 + $0x68] sm:$0xff]
    %v1113 = vld [vmem:[#allocation22 + $0x70] sm:$0xff]
    %v1114 = vld [vmem:[#allocation22 + $0x78] sm:$0xff]
    %v1115 = vld [vmem:[#allocation23] sm:$0xff]
    %v1116 = vld [vmem:[#allocation26] sm:$0xff]
    %v1117 = vld [vmem:[#allocation26 + $0x8] sm:$0xff]
    %v1118 = vld [vmem:[#allocation26 + $0x10] sm:$0xff]
    %v1119 = vld [vmem:[#allocation26 + $0x18] sm:$0xff]
    %v1120 = vld [vmem:[#allocation26 + $0x20] sm:$0xff]
    %v1121 = vld [vmem:[#allocation26 + $0x28] sm:$0xff]
    %v1122 = vld [vmem:[#allocation26 + $0x30] sm:$0xff]
    %v1123 = vld [vmem:[#allocation26 + $0x38] sm:$0xff]
    %v1124 = vld [vmem:[#allocation26 + $0x40] sm:$0xff]
    %v1125 = vld [vmem:[#allocation26 + $0x48] sm:$0xff]
    %v1126 = vld [vmem:[#allocation26 + $0x50] sm:$0xff]
    %v1127 = vld [vmem:[#allocation26 + $0x58] sm:$0xff]
    %v1128 = vld [vmem:[#allocation26 + $0x60] sm:$0xff]
    %v1129 = vld [vmem:[#allocation26 + $0x68] sm:$0xff]
    %v1130 = vld [vmem:[#allocation26 + $0x70] sm:$0xff]
    %v1131 = vld [vmem:[#allocation26 + $0x78] sm:$0xff]
    %v1132 = vld [vmem:[%s43] sm:$0x1]
    %v1133 = vlaneseq
    %v1134 = vshrl.u32 %v1133, 7
    %v1135 = vsub.s32 0, %v1134
    %v1136 = vrot.slane %v1115, %v1135
    %1137 = vmatprep.subr.mxu0 0.0
    %1138 = vmatpush1.msra.mxu0 %v1067
    %1139 = vmatprep.subr.mxu0 0.0
    %1140 = vmatpush1.msra.mxu0 %v1068
    %1141 = vmatprep.subr.mxu0 0.0
    %1142 = vmatpush1.msra.mxu0 %v1069
    %1143 = vmatprep.subr.mxu0 0.0
    %1144 = vmatpush1.msra.mxu0 %v1070
    %1145 = vmatprep.subr.mxu0 0.0
    %1146 = vmatpush1.msra.mxu0 %v1071
    %1147 = vmatprep.subr.mxu0 0.0
    %1148 = vmatpush1.msra.mxu0 %v1072
    %1149 = vmatprep.subr.mxu0 0.0
    %1150 = vmatpush1.msra.mxu0 %v1073
    %1151 = vmatprep.subr.mxu0 0.0
    %1152 = vmatpush1.msra.mxu0 %v1074
    %1153 = vmatprep.subr.mxu0 0.0
    %1154 = vmatpush1.msra.mxu0 %v1075
    %1155 = vmatprep.subr.mxu0 0.0
    %1156 = vmatpush1.msra.mxu0 %v1076
    %1157 = vmatprep.subr.mxu0 0.0
    %1158 = vmatpush1.msra.mxu0 %v1077
    %1159 = vmatprep.subr.mxu0 0.0
    %1160 = vmatpush1.msra.mxu0 %v1078
    %1161 = vmatprep.subr.mxu0 0.0
    %1162 = vmatpush1.msra.mxu0 %v1079
    %1163 = vmatprep.subr.mxu0 0.0
    %1164 = vmatpush1.msra.mxu0 %v1080
    %1165 = vmatprep.subr.mxu0 0.0
    %1166 = vmatpush1.msra.mxu0 %v1081
    %1167 = vmatprep.subr.mxu0 0.0
    %1168 = vmatpush1.msra.mxu0 %v1082
    %1169 = vmatprep.subr.mxu0 0.0
    %1170 = vmatpush1.msra.mxu0 0.0
    %1171 = vmatprep.subr.mxu0 0.0
    %1172 = vmatpush1.msra.mxu0 0.0
    %1173 = vmatprep.subr.mxu0 0.0
    %1174 = vmatpush1.msra.mxu0 0.0
    %1175 = vmatprep.subr.mxu0 0.0
    %1176 = vmatpush1.msra.mxu0 0.0
    %1177 = vmatprep.subr.mxu0 0.0
    %1178 = vmatpush1.msra.mxu0 0.0
    %1179 = vmatprep.subr.mxu0 0.0
    %1180 = vmatpush1.msra.mxu0 0.0
    %1181 = vmatprep.subr.mxu0 0.0
    %1182 = vmatpush1.msra.mxu0 0.0
    %1183 = vmatprep.subr.mxu0 0.0
    %1184 = vmatpush1.msra.mxu0 0.0
    %1185 = vmatprep.subr.mxu0 0.0
    %1186 = vmatpush1.msra.mxu0 0.0
    %1187 = vmatprep.subr.mxu0 0.0
    %1188 = vmatpush1.msra.mxu0 0.0
    %1189 = vmatprep.subr.mxu0 0.0
    %1190 = vmatpush1.msra.mxu0 0.0
    %1191 = vmatprep.subr.mxu0 0.0
    %1192 = vmatpush1.msra.mxu0 0.0
    %1193 = vmatprep.subr.mxu0 0.0
    %1194 = vmatpush1.msra.mxu0 0.0
    %1195 = vmatprep.subr.mxu0 0.0
    %1196 = vmatpush1.msra.mxu0 0.0
    %1197 = vmatprep.subr.mxu0 0.0
    %1198 = vmatpush1.msra.mxu0 0.0
    %1199 = vmatprep.subr.mxu0 0.0
    %1200 = vmatpush1.msra.mxu0 0.0
    %1201 = vmatprep.mubr.f32.mxu0 0.0
    %1202 = vmatmul.mubr.f32.gmra.mrb[0].mxu0 %v1041
    %v1203 = vpop.f32.mrb[0].mxu0
    %v1204 = vadd.f32 %v1136, %v1203
    %v1205 = vpop.f32.mrb[0].mxu0
    %1206 = vmatprep.mubr.f32.mxu0 0.0
    %1207 = vmatmul.mubr.f32.gmra.mrb[0].mxu0 %v1042
    %v1208 = vpop.f32.mrb[0].mxu0
    %v1209 = vadd.f32 %v1136, %v1208
    %v1210 = vpop.f32.mrb[0].mxu0
    %1211 = vmatprep.mubr.f32.mxu0 0.0
    %1212 = vmatmul.mubr.f32.gmra.mrb[0].mxu0 %v1043
    %v1213 = vpop.f32.mrb[0].mxu0
    %v1214 = vadd.f32 %v1136, %v1213
    %v1215 = vpop.f32.mrb[0].mxu0
    %1216 = vmatprep.mubr.f32.mxu0 0.0
    %1217 = vmatmul.mubr.f32.gmra.mrb[0].mxu0 %v1044
    %v1218 = vpop.f32.mrb[0].mxu0
    %v1219 = vadd.f32 %v1136, %v1218
    %v1220 = vpop.f32.mrb[0].mxu0
    %1221 = vmatprep.mubr.f32.mxu0 0.0
    %1222 = vmatmul.mubr.f32.gmra.mrb[0].mxu0 %v1045
    %v1223 = vpop.f32.mrb[0].mxu0
    %v1224 = vadd.f32 %v1136, %v1223
    %v1225 = vpop.f32.mrb[0].mxu0
    %1226 = vmatprep.mubr.f32.mxu0 0.0
    %1227 = vmatmul.mubr.f32.gmra.mrb[0].mxu0 %v1046
    %v1228 = vpop.f32.mrb[0].mxu0
    %v1229 = vadd.f32 %v1136, %v1228
    %v1230 = vpop.f32.mrb[0].mxu0
    %1231 = vmatprep.mubr.f32.mxu0 0.0
    %1232 = vmatmul.mubr.f32.gmra.mrb[0].mxu0 %v1047
    %v1233 = vpop.f32.mrb[0].mxu0
    %v1234 = vadd.f32 %v1136, %v1233
    %v1235 = vpop.f32.mrb[0].mxu0
    %1236 = vmatprep.mubr.f32.mxu0 0.0
    %1237 = vmatmul.mubr.f32.gmra.mrb[0].mxu0 %v1048
    %v1238 = vpop.f32.mrb[0].mxu0
    %v1239 = vadd.f32 %v1136, %v1238
    %v1240 = vpop.f32.mrb[0].mxu0
    %1241 = vmatprep.mubr.f32.mxu0 0.0
    %1242 = vmatmul.mubr.f32.gmra.mrb[0].mxu0 %v1049
    %v1243 = vpop.f32.mrb[0].mxu0
    %v1244 = vadd.f32 %v1136, %v1243
    %v1245 = vpop.f32.mrb[0].mxu0
    %1246 = vmatprep.mubr.f32.mxu0 0.0
    %1247 = vmatmul.mubr.f32.gmra.mrb[0].mxu0 %v1050
    %v1248 = vpop.f32.mrb[0].mxu0
    %v1249 = vadd.f32 %v1136, %v1248
    %v1250 = vpop.f32.mrb[0].mxu0
    %1251 = vdwg.mxu0
    %v1252 = vpack.c.bf16 %v1037, %v1036
    %v1253 = vpack.c.bf16 %v1039, %v1038
    %v1254 = vpack.c.bf16 %v1040, %v1040
    %v1265 = vunpack.c.l.b16 %v1051
    %v1266 = vunpack.c.l.b16 %v1052
    %v1267 = vunpack.c.l.b16 %v1053
    %v1268 = vunpack.c.l.b16 %v1054
    %v1269 = vunpack.c.l.b16 %v1055
    %v1270 = vunpack.c.l.b16 %v1056
    %v1271 = vunpack.c.l.b16 %v1057
    %v1272 = vunpack.c.l.b16 %v1058
    %v1273 = vunpack.c.l.b16 %v1059
    %v1274 = vunpack.c.l.b16 %v1060
    %v1275 = vpack.c.b16 %v1266, %v1265
    %v1276 = vpack.c.b16 %v1268, %v1267
    %v1277 = vpack.c.b16 %v1270, %v1269
    %v1278 = vpack.c.b16 %v1272, %v1271
    %v1279 = vpack.c.b16 %v1274, %v1273
    %vm1280 = vcmask 326656
    %v1282 = vsel %vm1280, %v1275, 0
    %v1285 = vsel %vm1280, %v1276, 0
    %v1288 = vsel %vm1280, %v1277, 0
    %v1291 = vsel %vm1280, %v1278, 0
    %v1294 = vsel %vm1280, %v1279, 0
    %v1297 = vsel %vm677, %v1254, 0
    %1299 = vmatprep.subr.bf16.mxu0 0
    %1300 = vmatpush1.bf16.msra.mxu0 %v1252
    %1301 = vmatprep.subr.bf16.mxu0 0
    %1302 = vmatpush1.bf16.msra.mxu0 %v1253
    %1303 = vmatprep.subr.bf16.mxu0 0
    %1304 = vmatpush1.bf16.msra.mxu0 %v1297
    %1305 = vmatprep.subr.bf16.mxu0 0
    %1306 = vmatpush1.bf16.msra.mxu0 0
    %1307 = vmatprep.subr.bf16.mxu0 0
    %1308 = vmatpush1.bf16.msra.mxu0 0
    %1309 = vmatprep.subr.bf16.mxu0 0
    %1310 = vmatpush1.bf16.msra.mxu0 0
    %1311 = vmatprep.subr.bf16.mxu0 0
    %1312 = vmatpush1.bf16.msra.mxu0 0
    %1313 = vmatprep.subr.bf16.mxu0 0
    %1314 = vmatpush1.bf16.msra.mxu0 0
    %1315 = vmatprep.subr.bf16.mxu0 0
    %1316 = vmatpush1.bf16.msra.mxu0 0
    %1317 = vmatprep.subr.bf16.mxu0 0
    %1318 = vmatpush1.bf16.msra.mxu0 0
    %1319 = vmatprep.subr.bf16.mxu0 0
    %1320 = vmatpush1.bf16.msra.mxu0 0
    %1321 = vmatprep.subr.bf16.mxu0 0
    %1322 = vmatpush1.bf16.msra.mxu0 0
    %1323 = vmatprep.subr.bf16.mxu0 0
    %1324 = vmatpush1.bf16.msra.mxu0 0
    %1325 = vmatprep.subr.bf16.mxu0 0
    %1326 = vmatpush1.bf16.msra.mxu0 0
    %1327 = vmatprep.subr.bf16.mxu0 0
    %1328 = vmatpush1.bf16.msra.mxu0 0
    %1329 = vmatprep.subr.bf16.mxu0 0
    %1330 = vmatpush1.bf16.msra.mxu0 0
    %1331 = vmatprep.mubr.bf16.mxu0 0
    %1332 = vmatmul.mubr.bf16.gmra.mrb[0].mxu0 %v1282
    %v1333 = vpop.f32.mrb[0].mxu0
    %v1334 = vadd.f32 %v1204, %v1333
    %v1335 = vpop.f32.mrb[0].mxu0
    %v1336 = vpop.f32.mrb[0].mxu0
    %v1337 = vadd.f32 %v1209, %v1336
    %v1338 = vpop.f32.mrb[0].mxu0
    %1339 = vmatprep.mubr.bf16.mxu0 0
    %1340 = vmatmul.mubr.bf16.gmra.mrb[0].mxu0 %v1285
    %v1341 = vpop.f32.mrb[0].mxu0
    %v1342 = vadd.f32 %v1214, %v1341
    %v1343 = vpop.f32.mrb[0].mxu0
    %v1344 = vpop.f32.mrb[0].mxu0
    %v1345 = vadd.f32 %v1219, %v1344
    %v1346 = vpop.f32.mrb[0].mxu0
    %1347 = vmatprep.mubr.bf16.mxu0 0
    %1348 = vmatmul.mubr.bf16.gmra.mrb[0].mxu0 %v1288
    %v1349 = vpop.f32.mrb[0].mxu0
    %v1350 = vadd.f32 %v1224, %v1349
    %v1351 = vpop.f32.mrb[0].mxu0
    %v1352 = vpop.f32.mrb[0].mxu0
    %v1353 = vadd.f32 %v1229, %v1352
    %v1354 = vpop.f32.mrb[0].mxu0
    %1355 = vmatprep.mubr.bf16.mxu0 0
    %1356 = vmatmul.mubr.bf16.gmra.mrb[0].mxu0 %v1291
    %v1357 = vpop.f32.mrb[0].mxu0
    %v1358 = vadd.f32 %v1234, %v1357
    %v1359 = vpop.f32.mrb[0].mxu0
    %v1360 = vpop.f32.mrb[0].mxu0
    %v1361 = vadd.f32 %v1239, %v1360
    %v1362 = vpop.f32.mrb[0].mxu0
    %1363 = vmatprep.mubr.bf16.mxu0 0
    %1364 = vmatmul.mubr.bf16.gmra.mrb[0].mxu0 %v1294
    %v1365 = vpop.f32.mrb[0].mxu0
    %v1366 = vadd.f32 %v1244, %v1365
    %v1367 = vpop.f32.mrb[0].mxu0
    %v1368 = vpop.f32.mrb[0].mxu0
    %v1369 = vadd.f32 %v1249, %v1368
    %v1370 = vpop.f32.mrb[0].mxu0
    %1371 = vdwg.mxu0
    %v1372 = vmax.f32 %v1334, 0.0
    %v1373 = vmax.f32 %v1337, 0.0
    %v1374 = vmax.f32 %v1342, 0.0
    %v1375 = vmax.f32 %v1345, 0.0
    %v1376 = vmax.f32 %v1350, 0.0
    %v1377 = vmax.f32 %v1353, 0.0
    %v1378 = vmax.f32 %v1358, 0.0
    %v1379 = vmax.f32 %v1361, 0.0
    %v1380 = vmax.f32 %v1366, 0.0
    %v1381 = vmax.f32 %v1369, 0.0
    %v1382 = vpack.c.bf16 %v1373, %v1372
    %v1383 = vpack.c.bf16 %v1375, %v1374
    %v1384 = vpack.c.bf16 %v1377, %v1376
    %v1385 = vpack.c.bf16 %v1379, %v1378
    %v1386 = vpack.c.bf16 %v1381, %v1380
    %v1387 = vmul.f32 %v1036, 2.0
    %v1388 = vmul.f32 %v1037, 2.0
    %v1389 = vmul.f32 %v1038, 2.0
    %v1390 = vmul.f32 %v1039, 2.0
    %v1391 = vmul.f32 %v1040, 2.0
    %v1397 = vunpack.c.l.b16 %v1061
    %v1398 = vunpack.c.l.b16 %v1062
    %v1399 = vunpack.c.l.b16 %v1063
    %v1400 = vunpack.c.l.b16 %v1064
    %v1401 = vunpack.c.l.b16 %v1065
    %v1402 = vpack.c.b16 %v1398, %v1397
    %v1403 = vpack.c.b16 %v1400, %v1399
    %v1404 = vpack.c.b16 %v1401, %v1401
    %vm1405 = vcmask 654336
    %v1407 = vsel %vm1405, %v1402, 0
    %v1410 = vsel %vm1405, %v1403, 0
    %v1413 = vsel %vm1405, %v1404, 0
    %1415 = vmatprep.subr.bf16.mxu0 0
    %1416 = vmatpush1.bf16.msra.mxu0 %v1382
    %1417 = vmatprep.subr.bf16.mxu0 0
    %1418 = vmatpush1.bf16.msra.mxu0 %v1383
    %1419 = vmatprep.subr.bf16.mxu0 0
    %1420 = vmatpush1.bf16.msra.mxu0 %v1384
    %1421 = vmatprep.subr.bf16.mxu0 0
    %1422 = vmatpush1.bf16.msra.mxu0 %v1385
    %1423 = vmatprep.subr.bf16.mxu0 0
    %1424 = vmatpush1.bf16.msra.mxu0 %v1386
    %1425 = vmatprep.subr.bf16.mxu0 0
    %1426 = vmatpush1.bf16.msra.mxu0 0
    %1427 = vmatprep.subr.bf16.mxu0 0
    %1428 = vmatpush1.bf16.msra.mxu0 0
    %1429 = vmatprep.subr.bf16.mxu0 0
    %1430 = vmatpush1.bf16.msra.mxu0 0
    %1431 = vmatprep.subr.bf16.mxu0 0
    %1432 = vmatpush1.bf16.msra.mxu0 0
    %1433 = vmatprep.subr.bf16.mxu0 0
    %1434 = vmatpush1.bf16.msra.mxu0 0
    %1435 = vmatprep.subr.bf16.mxu0 0
    %1436 = vmatpush1.bf16.msra.mxu0 0
    %1437 = vmatprep.subr.bf16.mxu0 0
    %1438 = vmatpush1.bf16.msra.mxu0 0
    %1439 = vmatprep.subr.bf16.mxu0 0
    %1440 = vmatpush1.bf16.msra.mxu0 0
    %1441 = vmatprep.subr.bf16.mxu0 0
    %1442 = vmatpush1.bf16.msra.mxu0 0
    %1443 = vmatprep.subr.bf16.mxu0 0
    %1444 = vmatpush1.bf16.msra.mxu0 0
    %1445 = vmatprep.subr.bf16.mxu0 0
    %1446 = vmatpush1.bf16.msra.mxu0 0
    %1447 = vmatprep.mubr.bf16.mxu0 0
    %1448 = vmatmul.mubr.bf16.gmra.mrb[0].mxu0 %v1407
    %v1449 = vpop.f32.mrb[0].mxu0
    %v1450 = vadd.f32 %v1387, %v1449
    %v1451 = vpop.f32.mrb[0].mxu0
    %v1452 = vpop.f32.mrb[0].mxu0
    %v1453 = vadd.f32 %v1388, %v1452
    %v1454 = vpop.f32.mrb[0].mxu0
    %1455 = vmatprep.mubr.bf16.mxu0 0
    %1456 = vmatmul.mubr.bf16.gmra.mrb[0].mxu0 %v1410
    %v1457 = vpop.f32.mrb[0].mxu0
    %v1458 = vadd.f32 %v1389, %v1457
    %v1459 = vpop.f32.mrb[0].mxu0
    %v1460 = vpop.f32.mrb[0].mxu0
    %v1461 = vadd.f32 %v1390, %v1460
    %v1462 = vpop.f32.mrb[0].mxu0
    %1463 = vmatprep.mubr.bf16.mxu0 0
    %1464 = vmatmul.mubr.bf16.gmra.mrb[0].mxu0 %v1413
    %v1465 = vpop.f32.mrb[0].mxu0
    %v1466 = vadd.f32 %v1391, %v1465
    %v1467 = vpop.f32.mrb[0].mxu0
    %v1468 = vpop.f32.mrb[0].mxu0
    %v1469 = vpop.f32.mrb[0].mxu0
    %1470 = vdwg.mxu0
    %v1471 = vlaneseq
    %v1472 = vshrl.u32 %v1471, 7
    %v1473 = vsub.s32 1, %v1472
    %v1474 = vrot.slane %v1115, %v1473
    %1475 = vmatprep.subr.mxu0 0.0
    %1476 = vmatpush1.msra.mxu0 %v1083
    %1477 = vmatprep.subr.mxu0 0.0
    %1478 = vmatpush1.msra.mxu0 %v1084
    %1479 = vmatprep.subr.mxu0 0.0
    %1480 = vmatpush1.msra.mxu0 %v1085
    %1481 = vmatprep.subr.mxu0 0.0
    %1482 = vmatpush1.msra.mxu0 %v1086
    %1483 = vmatprep.subr.mxu0 0.0
    %1484 = vmatpush1.msra.mxu0 %v1087
    %1485 = vmatprep.subr.mxu0 0.0
    %1486 = vmatpush1.msra.mxu0 %v1088
    %1487 = vmatprep.subr.mxu0 0.0
    %1488 = vmatpush1.msra.mxu0 %v1089
    %1489 = vmatprep.subr.mxu0 0.0
    %1490 = vmatpush1.msra.mxu0 %v1090
    %1491 = vmatprep.subr.mxu0 0.0
    %1492 = vmatpush1.msra.mxu0 %v1091
    %1493 = vmatprep.subr.mxu0 0.0
    %1494 = vmatpush1.msra.mxu0 %v1092
    %1495 = vmatprep.subr.mxu0 0.0
    %1496 = vmatpush1.msra.mxu0 %v1093
    %1497 = vmatprep.subr.mxu0 0.0
    %1498 = vmatpush1.msra.mxu0 %v1094
    %1499 = vmatprep.subr.mxu0 0.0
    %1500 = vmatpush1.msra.mxu0 %v1095
    %1501 = vmatprep.subr.mxu0 0.0
    %1502 = vmatpush1.msra.mxu0 %v1096
    %1503 = vmatprep.subr.mxu0 0.0
    %1504 = vmatpush1.msra.mxu0 %v1097
    %1505 = vmatprep.subr.mxu0 0.0
    %1506 = vmatpush1.msra.mxu0 %v1098
    %1507 = vmatprep.subr.mxu0 0.0
    %1508 = vmatpush1.msra.mxu0 0.0
    %1509 = vmatprep.subr.mxu0 0.0
    %1510 = vmatpush1.msra.mxu0 0.0
    %1511 = vmatprep.subr.mxu0 0.0
    %1512 = vmatpush1.msra.mxu0 0.0
    %1513 = vmatprep.subr.mxu0 0.0
    %1514 = vmatpush1.msra.mxu0 0.0
    %1515 = vmatprep.subr.mxu0 0.0
    %1516 = vmatpush1.msra.mxu0 0.0
    %1517 = vmatprep.subr.mxu0 0.0
    %1518 = vmatpush1.msra.mxu0 0.0
    %1519 = vmatprep.subr.mxu0 0.0
    %1520 = vmatpush1.msra.mxu0 0.0
    %1521 = vmatprep.subr.mxu0 0.0
    %1522 = vmatpush1.msra.mxu0 0.0
    %1523 = vmatprep.subr.mxu0 0.0
    %1524 = vmatpush1.msra.mxu0 0.0
    %1525 = vmatprep.subr.mxu0 0.0
    %1526 = vmatpush1.msra.mxu0 0.0
    %1527 = vmatprep.subr.mxu0 0.0
    %1528 = vmatpush1.msra.mxu0 0.0
    %1529 = vmatprep.subr.mxu0 0.0
    %1530 = vmatpush1.msra.mxu0 0.0
    %1531 = vmatprep.subr.mxu0 0.0
    %1532 = vmatpush1.msra.mxu0 0.0
    %1533 = vmatprep.subr.mxu0 0.0
    %1534 = vmatpush1.msra.mxu0 0.0
    %1535 = vmatprep.subr.mxu0 0.0
    %1536 = vmatpush1.msra.mxu0 0.0
    %1537 = vmatprep.subr.mxu0 0.0
    %1538 = vmatpush1.msra.mxu0 0.0
    %1539 = vmatprep.mubr.f32.mxu0 0.0
    %1540 = vmatmul.mubr.f32.gmra.mrb[0].mxu0 %v1450
    %v1541 = vpop.f32.mrb[0].mxu0
    %v1542 = vadd.f32 %v1474, %v1541
    %v1543 = vpop.f32.mrb[0].mxu0
    %1544 = vmatprep.mubr.f32.mxu0 0.0
    %1545 = vmatmul.mubr.f32.gmra.mrb[0].mxu0 %v1453
    %v1546 = vpop.f32.mrb[0].mxu0
    %v1547 = vadd.f32 %v1474, %v1546
    %v1548 = vpop.f32.mrb[0].mxu0
    %1549 = vmatprep.mubr.f32.mxu0 0.0
    %1550 = vmatmul.mubr.f32.gmra.mrb[0].mxu0 %v1458
    %v1551 = vpop.f32.mrb[0].mxu0
    %v1552 = vadd.f32 %v1474, %v1551
    %v1553 = vpop.f32.mrb[0].mxu0
    %1554 = vmatprep.mubr.f32.mxu0 0.0
    %1555 = vmatmul.mubr.f32.gmra.mrb[0].mxu0 %v1461
    %v1556 = vpop.f32.mrb[0].mxu0
    %v1557 = vadd.f32 %v1474, %v1556
    %v1558 = vpop.f32.mrb[0].mxu0
    %1559 = vmatprep.mubr.f32.mxu0 0.0
    %1560 = vmatmul.mubr.f32.gmra.mrb[0].mxu0 %v1466
    %v1561 = vpop.f32.mrb[0].mxu0
    %v1562 = vadd.f32 %v1474, %v1561
    %v1563 = vpop.f32.mrb[0].mxu0
    %1564 = vdwg.mxu0
    %v1565 = vmax.f32 %v1542, 0.0
    %v1566 = vmax.f32 %v1547, 0.0
    %v1567 = vmax.f32 %v1552, 0.0
    %v1568 = vmax.f32 %v1557, 0.0
    %v1569 = vmax.f32 %v1562, 0.0
    %v1570 = vlaneseq
    %v1571 = vshrl.u32 %v1570, 7
    %v1572 = vsub.s32 2, %v1571
    %v1573 = vrot.slane %v1115, %v1572
    %1574 = vmatprep.subr.mxu0 0.0
    %1575 = vmatpush1.msra.mxu0 %v1099
    %1576 = vmatprep.subr.mxu0 0.0
    %1577 = vmatpush1.msra.mxu0 %v1100
    %1578 = vmatprep.subr.mxu0 0.0
    %1579 = vmatpush1.msra.mxu0 %v1101
    %1580 = vmatprep.subr.mxu0 0.0
    %1581 = vmatpush1.msra.mxu0 %v1102
    %1582 = vmatprep.subr.mxu0 0.0
    %1583 = vmatpush1.msra.mxu0 %v1103
    %1584 = vmatprep.subr.mxu0 0.0
    %1585 = vmatpush1.msra.mxu0 %v1104
    %1586 = vmatprep.subr.mxu0 0.0
    %1587 = vmatpush1.msra.mxu0 %v1105
    %1588 = vmatprep.subr.mxu0 0.0
    %1589 = vmatpush1.msra.mxu0 %v1106
    %1590 = vmatprep.subr.mxu0 0.0
    %1591 = vmatpush1.msra.mxu0 %v1107
    %1592 = vmatprep.subr.mxu0 0.0
    %1593 = vmatpush1.msra.mxu0 %v1108
    %1594 = vmatprep.subr.mxu0 0.0
    %1595 = vmatpush1.msra.mxu0 %v1109
    %1596 = vmatprep.subr.mxu0 0.0
    %1597 = vmatpush1.msra.mxu0 %v1110
    %1598 = vmatprep.subr.mxu0 0.0
    %1599 = vmatpush1.msra.mxu0 %v1111
    %1600 = vmatprep.subr.mxu0 0.0
    %1601 = vmatpush1.msra.mxu0 %v1112
    %1602 = vmatprep.subr.mxu0 0.0
    %1603 = vmatpush1.msra.mxu0 %v1113
    %1604 = vmatprep.subr.mxu0 0.0
    %1605 = vmatpush1.msra.mxu0 %v1114
    %1606 = vmatprep.subr.mxu0 0.0
    %1607 = vmatpush1.msra.mxu0 0.0
    %1608 = vmatprep.subr.mxu0 0.0
    %1609 = vmatpush1.msra.mxu0 0.0
    %1610 = vmatprep.subr.mxu0 0.0
    %1611 = vmatpush1.msra.mxu0 0.0
    %1612 = vmatprep.subr.mxu0 0.0
    %1613 = vmatpush1.msra.mxu0 0.0
    %1614 = vmatprep.subr.mxu0 0.0
    %1615 = vmatpush1.msra.mxu0 0.0
    %1616 = vmatprep.subr.mxu0 0.0
    %1617 = vmatpush1.msra.mxu0 0.0
    %1618 = vmatprep.subr.mxu0 0.0
    %1619 = vmatpush1.msra.mxu0 0.0
    %1620 = vmatprep.subr.mxu0 0.0
    %1621 = vmatpush1.msra.mxu0 0.0
    %1622 = vmatprep.subr.mxu0 0.0
    %1623 = vmatpush1.msra.mxu0 0.0
    %1624 = vmatprep.subr.mxu0 0.0
    %1625 = vmatpush1.msra.mxu0 0.0
    %1626 = vmatprep.subr.mxu0 0.0
    %1627 = vmatpush1.msra.mxu0 0.0
    %1628 = vmatprep.subr.mxu0 0.0
    %1629 = vmatpush1.msra.mxu0 0.0
    %1630 = vmatprep.subr.mxu0 0.0
    %1631 = vmatpush1.msra.mxu0 0.0
    %1632 = vmatprep.subr.mxu0 0.0
    %1633 = vmatpush1.msra.mxu0 0.0
    %1634 = vmatprep.subr.mxu0 0.0
    %1635 = vmatpush1.msra.mxu0 0.0
    %1636 = vmatprep.subr.mxu0 0.0
    %1637 = vmatpush1.msra.mxu0 0.0
    %1638 = vmatprep.mubr.f32.mxu0 0.0
    %1639 = vmatmul.mubr.f32.gmra.mrb[0].mxu0 %v1565
    %v1640 = vpop.f32.mrb[0].mxu0
    %v1641 = vadd.f32 %v1573, %v1640
    %v1642 = vpop.f32.mrb[0].mxu0
    %1643 = vmatprep.mubr.f32.mxu0 0.0
    %1644 = vmatmul.mubr.f32.gmra.mrb[0].mxu0 %v1566
    %v1645 = vpop.f32.mrb[0].mxu0
    %v1646 = vadd.f32 %v1573, %v1645
    %v1647 = vpop.f32.mrb[0].mxu0
    %1648 = vmatprep.mubr.f32.mxu0 0.0
    %1649 = vmatmul.mubr.f32.gmra.mrb[0].mxu0 %v1567
    %v1650 = vpop.f32.mrb[0].mxu0
    %v1651 = vadd.f32 %v1573, %v1650
    %v1652 = vpop.f32.mrb[0].mxu0
    %1653 = vmatprep.mubr.f32.mxu0 0.0
    %1654 = vmatmul.mubr.f32.gmra.mrb[0].mxu0 %v1568
    %v1655 = vpop.f32.mrb[0].mxu0
    %v1656 = vadd.f32 %v1573, %v1655
    %v1657 = vpop.f32.mrb[0].mxu0
    %1658 = vmatprep.mubr.f32.mxu0 0.0
    %1659 = vmatmul.mubr.f32.gmra.mrb[0].mxu0 %v1569
    %v1660 = vpop.f32.mrb[0].mxu0
    %v1661 = vadd.f32 %v1573, %v1660
    %v1662 = vpop.f32.mrb[0].mxu0
    %1663 = vdwg.mxu0
    %v1664 = vmax.f32 %v1641, 0.0
    %v1665 = vmax.f32 %v1646, 0.0
    %v1666 = vmax.f32 %v1651, 0.0
    %v1667 = vmax.f32 %v1656, 0.0
    %v1668 = vmax.f32 %v1661, 0.0
    %v1669 = vlaneseq
    %v1670 = vshrl.u32 %v1669, 7
    %v1671 = vsub.s32 5, %v1670
    %v1672 = vrot.slane %v1115, %v1671
    %v1673 = vsub.f32 %v1664, %v1672
    %v1674 = vsub.f32 %v1665, %v1672
    %v1675 = vsub.f32 %v1666, %v1672
    %v1676 = vsub.f32 %v1667, %v1672
    %v1677 = vsub.f32 %v1668, %v1672
    %v1678 = vadd.f32 %v1115, 1e-05
    %v1679 = vrsqrt.pop %v1678
    %v1680 = vlaneseq
    %v1681 = vshrl.u32 %v1680, 7
    %v1682 = vsub.s32 6, %v1681
    %v1683 = vrot.slane %v1679, %v1682
    %v1684 = vmul.f32 %v1673, %v1683
    %v1685 = vmul.f32 %v1674, %v1683
    %v1686 = vmul.f32 %v1675, %v1683
    %v1687 = vmul.f32 %v1676, %v1683
    %v1688 = vmul.f32 %v1677, %v1683
    %v1689 = vlaneseq
    %v1690 = vshrl.u32 %v1689, 7
    %v1691 = vsub.s32 3, %v1690
    %v1692 = vrot.slane %v1115, %v1691
    %v1693 = vmul.f32 %v1684, %v1692
    %v1694 = vmul.f32 %v1685, %v1692
    %v1695 = vmul.f32 %v1686, %v1692
    %v1696 = vmul.f32 %v1687, %v1692
    %v1697 = vmul.f32 %v1688, %v1692
    %v1698 = vlaneseq
    %v1699 = vshrl.u32 %v1698, 7
    %v1700 = vsub.s32 4, %v1699
    %v1701 = vrot.slane %v1115, %v1700
    %v1702 = vadd.f32 %v1693, %v1701
    %v1703 = vadd.f32 %v1694, %v1701
    %v1704 = vadd.f32 %v1695, %v1701
    %v1705 = vadd.f32 %v1696, %v1701
    %v1706 = vadd.f32 %v1697, %v1701
    %v1707 = vpack.c.bf16 %v1703, %v1702
    %v1708 = vpack.c.bf16 %v1705, %v1704
    %v1709 = vpack.c.bf16 %v1706, %v1706
    %v1711 = vsel %vm1280, %v1066, 0
    %v1714 = vsel %vm677, %v1709, 0
    %1716 = vmatprep.subr.bf16.mxu0 0
    %1717 = vmatpush1.bf16.msra.mxu0 %v1707
    %1718 = vmatprep.subr.bf16.mxu0 0
    %1719 = vmatpush1.bf16.msra.mxu0 %v1708
    %1720 = vmatprep.subr.bf16.mxu0 0
    %1721 = vmatpush1.bf16.msra.mxu0 %v1714
    %1722 = vmatprep.subr.bf16.mxu0 0
    %1723 = vmatpush1.bf16.msra.mxu0 0
    %1724 = vmatprep.subr.bf16.mxu0 0
    %1725 = vmatpush1.bf16.msra.mxu0 0
    %1726 = vmatprep.subr.bf16.mxu0 0
    %1727 = vmatpush1.bf16.msra.mxu0 0
    %1728 = vmatprep.subr.bf16.mxu0 0
    %1729 = vmatpush1.bf16.msra.mxu0 0
    %1730 = vmatprep.subr.bf16.mxu0 0
    %1731 = vmatpush1.bf16.msra.mxu0 0
    %1732 = vmatprep.subr.bf16.mxu0 0
    %1733 = vmatpush1.bf16.msra.mxu0 0
    %1734 = vmatprep.subr.bf16.mxu0 0
    %1735 = vmatpush1.bf16.msra.mxu0 0
    %1736 = vmatprep.subr.bf16.mxu0 0
    %1737 = vmatpush1.bf16.msra.mxu0 0
    %1738 = vmatprep.subr.bf16.mxu0 0
    %1739 = vmatpush1.bf16.msra.mxu0 0
    %1740 = vmatprep.subr.bf16.mxu0 0
    %1741 = vmatpush1.bf16.msra.mxu0 0
    %1742 = vmatprep.subr.bf16.mxu0 0
    %1743 = vmatpush1.bf16.msra.mxu0 0
    %1744 = vmatprep.subr.bf16.mxu0 0
    %1745 = vmatpush1.bf16.msra.mxu0 0
    %1746 = vmatprep.subr.bf16.mxu0 0
    %1747 = vmatpush1.bf16.msra.mxu0 0
    %1748 = vmatprep.mubr.bf16.mxu0 0
    %1749 = vmatmul.mubr.bf16.gmra.mrb[0].mxu0 %v1711
    %v1750 = vpop.f32.mrb[0].mxu0
    %v1751 = vadd.f32 0.0, %v1750
    %v1752 = vpop.f32.mrb[0].mxu0
    %v1753 = vpop.f32.mrb[0].mxu0
    %v1754 = vpop.f32.mrb[0].mxu0
    %1755 = vdwg.mxu0
    %v1757 = vlaneseq
    %v1758 = vshrl.u32 %v1757, 7
    %v1759 = vsub.s32 0, %v1758
    %v1760 = vrot.slane %v1132, %v1759
    %1762 = vmatprep.subr.mxu0 0.0
    %1763 = vmatpush1.msra.mxu0 %v1116
    %1764 = vmatprep.subr.mxu0 0.0
    %1765 = vmatpush1.msra.mxu0 %v1117
    %1766 = vmatprep.subr.mxu0 0.0
    %1767 = vmatpush1.msra.mxu0 %v1118
    %1768 = vmatprep.subr.mxu0 0.0
    %1769 = vmatpush1.msra.mxu0 %v1119
    %1770 = vmatprep.subr.mxu0 0.0
    %1771 = vmatpush1.msra.mxu0 %v1120
    %1772 = vmatprep.subr.mxu0 0.0
    %1773 = vmatpush1.msra.mxu0 %v1121
    %1774 = vmatprep.subr.mxu0 0.0
    %1775 = vmatpush1.msra.mxu0 %v1122
    %1776 = vmatprep.subr.mxu0 0.0
    %1777 = vmatpush1.msra.mxu0 %v1123
    %1778 = vmatprep.subr.mxu0 0.0
    %1779 = vmatpush1.msra.mxu0 %v1124
    %1780 = vmatprep.subr.mxu0 0.0
    %1781 = vmatpush1.msra.mxu0 %v1125
    %1782 = vmatprep.subr.mxu0 0.0
    %1783 = vmatpush1.msra.mxu0 %v1126
    %1784 = vmatprep.subr.mxu0 0.0
    %1785 = vmatpush1.msra.mxu0 %v1127
    %1786 = vmatprep.subr.mxu0 0.0
    %1787 = vmatpush1.msra.mxu0 %v1128
    %1788 = vmatprep.subr.mxu0 0.0
    %1789 = vmatpush1.msra.mxu0 %v1129
    %1790 = vmatprep.subr.mxu0 0.0
    %1791 = vmatpush1.msra.mxu0 %v1130
    %1792 = vmatprep.subr.mxu0 0.0
    %1793 = vmatpush1.msra.mxu0 %v1131
    %1794 = vmatprep.subr.mxu0 0.0
    %1795 = vmatpush1.msra.mxu0 0.0
    %1796 = vmatprep.subr.mxu0 0.0
    %1797 = vmatpush1.msra.mxu0 0.0
    %1798 = vmatprep.subr.mxu0 0.0
    %1799 = vmatpush1.msra.mxu0 0.0
    %1800 = vmatprep.subr.mxu0 0.0
    %1801 = vmatpush1.msra.mxu0 0.0
    %1802 = vmatprep.subr.mxu0 0.0
    %1803 = vmatpush1.msra.mxu0 0.0
    %1804 = vmatprep.subr.mxu0 0.0
    %1805 = vmatpush1.msra.mxu0 0.0
    %1806 = vmatprep.subr.mxu0 0.0
    %1807 = vmatpush1.msra.mxu0 0.0
    %1808 = vmatprep.subr.mxu0 0.0
    %1809 = vmatpush1.msra.mxu0 0.0
    %1810 = vmatprep.subr.mxu0 0.0
    %1811 = vmatpush1.msra.mxu0 0.0
    %1812 = vmatprep.subr.mxu0 0.0
    %1813 = vmatpush1.msra.mxu0 0.0
    %1814 = vmatprep.subr.mxu0 0.0
    %1815 = vmatpush1.msra.mxu0 0.0
    %1816 = vmatprep.subr.mxu0 0.0
    %1817 = vmatpush1.msra.mxu0 0.0
    %1818 = vmatprep.subr.mxu0 0.0
    %1819 = vmatpush1.msra.mxu0 0.0
    %1820 = vmatprep.subr.mxu0 0.0
    %1821 = vmatpush1.msra.mxu0 0.0
    %1822 = vmatprep.subr.mxu0 0.0
    %1823 = vmatpush1.msra.mxu0 0.0
    %1824 = vmatprep.subr.mxu0 0.0
    %1825 = vmatpush1.msra.mxu0 0.0
    %1826 = vmatprep.mubr.f32.mxu0 0.0
    %1827 = vmatmul.mubr.f32.gmra.mrb[0].mxu0 %v1751
    %v1828 = vpop.f32.mrb[0].mxu0
    %v1829 = vadd.f32 %v1760, %v1828
    %v1830 = vpop.f32.mrb[0].mxu0
    %1831 = vdwg.mxu0
    %vm1832 = vcmp.ge.f32.partialorder %v1829, 0.0
    %v1833 = vmul.f32 %v1829, 0.01
    %v1834 = vsel %vm1832, %v1829, %v1833
    %v1835 = vld [vmem:[#allocation28] sm:$0xff]
    %v1836 = vld [vmem:[#allocation28 + $0x8] sm:$0xff]
    %v1837 = vld [vmem:[#allocation28 + $0x10] sm:$0xff]
    %v1838 = vld [vmem:[#allocation28 + $0x18] sm:$0xff]
    %v1839 = vld [vmem:[#allocation28 + $0x20] sm:$0xff]
    %v1840 = vld [vmem:[#allocation28 + $0x28] sm:$0xff]
    %v1841 = vld [vmem:[#allocation28 + $0x30] sm:$0xff]
    %v1842 = vld [vmem:[#allocation28 + $0x38] sm:$0xff]
    %v1843 = vld [vmem:[#allocation28 + $0x40] sm:$0xff]
    %v1844 = vld [vmem:[#allocation28 + $0x48] sm:$0xff]
    %v1845 = vld [vmem:[#allocation28 + $0x50] sm:$0xff]
    %v1846 = vld [vmem:[#allocation28 + $0x58] sm:$0xff]
    %v1847 = vld [vmem:[#allocation28 + $0x60] sm:$0xff]
    %v1848 = vld [vmem:[#allocation28 + $0x68] sm:$0xff]
    %v1849 = vld [vmem:[#allocation28 + $0x70] sm:$0xff]
    %v1850 = vld [vmem:[#allocation28 + $0x78] sm:$0xff]
    %v1851 = vld [vmem:[#allocation29] sm:$0xff]
    %v1852 = vld [vmem:[#allocation29 + $0x8] sm:$0xff]
    %v1853 = vld [vmem:[#allocation29 + $0x10] sm:$0xff]
    %v1854 = vld [vmem:[#allocation29 + $0x18] sm:$0xff]
    %v1855 = vld [vmem:[#allocation29 + $0x20] sm:$0xff]
    %v1856 = vld [vmem:[#allocation29 + $0x28] sm:$0xff]
    %v1857 = vld [vmem:[#allocation29 + $0x30] sm:$0xff]
    %v1858 = vld [vmem:[#allocation29 + $0x38] sm:$0xff]
    %v1859 = vld [vmem:[#allocation29 + $0x40] sm:$0xff]
    %v1860 = vld [vmem:[#allocation29 + $0x48] sm:$0xff]
    %v1861 = vld [vmem:[#allocation29 + $0x50] sm:$0xff]
    %v1862 = vld [vmem:[#allocation29 + $0x58] sm:$0xff]
    %v1863 = vld [vmem:[#allocation29 + $0x60] sm:$0xff]
    %v1864 = vld [vmem:[#allocation29 + $0x68] sm:$0xff]
    %v1865 = vld [vmem:[#allocation29 + $0x70] sm:$0xff]
    %v1866 = vld [vmem:[#allocation29 + $0x78] sm:$0xff]
    %v1867 = vld [vmem:[#allocation31] sm:$0xff]
    %v1868 = vld [vmem:[#allocation31 + $0x8] sm:$0xff]
    %v1869 = vld [vmem:[#allocation31 + $0x10] sm:$0xff]
    %v1870 = vld [vmem:[#allocation31 + $0x18] sm:$0xff]
    %v1871 = vld [vmem:[#allocation31 + $0x20] sm:$0xff]
    %v1872 = vld [vmem:[#allocation31 + $0x28] sm:$0xff]
    %v1873 = vld [vmem:[#allocation31 + $0x30] sm:$0xff]
    %v1874 = vld [vmem:[#allocation31 + $0x38] sm:$0xff]
    %v1875 = vld [vmem:[#allocation31 + $0x40] sm:$0xff]
    %v1876 = vld [vmem:[#allocation31 + $0x48] sm:$0xff]
    %v1877 = vld [vmem:[#allocation31 + $0x50] sm:$0xff]
    %v1878 = vld [vmem:[#allocation31 + $0x58] sm:$0xff]
    %v1879 = vld [vmem:[#allocation31 + $0x60] sm:$0xff]
    %v1880 = vld [vmem:[#allocation31 + $0x68] sm:$0xff]
    %v1881 = vld [vmem:[#allocation31 + $0x70] sm:$0xff]
    %v1882 = vld [vmem:[#allocation31 + $0x78] sm:$0xff]
    %v1883 = vld [vmem:[%s51] sm:$0xff]
    %v1884 = vld [vmem:[%s51 + $0x8] sm:$0xff]
    %v1885 = vld [vmem:[%s51 + $0x10] sm:$0xff]
    %v1886 = vld [vmem:[%s51 + $0x18] sm:$0xff]
    %v1887 = vld [vmem:[%s53] sm:$0x1]
    %v1888 = vld [vmem:[%s55] sm:$0x1]
    %v1889 = vsub.f32 %v1834, %v1035
    %1890 = vmatprep.subr.mxu0 0.0
    %1891 = vmatpush1.msra.mxu0 %v1851
    %1892 = vmatprep.subr.mxu0 0.0
    %1893 = vmatpush1.msra.mxu0 %v1852
    %1894 = vmatprep.subr.mxu0 0.0
    %1895 = vmatpush1.msra.mxu0 %v1853
    %1896 = vmatprep.subr.mxu0 0.0
    %1897 = vmatpush1.msra.mxu0 %v1854
    %1898 = vmatprep.subr.mxu0 0.0
    %1899 = vmatpush1.msra.mxu0 %v1855
    %1900 = vmatprep.subr.mxu0 0.0
    %1901 = vmatpush1.msra.mxu0 %v1856
    %1902 = vmatprep.subr.mxu0 0.0
    %1903 = vmatpush1.msra.mxu0 %v1857
    %1904 = vmatprep.subr.mxu0 0.0
    %1905 = vmatpush1.msra.mxu0 %v1858
    %1906 = vmatprep.subr.mxu0 0.0
    %1907 = vmatpush1.msra.mxu0 %v1859
    %1908 = vmatprep.subr.mxu0 0.0
    %1909 = vmatpush1.msra.mxu0 %v1860
    %1910 = vmatprep.subr.mxu0 0.0
    %1911 = vmatpush1.msra.mxu0 %v1861
    %1912 = vmatprep.subr.mxu0 0.0
    %1913 = vmatpush1.msra.mxu0 %v1862
    %1914 = vmatprep.subr.mxu0 0.0
    %1915 = vmatpush1.msra.mxu0 %v1863
    %1916 = vmatprep.subr.mxu0 0.0
    %1917 = vmatpush1.msra.mxu0 %v1864
    %1918 = vmatprep.subr.mxu0 0.0
    %1919 = vmatpush1.msra.mxu0 %v1865
    %1920 = vmatprep.subr.mxu0 0.0
    %1921 = vmatpush1.msra.mxu0 %v1866
    %1922 = vmatprep.subr.mxu0 0.0
    %1923 = vmatpush1.msra.mxu0 0.0
    %1924 = vmatprep.subr.mxu0 0.0
    %1925 = vmatpush1.msra.mxu0 0.0
    %1926 = vmatprep.subr.mxu0 0.0
    %1927 = vmatpush1.msra.mxu0 0.0
    %1928 = vmatprep.subr.mxu0 0.0
    %1929 = vmatpush1.msra.mxu0 0.0
    %1930 = vmatprep.subr.mxu0 0.0
    %1931 = vmatpush1.msra.mxu0 0.0
    %1932 = vmatprep.subr.mxu0 0.0
    %1933 = vmatpush1.msra.mxu0 0.0
    %1934 = vmatprep.subr.mxu0 0.0
    %1935 = vmatpush1.msra.mxu0 0.0
    %1936 = vmatprep.subr.mxu0 0.0
    %1937 = vmatpush1.msra.mxu0 0.0
    %1938 = vmatprep.subr.mxu0 0.0
    %1939 = vmatpush1.msra.mxu0 0.0
    %1940 = vmatprep.subr.mxu0 0.0
    %1941 = vmatpush1.msra.mxu0 0.0
    %1942 = vmatprep.subr.mxu0 0.0
    %1943 = vmatpush1.msra.mxu0 0.0
    %1944 = vmatprep.subr.mxu0 0.0
    %1945 = vmatpush1.msra.mxu0 0.0
    %1946 = vmatprep.subr.mxu0 0.0
    %1947 = vmatpush1.msra.mxu0 0.0
    %1948 = vmatprep.subr.mxu0 0.0
    %1949 = vmatpush1.msra.mxu0 0.0
    %1950 = vmatprep.subr.mxu0 0.0
    %1951 = vmatpush1.msra.mxu0 0.0
    %1952 = vmatprep.subr.mxu0 0.0
    %1953 = vmatpush1.msra.mxu0 0.0
    %1954 = vmatprep.mubr.f32.mxu0 0.0
    %1955 = vmatmul.mubr.f32.gmra.mrb[0].mxu0 %v1889
    %v1956 = vpop.f32.mrb[0].mxu0
    %v1957 = vadd.f32 0.0, %v1956
    %v1958 = vpop.f32.mrb[0].mxu0
    %1959 = vdwg.mxu0
    %1960 = vmatprep.subr.mxu0 0.0
    %1961 = vmatpush1.msra.mxu0 %v1835
    %1962 = vmatprep.subr.mxu0 0.0
    %1963 = vmatpush1.msra.mxu0 %v1836
    %1964 = vmatprep.subr.mxu0 0.0
    %1965 = vmatpush1.msra.mxu0 %v1837
    %1966 = vmatprep.subr.mxu0 0.0
    %1967 = vmatpush1.msra.mxu0 %v1838
    %1968 = vmatprep.subr.mxu0 0.0
    %1969 = vmatpush1.msra.mxu0 %v1839
    %1970 = vmatprep.subr.mxu0 0.0
    %1971 = vmatpush1.msra.mxu0 %v1840
    %1972 = vmatprep.subr.mxu0 0.0
    %1973 = vmatpush1.msra.mxu0 %v1841
    %1974 = vmatprep.subr.mxu0 0.0
    %1975 = vmatpush1.msra.mxu0 %v1842
    %1976 = vmatprep.subr.mxu0 0.0
    %1977 = vmatpush1.msra.mxu0 %v1843
    %1978 = vmatprep.subr.mxu0 0.0
    %1979 = vmatpush1.msra.mxu0 %v1844
    %1980 = vmatprep.subr.mxu0 0.0
    %1981 = vmatpush1.msra.mxu0 %v1845
    %1982 = vmatprep.subr.mxu0 0.0
    %1983 = vmatpush1.msra.mxu0 %v1846
    %1984 = vmatprep.subr.mxu0 0.0
    %1985 = vmatpush1.msra.mxu0 %v1847
    %1986 = vmatprep.subr.mxu0 0.0
    %1987 = vmatpush1.msra.mxu0 %v1848
    %1988 = vmatprep.subr.mxu0 0.0
    %1989 = vmatpush1.msra.mxu0 %v1849
    %1990 = vmatprep.subr.mxu0 0.0
    %1991 = vmatpush1.msra.mxu0 %v1850
    %1992 = vmatprep.subr.mxu0 0.0
    %1993 = vmatpush1.msra.mxu0 0.0
    %1994 = vmatprep.subr.mxu0 0.0
    %1995 = vmatpush1.msra.mxu0 0.0
    %1996 = vmatprep.subr.mxu0 0.0
    %1997 = vmatpush1.msra.mxu0 0.0
    %1998 = vmatprep.subr.mxu0 0.0
    %1999 = vmatpush1.msra.mxu0 0.0
    %2000 = vmatprep.subr.mxu0 0.0
    %2001 = vmatpush1.msra.mxu0 0.0
    %2002 = vmatprep.subr.mxu0 0.0
    %2003 = vmatpush1.msra.mxu0 0.0
    %2004 = vmatprep.subr.mxu0 0.0
    %2005 = vmatpush1.msra.mxu0 0.0
    %2006 = vmatprep.subr.mxu0 0.0
    %2007 = vmatpush1.msra.mxu0 0.0
    %2008 = vmatprep.subr.mxu0 0.0
    %2009 = vmatpush1.msra.mxu0 0.0
    %2010 = vmatprep.subr.mxu0 0.0
    %2011 = vmatpush1.msra.mxu0 0.0
    %2012 = vmatprep.subr.mxu0 0.0
    %2013 = vmatpush1.msra.mxu0 0.0
    %2014 = vmatprep.subr.mxu0 0.0
    %2015 = vmatpush1.msra.mxu0 0.0
    %2016 = vmatprep.subr.mxu0 0.0
    %2017 = vmatpush1.msra.mxu0 0.0
    %2018 = vmatprep.subr.mxu0 0.0
    %2019 = vmatpush1.msra.mxu0 0.0
    %2020 = vmatprep.subr.mxu0 0.0
    %2021 = vmatpush1.msra.mxu0 0.0
    %2022 = vmatprep.subr.mxu0 0.0
    %2023 = vmatpush1.msra.mxu0 0.0
    %2024 = vmatprep.mubr.f32.mxu0 0.0
    %2025 = vmatmul.mubr.f32.gmra.mrb[0].mxu0 %v1834
    %v2026 = vpop.f32.mrb[0].mxu0
    %v2027 = vadd.f32 %v1957, %v2026
    %v2028 = vpop.f32.mrb[0].mxu0
    %2029 = vdwg.mxu0
    %v2030 = vmul.f32 %v1834, %v1035
    %2031 = vmatprep.subr.mxu0 0.0
    %2032 = vmatpush1.msra.mxu0 %v1867
    %2033 = vmatprep.subr.mxu0 0.0
    %2034 = vmatpush1.msra.mxu0 %v1868
    %2035 = vmatprep.subr.mxu0 0.0
    %2036 = vmatpush1.msra.mxu0 %v1869
    %2037 = vmatprep.subr.mxu0 0.0
    %2038 = vmatpush1.msra.mxu0 %v1870
    %2039 = vmatprep.subr.mxu0 0.0
    %2040 = vmatpush1.msra.mxu0 %v1871
    %2041 = vmatprep.subr.mxu0 0.0
    %2042 = vmatpush1.msra.mxu0 %v1872
    %2043 = vmatprep.subr.mxu0 0.0
    %2044 = vmatpush1.msra.mxu0 %v1873
    %2045 = vmatprep.subr.mxu0 0.0
    %2046 = vmatpush1.msra.mxu0 %v1874
    %2047 = vmatprep.subr.mxu0 0.0
    %2048 = vmatpush1.msra.mxu0 %v1875
    %2049 = vmatprep.subr.mxu0 0.0
    %2050 = vmatpush1.msra.mxu0 %v1876
    %2051 = vmatprep.subr.mxu0 0.0
    %2052 = vmatpush1.msra.mxu0 %v1877
    %2053 = vmatprep.subr.mxu0 0.0
    %2054 = vmatpush1.msra.mxu0 %v1878
    %2055 = vmatprep.subr.mxu0 0.0
    %2056 = vmatpush1.msra.mxu0 %v1879
    %2057 = vmatprep.subr.mxu0 0.0
    %2058 = vmatpush1.msra.mxu0 %v1880
    %2059 = vmatprep.subr.mxu0 0.0
    %2060 = vmatpush1.msra.mxu0 %v1881
    %2061 = vmatprep.subr.mxu0 0.0
    %2062 = vmatpush1.msra.mxu0 %v1882
    %2063 = vmatprep.subr.mxu0 0.0
    %2064 = vmatpush1.msra.mxu0 0.0
    %2065 = vmatprep.subr.mxu0 0.0
    %2066 = vmatpush1.msra.mxu0 0.0
    %2067 = vmatprep.subr.mxu0 0.0
    %2068 = vmatpush1.msra.mxu0 0.0
    %2069 = vmatprep.subr.mxu0 0.0
    %2070 = vmatpush1.msra.mxu0 0.0
    %2071 = vmatprep.subr.mxu0 0.0
    %2072 = vmatpush1.msra.mxu0 0.0
    %2073 = vmatprep.subr.mxu0 0.0
    %2074 = vmatpush1.msra.mxu0 0.0
    %2075 = vmatprep.subr.mxu0 0.0
    %2076 = vmatpush1.msra.mxu0 0.0
    %2077 = vmatprep.subr.mxu0 0.0
    %2078 = vmatpush1.msra.mxu0 0.0
    %2079 = vmatprep.subr.mxu0 0.0
    %2080 = vmatpush1.msra.mxu0 0.0
    %2081 = vmatprep.subr.mxu0 0.0
    %2082 = vmatpush1.msra.mxu0 0.0
    %2083 = vmatprep.subr.mxu0 0.0
    %2084 = vmatpush1.msra.mxu0 0.0
    %2085 = vmatprep.subr.mxu0 0.0
    %2086 = vmatpush1.msra.mxu0 0.0
    %2087 = vmatprep.subr.mxu0 0.0
    %2088 = vmatpush1.msra.mxu0 0.0
    %2089 = vmatprep.subr.mxu0 0.0
    %2090 = vmatpush1.msra.mxu0 0.0
    %2091 = vmatprep.subr.mxu0 0.0
    %2092 = vmatpush1.msra.mxu0 0.0
    %2093 = vmatprep.subr.mxu0 0.0
    %2094 = vmatpush1.msra.mxu0 0.0
    %2095 = vmatprep.mubr.f32.mxu0 0.0
    %2096 = vmatmul.mubr.f32.gmra.mrb[0].mxu0 %v2030
    %v2097 = vpop.f32.mrb[0].mxu0
    %v2098 = vadd.f32 0.0, %v2097
    %v2099 = vpop.f32.mrb[0].mxu0
    %2100 = vdwg.mxu0
    %v2101 = vadd.f32 %v2027, %v2098
    %v2103 = vlaneseq
    %v2104 = vshrl.u32 %v2103, 7
    %v2105 = vsub.s32 0, %v2104
    %v2106 = vrot.slane %v1887, %v2105
    %v2108 = vadd.f32 %v2101, %v2106
    %v2110 = vlaneseq
    %v2111 = vshrl.u32 %v2110, 7
    %v2112 = vsub.s32 0, %v2111
    %v2113 = vrot.slane %v1888, %v2112
    %vm2115 = vcmask 261120
    %v2117 = vsel %vm2115, 0.0, 0
    %2119 = vmatprep.subr.mxu0 0.0
    %2120 = vmatpush1.msra.mxu0 %v1883
    %2121 = vmatprep.subr.mxu0 0.0
    %2122 = vmatpush1.msra.mxu0 %v1884
    %2123 = vmatprep.subr.mxu0 0.0
    %2124 = vmatpush1.msra.mxu0 %v1885
    %2125 = vmatprep.subr.mxu0 0.0
    %2126 = vmatpush1.msra.mxu0 %v1886
    %2127 = vmatprep.subr.mxu0 0.0
    %2128 = vmatpush1.msra.mxu0 0.0
    %2129 = vmatprep.subr.mxu0 0.0
    %2130 = vmatpush1.msra.mxu0 0.0
    %2131 = vmatprep.subr.mxu0 0.0
    %2132 = vmatpush1.msra.mxu0 0.0
    %2133 = vmatprep.subr.mxu0 0.0
    %2134 = vmatpush1.msra.mxu0 0.0
    %2135 = vmatprep.subr.mxu0 0.0
    %2136 = vmatpush1.msra.mxu0 0.0
    %2137 = vmatprep.subr.mxu0 0.0
    %2138 = vmatpush1.msra.mxu0 0.0
    %2139 = vmatprep.subr.mxu0 0.0
    %2140 = vmatpush1.msra.mxu0 0.0
    %2141 = vmatprep.subr.mxu0 0.0
    %2142 = vmatpush1.msra.mxu0 0.0
    %2143 = vmatprep.subr.mxu0 0.0
    %2144 = vmatpush1.msra.mxu0 0.0
    %2145 = vmatprep.subr.mxu0 0.0
    %2146 = vmatpush1.msra.mxu0 0.0
    %2147 = vmatprep.subr.mxu0 0.0
    %2148 = vmatpush1.msra.mxu0 0.0
    %2149 = vmatprep.subr.mxu0 0.0
    %2150 = vmatpush1.msra.mxu0 0.0
    %2151 = vmatprep.subr.mxu0 0.0
    %2152 = vmatpush1.msra.mxu0 0.0
    %2153 = vmatprep.subr.mxu0 0.0
    %2154 = vmatpush1.msra.mxu0 0.0
    %2155 = vmatprep.subr.mxu0 0.0
    %2156 = vmatpush1.msra.mxu0 0.0
    %2157 = vmatprep.subr.mxu0 0.0
    %2158 = vmatpush1.msra.mxu0 0.0
    %2159 = vmatprep.subr.mxu0 0.0
    %2160 = vmatpush1.msra.mxu0 0.0
    %2161 = vmatprep.subr.mxu0 0.0
    %2162 = vmatpush1.msra.mxu0 0.0
    %2163 = vmatprep.subr.mxu0 0.0
    %2164 = vmatpush1.msra.mxu0 0.0
    %2165 = vmatprep.subr.mxu0 0.0
    %2166 = vmatpush1.msra.mxu0 0.0
    %2167 = vmatprep.subr.mxu0 0.0
    %2168 = vmatpush1.msra.mxu0 0.0
    %2169 = vmatprep.subr.mxu0 0.0
    %2170 = vmatpush1.msra.mxu0 0.0
    %2171 = vmatprep.subr.mxu0 0.0
    %2172 = vmatpush1.msra.mxu0 0.0
    %2173 = vmatprep.subr.mxu0 0.0
    %2174 = vmatpush1.msra.mxu0 0.0
    %2175 = vmatprep.subr.mxu0 0.0
    %2176 = vmatpush1.msra.mxu0 0.0
    %2177 = vmatprep.subr.mxu0 0.0
    %2178 = vmatpush1.msra.mxu0 0.0
    %2179 = vmatprep.subr.mxu0 0.0
    %2180 = vmatpush1.msra.mxu0 0.0
    %2181 = vmatprep.subr.mxu0 0.0
    %2182 = vmatpush1.msra.mxu0 0.0
    %2183 = vmatprep.mubr.f32.mxu0 0.0
    %2184 = vmatmul.mubr.f32.gmra.mrb[0].mxu0 %v2117
    %v2185 = vpop.f32.mrb[0].mxu0
    %v2186 = vadd.f32 %v2113, %v2185
    %v2187 = vpop.f32.mrb[0].mxu0
    %2188 = vdwg.mxu0
    %v2189 = vadd.f32 %v2108, %v2186
    %v2190 = vxor.u32 %v2189, 2147483648
    %v2191 = vmul.f32 %v2190, 1.442695
    %v2192 = vpow.pop %v2191
    %v2193 = vadd.f32 %v2192, 1.0
    %v2194 = vrcp.pop %v2193
    %v2195 = vmul.f32 1.0, %v2194
    %2197 = vrot.lane.b32.xlu0 %v2186, 64
    %v2198 = vpop.permute.xlu0 %2197
    %v2200 = vmul.f32 %v2195, %v2198
    %2202 = vrot.lane.b32.xlu0 %v2200, 64
    %v2203 = vpop.permute.xlu0 %2202
    %v2205 = vadd.f32 %v2108, %v2203
    %v2206 = vtanh.pop %v2205
    %v2207 = vsub.f32 1.0, %v2195
    %2209 = vrot.lane.b32.xlu0 %v2206, 96
    %v2210 = vpop.permute.xlu0 %2209
    %v2212 = vmul.f32 %v2207, %v2210
    %v2213 = vmul.f32 %v2195, 0.0
    %v2214 = vadd.f32 %v2212, %v2213
    %v2216 = vrot.slane %v1035, 6
    %v2218 = vsub.f32 %v1834, %v2216
    %v2220 = vrot.slane %v2218, 2
    %2222 = vmatprep.subr.mxu0 0.0
    %2223 = vmatpush1.msra.mxu0 %v1851
    %2224 = vmatprep.subr.mxu0 0.0
    %2225 = vmatpush1.msra.mxu0 %v1852
    %2226 = vmatprep.subr.mxu0 0.0
    %2227 = vmatpush1.msra.mxu0 %v1853
    %2228 = vmatprep.subr.mxu0 0.0
    %2229 = vmatpush1.msra.mxu0 %v1854
    %2230 = vmatprep.subr.mxu0 0.0
    %2231 = vmatpush1.msra.mxu0 %v1855
    %2232 = vmatprep.subr.mxu0 0.0
    %2233 = vmatpush1.msra.mxu0 %v1856
    %2234 = vmatprep.subr.mxu0 0.0
    %2235 = vmatpush1.msra.mxu0 %v1857
    %2236 = vmatprep.subr.mxu0 0.0
    %2237 = vmatpush1.msra.mxu0 %v1858
    %2238 = vmatprep.subr.mxu0 0.0
    %2239 = vmatpush1.msra.mxu0 %v1859
    %2240 = vmatprep.subr.mxu0 0.0
    %2241 = vmatpush1.msra.mxu0 %v1860
    %2242 = vmatprep.subr.mxu0 0.0
    %2243 = vmatpush1.msra.mxu0 %v1861
    %2244 = vmatprep.subr.mxu0 0.0
    %2245 = vmatpush1.msra.mxu0 %v1862
    %2246 = vmatprep.subr.mxu0 0.0
    %2247 = vmatpush1.msra.mxu0 %v1863
    %2248 = vmatprep.subr.mxu0 0.0
    %2249 = vmatpush1.msra.mxu0 %v1864
    %2250 = vmatprep.subr.mxu0 0.0
    %2251 = vmatpush1.msra.mxu0 %v1865
    %2252 = vmatprep.subr.mxu0 0.0
    %2253 = vmatpush1.msra.mxu0 %v1866
    %2254 = vmatprep.subr.mxu0 0.0
    %2255 = vmatpush1.msra.mxu0 0.0
    %2256 = vmatprep.subr.mxu0 0.0
    %2257 = vmatpush1.msra.mxu0 0.0
    %2258 = vmatprep.subr.mxu0 0.0
    %2259 = vmatpush1.msra.mxu0 0.0
    %2260 = vmatprep.subr.mxu0 0.0
    %2261 = vmatpush1.msra.mxu0 0.0
    %2262 = vmatprep.subr.mxu0 0.0
    %2263 = vmatpush1.msra.mxu0 0.0
    %2264 = vmatprep.subr.mxu0 0.0
    %2265 = vmatpush1.msra.mxu0 0.0
    %2266 = vmatprep.subr.mxu0 0.0
    %2267 = vmatpush1.msra.mxu0 0.0
    %2268 = vmatprep.subr.mxu0 0.0
    %2269 = vmatpush1.msra.mxu0 0.0
    %2270 = vmatprep.subr.mxu0 0.0
    %2271 = vmatpush1.msra.mxu0 0.0
    %2272 = vmatprep.subr.mxu0 0.0
    %2273 = vmatpush1.msra.mxu0 0.0
    %2274 = vmatprep.subr.mxu0 0.0
    %2275 = vmatpush1.msra.mxu0 0.0
    %2276 = vmatprep.subr.mxu0 0.0
    %2277 = vmatpush1.msra.mxu0 0.0
    %2278 = vmatprep.subr.mxu0 0.0
    %2279 = vmatpush1.msra.mxu0 0.0
    %2280 = vmatprep.subr.mxu0 0.0
    %2281 = vmatpush1.msra.mxu0 0.0
    %2282 = vmatprep.subr.mxu0 0.0
    %2283 = vmatpush1.msra.mxu0 0.0
    %2284 = vmatprep.subr.mxu0 0.0
    %2285 = vmatpush1.msra.mxu0 0.0
    %2286 = vmatprep.mubr.f32.mxu0 0.0
    %2287 = vmatmul.mubr.f32.gmra.mrb[0].mxu0 %v2220
    %v2288 = vpop.f32.mrb[0].mxu0
    %v2289 = vadd.f32 0.0, %v2288
    %v2290 = vpop.f32.mrb[0].mxu0
    %2291 = vdwg.mxu0
    %v2293 = vrot.slane %v1834, 2
    %2295 = vmatprep.subr.mxu0 0.0
    %2296 = vmatpush1.msra.mxu0 %v1835
    %2297 = vmatprep.subr.mxu0 0.0
    %2298 = vmatpush1.msra.mxu0 %v1836
    %2299 = vmatprep.subr.mxu0 0.0
    %2300 = vmatpush1.msra.mxu0 %v1837
    %2301 = vmatprep.subr.mxu0 0.0
    %2302 = vmatpush1.msra.mxu0 %v1838
    %2303 = vmatprep.subr.mxu0 0.0
    %2304 = vmatpush1.msra.mxu0 %v1839
    %2305 = vmatprep.subr.mxu0 0.0
    %2306 = vmatpush1.msra.mxu0 %v1840
    %2307 = vmatprep.subr.mxu0 0.0
    %2308 = vmatpush1.msra.mxu0 %v1841
    %2309 = vmatprep.subr.mxu0 0.0
    %2310 = vmatpush1.msra.mxu0 %v1842
    %2311 = vmatprep.subr.mxu0 0.0
    %2312 = vmatpush1.msra.mxu0 %v1843
    %2313 = vmatprep.subr.mxu0 0.0
    %2314 = vmatpush1.msra.mxu0 %v1844
    %2315 = vmatprep.subr.mxu0 0.0
    %2316 = vmatpush1.msra.mxu0 %v1845
    %2317 = vmatprep.subr.mxu0 0.0
    %2318 = vmatpush1.msra.mxu0 %v1846
    %2319 = vmatprep.subr.mxu0 0.0
    %2320 = vmatpush1.msra.mxu0 %v1847
    %2321 = vmatprep.subr.mxu0 0.0
    %2322 = vmatpush1.msra.mxu0 %v1848
    %2323 = vmatprep.subr.mxu0 0.0
    %2324 = vmatpush1.msra.mxu0 %v1849
    %2325 = vmatprep.subr.mxu0 0.0
    %2326 = vmatpush1.msra.mxu0 %v1850
    %2327 = vmatprep.subr.mxu0 0.0
    %2328 = vmatpush1.msra.mxu0 0.0
    %2329 = vmatprep.subr.mxu0 0.0
    %2330 = vmatpush1.msra.mxu0 0.0
    %2331 = vmatprep.subr.mxu0 0.0
    %2332 = vmatpush1.msra.mxu0 0.0
    %2333 = vmatprep.subr.mxu0 0.0
    %2334 = vmatpush1.msra.mxu0 0.0
    %2335 = vmatprep.subr.mxu0 0.0
    %2336 = vmatpush1.msra.mxu0 0.0
    %2337 = vmatprep.subr.mxu0 0.0
    %2338 = vmatpush1.msra.mxu0 0.0
    %2339 = vmatprep.subr.mxu0 0.0
    %2340 = vmatpush1.msra.mxu0 0.0
    %2341 = vmatprep.subr.mxu0 0.0
    %2342 = vmatpush1.msra.mxu0 0.0
    %2343 = vmatprep.subr.mxu0 0.0
    %2344 = vmatpush1.msra.mxu0 0.0
    %2345 = vmatprep.subr.mxu0 0.0
    %2346 = vmatpush1.msra.mxu0 0.0
    %2347 = vmatprep.subr.mxu0 0.0
    %2348 = vmatpush1.msra.mxu0 0.0
    %2349 = vmatprep.subr.mxu0 0.0
    %2350 = vmatpush1.msra.mxu0 0.0
    %2351 = vmatprep.subr.mxu0 0.0
    %2352 = vmatpush1.msra.mxu0 0.0
    %2353 = vmatprep.subr.mxu0 0.0
    %2354 = vmatpush1.msra.mxu0 0.0
    %2355 = vmatprep.subr.mxu0 0.0
    %2356 = vmatpush1.msra.mxu0 0.0
    %2357 = vmatprep.subr.mxu0 0.0
    %2358 = vmatpush1.msra.mxu0 0.0
    %2359 = vmatprep.mubr.f32.mxu0 0.0
    %2360 = vmatmul.mubr.f32.gmra.mrb[0].mxu0 %v2293
    %v2361 = vpop.f32.mrb[0].mxu0
    %v2362 = vadd.f32 %v2289, %v2361
    %v2363 = vpop.f32.mrb[0].mxu0
    %2364 = vdwg.mxu0
    %v2365 = vmul.f32 %v1834, %v2216
    %v2367 = vrot.slane %v2365, 2
    %2369 = vmatprep.subr.mxu0 0.0
    %2370 = vmatpush1.msra.mxu0 %v1867
    %2371 = vmatprep.subr.mxu0 0.0
    %2372 = vmatpush1.msra.mxu0 %v1868
    %2373 = vmatprep.subr.mxu0 0.0
    %2374 = vmatpush1.msra.mxu0 %v1869
    %2375 = vmatprep.subr.mxu0 0.0
    %2376 = vmatpush1.msra.mxu0 %v1870
    %2377 = vmatprep.subr.mxu0 0.0
    %2378 = vmatpush1.msra.mxu0 %v1871
    %2379 = vmatprep.subr.mxu0 0.0
    %2380 = vmatpush1.msra.mxu0 %v1872
    %2381 = vmatprep.subr.mxu0 0.0
    %2382 = vmatpush1.msra.mxu0 %v1873
    %2383 = vmatprep.subr.mxu0 0.0
    %2384 = vmatpush1.msra.mxu0 %v1874
    %2385 = vmatprep.subr.mxu0 0.0
    %2386 = vmatpush1.msra.mxu0 %v1875
    %2387 = vmatprep.subr.mxu0 0.0
    %2388 = vmatpush1.msra.mxu0 %v1876
    %2389 = vmatprep.subr.mxu0 0.0
    %2390 = vmatpush1.msra.mxu0 %v1877
    %2391 = vmatprep.subr.mxu0 0.0
    %2392 = vmatpush1.msra.mxu0 %v1878
    %2393 = vmatprep.subr.mxu0 0.0
    %2394 = vmatpush1.msra.mxu0 %v1879
    %2395 = vmatprep.subr.mxu0 0.0
    %2396 = vmatpush1.msra.mxu0 %v1880
    %2397 = vmatprep.subr.mxu0 0.0
    %2398 = vmatpush1.msra.mxu0 %v1881
    %2399 = vmatprep.subr.mxu0 0.0
    %2400 = vmatpush1.msra.mxu0 %v1882
    %2401 = vmatprep.subr.mxu0 0.0
    %2402 = vmatpush1.msra.mxu0 0.0
    %2403 = vmatprep.subr.mxu0 0.0
    %2404 = vmatpush1.msra.mxu0 0.0
    %2405 = vmatprep.subr.mxu0 0.0
    %2406 = vmatpush1.msra.mxu0 0.0
    %2407 = vmatprep.subr.mxu0 0.0
    %2408 = vmatpush1.msra.mxu0 0.0
    %2409 = vmatprep.subr.mxu0 0.0
    %2410 = vmatpush1.msra.mxu0 0.0
    %2411 = vmatprep.subr.mxu0 0.0
    %2412 = vmatpush1.msra.mxu0 0.0
    %2413 = vmatprep.subr.mxu0 0.0
    %2414 = vmatpush1.msra.mxu0 0.0
    %2415 = vmatprep.subr.mxu0 0.0
    %2416 = vmatpush1.msra.mxu0 0.0
    %2417 = vmatprep.subr.mxu0 0.0
    %2418 = vmatpush1.msra.mxu0 0.0
    %2419 = vmatprep.subr.mxu0 0.0
    %2420 = vmatpush1.msra.mxu0 0.0
    %2421 = vmatprep.subr.mxu0 0.0
    %2422 = vmatpush1.msra.mxu0 0.0
    %2423 = vmatprep.subr.mxu0 0.0
    %2424 = vmatpush1.msra.mxu0 0.0
    %2425 = vmatprep.subr.mxu0 0.0
    %2426 = vmatpush1.msra.mxu0 0.0
    %2427 = vmatprep.subr.mxu0 0.0
    %2428 = vmatpush1.msra.mxu0 0.0
    %2429 = vmatprep.subr.mxu0 0.0
    %2430 = vmatpush1.msra.mxu0 0.0
    %2431 = vmatprep.subr.mxu0 0.0
    %2432 = vmatpush1.msra.mxu0 0.0
    %2433 = vmatprep.mubr.f32.mxu0 0.0
    %2434 = vmatmul.mubr.f32.gmra.mrb[0].mxu0 %v2367
    %v2435 = vpop.f32.mrb[0].mxu0
    %v2436 = vadd.f32 0.0, %v2435
    %v2437 = vpop.f32.mrb[0].mxu0
    %2438 = vdwg.mxu0
    %v2439 = vadd.f32 %v2362, %v2436
    %v2440 = vadd.f32 %v2439, %v2106
    %2442 = vrot.lane.b32.xlu0 %v2214, 96
    %v2443 = vpop.permute.xlu0 %2442
    %v2444 = vsel %vm2115, %v2443, 0
    %2446 = vmatprep.subr.mxu0 0.0
    %2447 = vmatpush1.msra.mxu0 %v1883
    %2448 = vmatprep.subr.mxu0 0.0
    %2449 = vmatpush1.msra.mxu0 %v1884
    %2450 = vmatprep.subr.mxu0 0.0
    %2451 = vmatpush1.msra.mxu0 %v1885
    %2452 = vmatprep.subr.mxu0 0.0
    %2453 = vmatpush1.msra.mxu0 %v1886
    %2454 = vmatprep.subr.mxu0 0.0
    %2455 = vmatpush1.msra.mxu0 0.0
    %2456 = vmatprep.subr.mxu0 0.0
    %2457 = vmatpush1.msra.mxu0 0.0
    %2458 = vmatprep.subr.mxu0 0.0
    %2459 = vmatpush1.msra.mxu0 0.0
    %2460 = vmatprep.subr.mxu0 0.0
    %2461 = vmatpush1.msra.mxu0 0.0
    %2462 = vmatprep.subr.mxu0 0.0
    %2463 = vmatpush1.msra.mxu0 0.0
    %2464 = vmatprep.subr.mxu0 0.0
    %2465 = vmatpush1.msra.mxu0 0.0
    %2466 = vmatprep.subr.mxu0 0.0
    %2467 = vmatpush1.msra.mxu0 0.0
    %2468 = vmatprep.subr.mxu0 0.0
    %2469 = vmatpush1.msra.mxu0 0.0
    %2470 = vmatprep.subr.mxu0 0.0
    %2471 = vmatpush1.msra.mxu0 0.0
    %2472 = vmatprep.subr.mxu0 0.0
    %2473 = vmatpush1.msra.mxu0 0.0
    %2474 = vmatprep.subr.mxu0 0.0
    %2475 = vmatpush1.msra.mxu0 0.0
    %2476 = vmatprep.subr.mxu0 0.0
    %2477 = vmatpush1.msra.mxu0 0.0
    %2478 = vmatprep.subr.mxu0 0.0
    %2479 = vmatpush1.msra.mxu0 0.0
    %2480 = vmatprep.subr.mxu0 0.0
    %2481 = vmatpush1.msra.mxu0 0.0
    %2482 = vmatprep.subr.mxu0 0.0
    %2483 = vmatpush1.msra.mxu0 0.0
    %2484 = vmatprep.subr.mxu0 0.0
    %2485 = vmatpush1.msra.mxu0 0.0
    %2486 = vmatprep.subr.mxu0 0.0
    %2487 = vmatpush1.msra.mxu0 0.0
    %2488 = vmatprep.subr.mxu0 0.0
    %2489 = vmatpush1.msra.mxu0 0.0
    %2490 = vmatprep.subr.mxu0 0.0
    %2491 = vmatpush1.msra.mxu0 0.0
    %2492 = vmatprep.subr.mxu0 0.0
    %2493 = vmatpush1.msra.mxu0 0.0
    %2494 = vmatprep.subr.mxu0 0.0
    %2495 = vmatpush1.msra.mxu0 0.0
    %2496 = vmatprep.subr.mxu0 0.0
    %2497 = vmatpush1.msra.mxu0 0.0
    %2498 = vmatprep.subr.mxu0 0.0
    %2499 = vmatpush1.msra.mxu0 0.0
    %2500 = vmatprep.subr.mxu0 0.0
    %2501 = vmatpush1.msra.mxu0 0.0
    %2502 = vmatprep.subr.mxu0 0.0
    %2503 = vmatpush1.msra.mxu0 0.0
    %2504 = vmatprep.subr.mxu0 0.0
    %2505 = vmatpush1.msra.mxu0 0.0
    %2506 = vmatprep.subr.mxu0 0.0
    %2507 = vmatpush1.msra.mxu0 0.0
    %2508 = vmatprep.subr.mxu0 0.0
    %2509 = vmatpush1.msra.mxu0 0.0
    %2510 = vmatprep.mubr.f32.mxu0 0.0
    %2511 = vmatmul.mubr.f32.gmra.mrb[0].mxu0 %v2444
    %v2512 = vpop.f32.mrb[0].mxu0
    %v2513 = vadd.f32 %v2113, %v2512
    %v2514 = vpop.f32.mrb[0].mxu0
    %2515 = vdwg.mxu0
    %v2516 = vadd.f32 %v2440, %v2513
    %v2517 = vxor.u32 %v2516, 2147483648
    %v2518 = vmul.f32 %v2517, 1.442695
    %v2519 = vpow.pop %v2518
    %v2520 = vadd.f32 %v2519, 1.0
    %v2521 = vrcp.pop %v2520
    %v2522 = vmul.f32 1.0, %v2521
    %2524 = vrot.lane.b32.xlu0 %v2513, 64
    %v2525 = vpop.permute.xlu0 %2524
    %v2527 = vmul.f32 %v2522, %v2525
    %2529 = vrot.lane.b32.xlu0 %v2527, 64
    %v2530 = vpop.permute.xlu0 %2529
    %v2532 = vadd.f32 %v2440, %v2530
    %v2533 = vtanh.pop %v2532
    %v2534 = vsub.f32 1.0, %v2522
    %2536 = vrot.lane.b32.xlu0 %v2533, 96
    %v2537 = vpop.permute.xlu0 %2536
    %v2539 = vmul.f32 %v2534, %v2537
    %v2540 = vmul.f32 %v2522, %v2214
    %v2541 = vadd.f32 %v2539, %v2540
    %v2542 = vrot.slane %v1035, 4
    %v2544 = vsub.f32 %v1834, %v2542
    %v2546 = vrot.slane %v2544, 4
    %2548 = vmatprep.subr.mxu0 0.0
    %2549 = vmatpush1.msra.mxu0 %v1851
    %2550 = vmatprep.subr.mxu0 0.0
    %2551 = vmatpush1.msra.mxu0 %v1852
    %2552 = vmatprep.subr.mxu0 0.0
    %2553 = vmatpush1.msra.mxu0 %v1853
    %2554 = vmatprep.subr.mxu0 0.0
    %2555 = vmatpush1.msra.mxu0 %v1854
    %2556 = vmatprep.subr.mxu0 0.0
    %2557 = vmatpush1.msra.mxu0 %v1855
    %2558 = vmatprep.subr.mxu0 0.0
    %2559 = vmatpush1.msra.mxu0 %v1856
    %2560 = vmatprep.subr.mxu0 0.0
    %2561 = vmatpush1.msra.mxu0 %v1857
    %2562 = vmatprep.subr.mxu0 0.0
    %2563 = vmatpush1.msra.mxu0 %v1858
    %2564 = vmatprep.subr.mxu0 0.0
    %2565 = vmatpush1.msra.mxu0 %v1859
    %2566 = vmatprep.subr.mxu0 0.0
    %2567 = vmatpush1.msra.mxu0 %v1860
    %2568 = vmatprep.subr.mxu0 0.0
    %2569 = vmatpush1.msra.mxu0 %v1861
    %2570 = vmatprep.subr.mxu0 0.0
    %2571 = vmatpush1.msra.mxu0 %v1862
    %2572 = vmatprep.subr.mxu0 0.0
    %2573 = vmatpush1.msra.mxu0 %v1863
    %2574 = vmatprep.subr.mxu0 0.0
    %2575 = vmatpush1.msra.mxu0 %v1864
    %2576 = vmatprep.subr.mxu0 0.0
    %2577 = vmatpush1.msra.mxu0 %v1865
    %2578 = vmatprep.subr.mxu0 0.0
    %2579 = vmatpush1.msra.mxu0 %v1866
    %2580 = vmatprep.subr.mxu0 0.0
    %2581 = vmatpush1.msra.mxu0 0.0
    %2582 = vmatprep.subr.mxu0 0.0
    %2583 = vmatpush1.msra.mxu0 0.0
    %2584 = vmatprep.subr.mxu0 0.0
    %2585 = vmatpush1.msra.mxu0 0.0
    %2586 = vmatprep.subr.mxu0 0.0
    %2587 = vmatpush1.msra.mxu0 0.0
    %2588 = vmatprep.subr.mxu0 0.0
    %2589 = vmatpush1.msra.mxu0 0.0
    %2590 = vmatprep.subr.mxu0 0.0
    %2591 = vmatpush1.msra.mxu0 0.0
    %2592 = vmatprep.subr.mxu0 0.0
    %2593 = vmatpush1.msra.mxu0 0.0
    %2594 = vmatprep.subr.mxu0 0.0
    %2595 = vmatpush1.msra.mxu0 0.0
    %2596 = vmatprep.subr.mxu0 0.0
    %2597 = vmatpush1.msra.mxu0 0.0
    %2598 = vmatprep.subr.mxu0 0.0
    %2599 = vmatpush1.msra.mxu0 0.0
    %2600 = vmatprep.subr.mxu0 0.0
    %2601 = vmatpush1.msra.mxu0 0.0
    %2602 = vmatprep.subr.mxu0 0.0
    %2603 = vmatpush1.msra.mxu0 0.0
    %2604 = vmatprep.subr.mxu0 0.0
    %2605 = vmatpush1.msra.mxu0 0.0
    %2606 = vmatprep.subr.mxu0 0.0
    %2607 = vmatpush1.msra.mxu0 0.0
    %2608 = vmatprep.subr.mxu0 0.0
    %2609 = vmatpush1.msra.mxu0 0.0
    %2610 = vmatprep.subr.mxu0 0.0
    %2611 = vmatpush1.msra.mxu0 0.0
    %2612 = vmatprep.mubr.f32.mxu0 0.0
    %2613 = vmatmul.mubr.f32.gmra.mrb[0].mxu0 %v2546
    %v2614 = vpop.f32.mrb[0].mxu0
    %v2615 = vadd.f32 0.0, %v2614
    %v2616 = vpop.f32.mrb[0].mxu0
    %2617 = vdwg.mxu0
    %v2618 = vrot.slane %v1834, 4
    %2620 = vmatprep.subr.mxu0 0.0
    %2621 = vmatpush1.msra.mxu0 %v1835
    %2622 = vmatprep.subr.mxu0 0.0
    %2623 = vmatpush1.msra.mxu0 %v1836
    %2624 = vmatprep.subr.mxu0 0.0
    %2625 = vmatpush1.msra.mxu0 %v1837
    %2626 = vmatprep.subr.mxu0 0.0
    %2627 = vmatpush1.msra.mxu0 %v1838
    %2628 = vmatprep.subr.mxu0 0.0
    %2629 = vmatpush1.msra.mxu0 %v1839
    %2630 = vmatprep.subr.mxu0 0.0
    %2631 = vmatpush1.msra.mxu0 %v1840
    %2632 = vmatprep.subr.mxu0 0.0
    %2633 = vmatpush1.msra.mxu0 %v1841
    %2634 = vmatprep.subr.mxu0 0.0
    %2635 = vmatpush1.msra.mxu0 %v1842
    %2636 = vmatprep.subr.mxu0 0.0
    %2637 = vmatpush1.msra.mxu0 %v1843
    %2638 = vmatprep.subr.mxu0 0.0
    %2639 = vmatpush1.msra.mxu0 %v1844
    %2640 = vmatprep.subr.mxu0 0.0
    %2641 = vmatpush1.msra.mxu0 %v1845
    %2642 = vmatprep.subr.mxu0 0.0
    %2643 = vmatpush1.msra.mxu0 %v1846
    %2644 = vmatprep.subr.mxu0 0.0
    %2645 = vmatpush1.msra.mxu0 %v1847
    %2646 = vmatprep.subr.mxu0 0.0
    %2647 = vmatpush1.msra.mxu0 %v1848
    %2648 = vmatprep.subr.mxu0 0.0
    %2649 = vmatpush1.msra.mxu0 %v1849
    %2650 = vmatprep.subr.mxu0 0.0
    %2651 = vmatpush1.msra.mxu0 %v1850
    %2652 = vmatprep.subr.mxu0 0.0
    %2653 = vmatpush1.msra.mxu0 0.0
    %2654 = vmatprep.subr.mxu0 0.0
    %2655 = vmatpush1.msra.mxu0 0.0
    %2656 = vmatprep.subr.mxu0 0.0
    %2657 = vmatpush1.msra.mxu0 0.0
    %2658 = vmatprep.subr.mxu0 0.0
    %2659 = vmatpush1.msra.mxu0 0.0
    %2660 = vmatprep.subr.mxu0 0.0
    %2661 = vmatpush1.msra.mxu0 0.0
    %2662 = vmatprep.subr.mxu0 0.0
    %2663 = vmatpush1.msra.mxu0 0.0
    %2664 = vmatprep.subr.mxu0 0.0
    %2665 = vmatpush1.msra.mxu0 0.0
    %2666 = vmatprep.subr.mxu0 0.0
    %2667 = vmatpush1.msra.mxu0 0.0
    %2668 = vmatprep.subr.mxu0 0.0
    %2669 = vmatpush1.msra.mxu0 0.0
    %2670 = vmatprep.subr.mxu0 0.0
    %2671 = vmatpush1.msra.mxu0 0.0
    %2672 = vmatprep.subr.mxu0 0.0
    %2673 = vmatpush1.msra.mxu0 0.0
    %2674 = vmatprep.subr.mxu0 0.0
    %2675 = vmatpush1.msra.mxu0 0.0
    %2676 = vmatprep.subr.mxu0 0.0
    %2677 = vmatpush1.msra.mxu0 0.0
    %2678 = vmatprep.subr.mxu0 0.0
    %2679 = vmatpush1.msra.mxu0 0.0
    %2680 = vmatprep.subr.mxu0 0.0
    %2681 = vmatpush1.msra.mxu0 0.0
    %2682 = vmatprep.subr.mxu0 0.0
    %2683 = vmatpush1.msra.mxu0 0.0
    %2684 = vmatprep.mubr.f32.mxu0 0.0
    %2685 = vmatmul.mubr.f32.gmra.mrb[0].mxu0 %v2618
    %v2686 = vpop.f32.mrb[0].mxu0
    %v2687 = vadd.f32 %v2615, %v2686
    %v2688 = vpop.f32.mrb[0].mxu0
    %2689 = vdwg.mxu0
    %v2690 = vmul.f32 %v1834, %v2542
    %v2692 = vrot.slane %v2690, 4
    %2694 = vmatprep.subr.mxu0 0.0
    %2695 = vmatpush1.msra.mxu0 %v1867
    %2696 = vmatprep.subr.mxu0 0.0
    %2697 = vmatpush1.msra.mxu0 %v1868
    %2698 = vmatprep.subr.mxu0 0.0
    %2699 = vmatpush1.msra.mxu0 %v1869
    %2700 = vmatprep.subr.mxu0 0.0
    %2701 = vmatpush1.msra.mxu0 %v1870
    %2702 = vmatprep.subr.mxu0 0.0
    %2703 = vmatpush1.msra.mxu0 %v1871
    %2704 = vmatprep.subr.mxu0 0.0
    %2705 = vmatpush1.msra.mxu0 %v1872
    %2706 = vmatprep.subr.mxu0 0.0
    %2707 = vmatpush1.msra.mxu0 %v1873
    %2708 = vmatprep.subr.mxu0 0.0
    %2709 = vmatpush1.msra.mxu0 %v1874
    %2710 = vmatprep.subr.mxu0 0.0
    %2711 = vmatpush1.msra.mxu0 %v1875
    %2712 = vmatprep.subr.mxu0 0.0
    %2713 = vmatpush1.msra.mxu0 %v1876
    %2714 = vmatprep.subr.mxu0 0.0
    %2715 = vmatpush1.msra.mxu0 %v1877
    %2716 = vmatprep.subr.mxu0 0.0
    %2717 = vmatpush1.msra.mxu0 %v1878
    %2718 = vmatprep.subr.mxu0 0.0
    %2719 = vmatpush1.msra.mxu0 %v1879
    %2720 = vmatprep.subr.mxu0 0.0
    %2721 = vmatpush1.msra.mxu0 %v1880
    %2722 = vmatprep.subr.mxu0 0.0
    %2723 = vmatpush1.msra.mxu0 %v1881
    %2724 = vmatprep.subr.mxu0 0.0
    %2725 = vmatpush1.msra.mxu0 %v1882
    %2726 = vmatprep.subr.mxu0 0.0
    %2727 = vmatpush1.msra.mxu0 0.0
    %2728 = vmatprep.subr.mxu0 0.0
    %2729 = vmatpush1.msra.mxu0 0.0
    %2730 = vmatprep.subr.mxu0 0.0
    %2731 = vmatpush1.msra.mxu0 0.0
    %2732 = vmatprep.subr.mxu0 0.0
    %2733 = vmatpush1.msra.mxu0 0.0
    %2734 = vmatprep.subr.mxu0 0.0
    %2735 = vmatpush1.msra.mxu0 0.0
    %2736 = vmatprep.subr.mxu0 0.0
    %2737 = vmatpush1.msra.mxu0 0.0
    %2738 = vmatprep.subr.mxu0 0.0
    %2739 = vmatpush1.msra.mxu0 0.0
    %2740 = vmatprep.subr.mxu0 0.0
    %2741 = vmatpush1.msra.mxu0 0.0
    %2742 = vmatprep.subr.mxu0 0.0
    %2743 = vmatpush1.msra.mxu0 0.0
    %2744 = vmatprep.subr.mxu0 0.0
    %2745 = vmatpush1.msra.mxu0 0.0
    %2746 = vmatprep.subr.mxu0 0.0
    %2747 = vmatpush1.msra.mxu0 0.0
    %2748 = vmatprep.subr.mxu0 0.0
    %2749 = vmatpush1.msra.mxu0 0.0
    %2750 = vmatprep.subr.mxu0 0.0
    %2751 = vmatpush1.msra.mxu0 0.0
    %2752 = vmatprep.subr.mxu0 0.0
    %2753 = vmatpush1.msra.mxu0 0.0
    %2754 = vmatprep.subr.mxu0 0.0
    %2755 = vmatpush1.msra.mxu0 0.0
    %2756 = vmatprep.subr.mxu0 0.0
    %2757 = vmatpush1.msra.mxu0 0.0
    %2758 = vmatprep.mubr.f32.mxu0 0.0
    %2759 = vmatmul.mubr.f32.gmra.mrb[0].mxu0 %v2692
    %v2760 = vpop.f32.mrb[0].mxu0
    %v2761 = vadd.f32 0.0, %v2760
    %v2762 = vpop.f32.mrb[0].mxu0
    %2763 = vdwg.mxu0
    %v2764 = vadd.f32 %v2687, %v2761
    %v2765 = vadd.f32 %v2764, %v2106
    %2767 = vrot.lane.b32.xlu0 %v2541, 96
    %v2768 = vpop.permute.xlu0 %2767
    %v2769 = vsel %vm2115, %v2768, 0
    %2771 = vmatprep.subr.mxu0 0.0
    %2772 = vmatpush1.msra.mxu0 %v1883
    %2773 = vmatprep.subr.mxu0 0.0
    %2774 = vmatpush1.msra.mxu0 %v1884
    %2775 = vmatprep.subr.mxu0 0.0
    %2776 = vmatpush1.msra.mxu0 %v1885
    %2777 = vmatprep.subr.mxu0 0.0
    %2778 = vmatpush1.msra.mxu0 %v1886
    %2779 = vmatprep.subr.mxu0 0.0
    %2780 = vmatpush1.msra.mxu0 0.0
    %2781 = vmatprep.subr.mxu0 0.0
    %2782 = vmatpush1.msra.mxu0 0.0
    %2783 = vmatprep.subr.mxu0 0.0
    %2784 = vmatpush1.msra.mxu0 0.0
    %2785 = vmatprep.subr.mxu0 0.0
    %2786 = vmatpush1.msra.mxu0 0.0
    %2787 = vmatprep.subr.mxu0 0.0
    %2788 = vmatpush1.msra.mxu0 0.0
    %2789 = vmatprep.subr.mxu0 0.0
    %2790 = vmatpush1.msra.mxu0 0.0
    %2791 = vmatprep.subr.mxu0 0.0
    %2792 = vmatpush1.msra.mxu0 0.0
    %2793 = vmatprep.subr.mxu0 0.0
    %2794 = vmatpush1.msra.mxu0 0.0
    %2795 = vmatprep.subr.mxu0 0.0
    %2796 = vmatpush1.msra.mxu0 0.0
    %2797 = vmatprep.subr.mxu0 0.0
    %2798 = vmatpush1.msra.mxu0 0.0
    %2799 = vmatprep.subr.mxu0 0.0
    %2800 = vmatpush1.msra.mxu0 0.0
    %2801 = vmatprep.subr.mxu0 0.0
    %2802 = vmatpush1.msra.mxu0 0.0
    %2803 = vmatprep.subr.mxu0 0.0
    %2804 = vmatpush1.msra.mxu0 0.0
    %2805 = vmatprep.subr.mxu0 0.0
    %2806 = vmatpush1.msra.mxu0 0.0
    %2807 = vmatprep.subr.mxu0 0.0
    %2808 = vmatpush1.msra.mxu0 0.0
    %2809 = vmatprep.subr.mxu0 0.0
    %2810 = vmatpush1.msra.mxu0 0.0
    %2811 = vmatprep.subr.mxu0 0.0
    %2812 = vmatpush1.msra.mxu0 0.0
    %2813 = vmatprep.subr.mxu0 0.0
    %2814 = vmatpush1.msra.mxu0 0.0
    %2815 = vmatprep.subr.mxu0 0.0
    %2816 = vmatpush1.msra.mxu0 0.0
    %2817 = vmatprep.subr.mxu0 0.0
    %2818 = vmatpush1.msra.mxu0 0.0
    %2819 = vmatprep.subr.mxu0 0.0
    %2820 = vmatpush1.msra.mxu0 0.0
    %2821 = vmatprep.subr.mxu0 0.0
    %2822 = vmatpush1.msra.mxu0 0.0
    %2823 = vmatprep.subr.mxu0 0.0
    %2824 = vmatpush1.msra.mxu0 0.0
    %2825 = vmatprep.subr.mxu0 0.0
    %2826 = vmatpush1.msra.mxu0 0.0
    %2827 = vmatprep.subr.mxu0 0.0
    %2828 = vmatpush1.msra.mxu0 0.0
    %2829 = vmatprep.subr.mxu0 0.0
    %2830 = vmatpush1.msra.mxu0 0.0
    %2831 = vmatprep.subr.mxu0 0.0
    %2832 = vmatpush1.msra.mxu0 0.0
    %2833 = vmatprep.subr.mxu0 0.0
    %2834 = vmatpush1.msra.mxu0 0.0
    %2835 = vmatprep.mubr.f32.mxu0 0.0
    %2836 = vmatmul.mubr.f32.gmra.mrb[0].mxu0 %v2769
    %v2837 = vpop.f32.mrb[0].mxu0
    %v2838 = vadd.f32 %v2113, %v2837
    %v2839 = vpop.f32.mrb[0].mxu0
    %2840 = vdwg.mxu0
    %v2841 = vadd.f32 %v2765, %v2838
    %v2842 = vxor.u32 %v2841, 2147483648
    %v2843 = vmul.f32 %v2842, 1.442695
    %v2844 = vpow.pop %v2843
    %v2845 = vadd.f32 %v2844, 1.0
    %v2846 = vrcp.pop %v2845
    %v2847 = vmul.f32 1.0, %v2846
    %2849 = vrot.lane.b32.xlu0 %v2838, 64
    %v2850 = vpop.permute.xlu0 %2849
    %v2852 = vmul.f32 %v2847, %v2850
    %2854 = vrot.lane.b32.xlu0 %v2852, 64
    %v2855 = vpop.permute.xlu0 %2854
    %v2857 = vadd.f32 %v2765, %v2855
    %v2858 = vtanh.pop %v2857
    %v2859 = vsub.f32 1.0, %v2847
    %2861 = vrot.lane.b32.xlu0 %v2858, 96
    %v2862 = vpop.permute.xlu0 %2861
    %v2864 = vmul.f32 %v2859, %v2862
    %v2865 = vmul.f32 %v2847, %v2541
    %v2866 = vadd.f32 %v2864, %v2865
    %v2867 = vrot.slane %v1035, 2
    %v2869 = vsub.f32 %v1834, %v2867
    %v2871 = vrot.slane %v2869, 6
    %2873 = vmatprep.subr.mxu0 0.0
    %2874 = vmatpush1.msra.mxu0 %v1851
    %2875 = vmatprep.subr.mxu0 0.0
    %2876 = vmatpush1.msra.mxu0 %v1852
    %2877 = vmatprep.subr.mxu0 0.0
    %2878 = vmatpush1.msra.mxu0 %v1853
    %2879 = vmatprep.subr.mxu0 0.0
    %2880 = vmatpush1.msra.mxu0 %v1854
    %2881 = vmatprep.subr.mxu0 0.0
    %2882 = vmatpush1.msra.mxu0 %v1855
    %2883 = vmatprep.subr.mxu0 0.0
    %2884 = vmatpush1.msra.mxu0 %v1856
    %2885 = vmatprep.subr.mxu0 0.0
    %2886 = vmatpush1.msra.mxu0 %v1857
    %2887 = vmatprep.subr.mxu0 0.0
    %2888 = vmatpush1.msra.mxu0 %v1858
    %2889 = vmatprep.subr.mxu0 0.0
    %2890 = vmatpush1.msra.mxu0 %v1859
    %2891 = vmatprep.subr.mxu0 0.0
    %2892 = vmatpush1.msra.mxu0 %v1860
    %2893 = vmatprep.subr.mxu0 0.0
    %2894 = vmatpush1.msra.mxu0 %v1861
    %2895 = vmatprep.subr.mxu0 0.0
    %2896 = vmatpush1.msra.mxu0 %v1862
    %2897 = vmatprep.subr.mxu0 0.0
    %2898 = vmatpush1.msra.mxu0 %v1863
    %2899 = vmatprep.subr.mxu0 0.0
    %2900 = vmatpush1.msra.mxu0 %v1864
    %2901 = vmatprep.subr.mxu0 0.0
    %2902 = vmatpush1.msra.mxu0 %v1865
    %2903 = vmatprep.subr.mxu0 0.0
    %2904 = vmatpush1.msra.mxu0 %v1866
    %2905 = vmatprep.subr.mxu0 0.0
    %2906 = vmatpush1.msra.mxu0 0.0
    %2907 = vmatprep.subr.mxu0 0.0
    %2908 = vmatpush1.msra.mxu0 0.0
    %2909 = vmatprep.subr.mxu0 0.0
    %2910 = vmatpush1.msra.mxu0 0.0
    %2911 = vmatprep.subr.mxu0 0.0
    %2912 = vmatpush1.msra.mxu0 0.0
    %2913 = vmatprep.subr.mxu0 0.0
    %2914 = vmatpush1.msra.mxu0 0.0
    %2915 = vmatprep.subr.mxu0 0.0
    %2916 = vmatpush1.msra.mxu0 0.0
    %2917 = vmatprep.subr.mxu0 0.0
    %2918 = vmatpush1.msra.mxu0 0.0
    %2919 = vmatprep.subr.mxu0 0.0
    %2920 = vmatpush1.msra.mxu0 0.0
    %2921 = vmatprep.subr.mxu0 0.0
    %2922 = vmatpush1.msra.mxu0 0.0
    %2923 = vmatprep.subr.mxu0 0.0
    %2924 = vmatpush1.msra.mxu0 0.0
    %2925 = vmatprep.subr.mxu0 0.0
    %2926 = vmatpush1.msra.mxu0 0.0
    %2927 = vmatprep.subr.mxu0 0.0
    %2928 = vmatpush1.msra.mxu0 0.0
    %2929 = vmatprep.subr.mxu0 0.0
    %2930 = vmatpush1.msra.mxu0 0.0
    %2931 = vmatprep.subr.mxu0 0.0
    %2932 = vmatpush1.msra.mxu0 0.0
    %2933 = vmatprep.subr.mxu0 0.0
    %2934 = vmatpush1.msra.mxu0 0.0
    %2935 = vmatprep.subr.mxu0 0.0
    %2936 = vmatpush1.msra.mxu0 0.0
    %2937 = vmatprep.mubr.f32.mxu0 0.0
    %2938 = vmatmul.mubr.f32.gmra.mrb[0].mxu0 %v2871
    %v2939 = vpop.f32.mrb[0].mxu0
    %v2940 = vadd.f32 0.0, %v2939
    %v2941 = vpop.f32.mrb[0].mxu0
    %2942 = vdwg.mxu0
    %v2943 = vrot.slane %v1834, 6
    %2945 = vmatprep.subr.mxu0 0.0
    %2946 = vmatpush1.msra.mxu0 %v1835
    %2947 = vmatprep.subr.mxu0 0.0
    %2948 = vmatpush1.msra.mxu0 %v1836
    %2949 = vmatprep.subr.mxu0 0.0
    %2950 = vmatpush1.msra.mxu0 %v1837
    %2951 = vmatprep.subr.mxu0 0.0
    %2952 = vmatpush1.msra.mxu0 %v1838
    %2953 = vmatprep.subr.mxu0 0.0
    %2954 = vmatpush1.msra.mxu0 %v1839
    %2955 = vmatprep.subr.mxu0 0.0
    %2956 = vmatpush1.msra.mxu0 %v1840
    %2957 = vmatprep.subr.mxu0 0.0
    %2958 = vmatpush1.msra.mxu0 %v1841
    %2959 = vmatprep.subr.mxu0 0.0
    %2960 = vmatpush1.msra.mxu0 %v1842
    %2961 = vmatprep.subr.mxu0 0.0
    %2962 = vmatpush1.msra.mxu0 %v1843
    %2963 = vmatprep.subr.mxu0 0.0
    %2964 = vmatpush1.msra.mxu0 %v1844
    %2965 = vmatprep.subr.mxu0 0.0
    %2966 = vmatpush1.msra.mxu0 %v1845
    %2967 = vmatprep.subr.mxu0 0.0
    %2968 = vmatpush1.msra.mxu0 %v1846
    %2969 = vmatprep.subr.mxu0 0.0
    %2970 = vmatpush1.msra.mxu0 %v1847
    %2971 = vmatprep.subr.mxu0 0.0
    %2972 = vmatpush1.msra.mxu0 %v1848
    %2973 = vmatprep.subr.mxu0 0.0
    %2974 = vmatpush1.msra.mxu0 %v1849
    %2975 = vmatprep.subr.mxu0 0.0
    %2976 = vmatpush1.msra.mxu0 %v1850
    %2977 = vmatprep.subr.mxu0 0.0
    %2978 = vmatpush1.msra.mxu0 0.0
    %2979 = vmatprep.subr.mxu0 0.0
    %2980 = vmatpush1.msra.mxu0 0.0
    %2981 = vmatprep.subr.mxu0 0.0
    %2982 = vmatpush1.msra.mxu0 0.0
    %2983 = vmatprep.subr.mxu0 0.0
    %2984 = vmatpush1.msra.mxu0 0.0
    %2985 = vmatprep.subr.mxu0 0.0
    %2986 = vmatpush1.msra.mxu0 0.0
    %2987 = vmatprep.subr.mxu0 0.0
    %2988 = vmatpush1.msra.mxu0 0.0
    %2989 = vmatprep.subr.mxu0 0.0
    %2990 = vmatpush1.msra.mxu0 0.0
    %2991 = vmatprep.subr.mxu0 0.0
    %2992 = vmatpush1.msra.mxu0 0.0
    %2993 = vmatprep.subr.mxu0 0.0
    %2994 = vmatpush1.msra.mxu0 0.0
    %2995 = vmatprep.subr.mxu0 0.0
    %2996 = vmatpush1.msra.mxu0 0.0
    %2997 = vmatprep.subr.mxu0 0.0
    %2998 = vmatpush1.msra.mxu0 0.0
    %2999 = vmatprep.subr.mxu0 0.0
    %3000 = vmatpush1.msra.mxu0 0.0
    %3001 = vmatprep.subr.mxu0 0.0
    %3002 = vmatpush1.msra.mxu0 0.0
    %3003 = vmatprep.subr.mxu0 0.0
    %3004 = vmatpush1.msra.mxu0 0.0
    %3005 = vmatprep.subr.mxu0 0.0
    %3006 = vmatpush1.msra.mxu0 0.0
    %3007 = vmatprep.subr.mxu0 0.0
    %3008 = vmatpush1.msra.mxu0 0.0
    %3009 = vmatprep.mubr.f32.mxu0 0.0
    %3010 = vmatmul.mubr.f32.gmra.mrb[0].mxu0 %v2943
    %v3011 = vpop.f32.mrb[0].mxu0
    %v3012 = vadd.f32 %v2940, %v3011
    %v3013 = vpop.f32.mrb[0].mxu0
    %3014 = vdwg.mxu0
    %v3015 = vmul.f32 %v1834, %v2867
    %v3017 = vrot.slane %v3015, 6
    %3019 = vmatprep.subr.mxu0 0.0
    %3020 = vmatpush1.msra.mxu0 %v1867
    %3021 = vmatprep.subr.mxu0 0.0
    %3022 = vmatpush1.msra.mxu0 %v1868
    %3023 = vmatprep.subr.mxu0 0.0
    %3024 = vmatpush1.msra.mxu0 %v1869
    %3025 = vmatprep.subr.mxu0 0.0
    %3026 = vmatpush1.msra.mxu0 %v1870
    %3027 = vmatprep.subr.mxu0 0.0
    %3028 = vmatpush1.msra.mxu0 %v1871
    %3029 = vmatprep.subr.mxu0 0.0
    %3030 = vmatpush1.msra.mxu0 %v1872
    %3031 = vmatprep.subr.mxu0 0.0
    %3032 = vmatpush1.msra.mxu0 %v1873
    %3033 = vmatprep.subr.mxu0 0.0
    %3034 = vmatpush1.msra.mxu0 %v1874
    %3035 = vmatprep.subr.mxu0 0.0
    %3036 = vmatpush1.msra.mxu0 %v1875
    %3037 = vmatprep.subr.mxu0 0.0
    %3038 = vmatpush1.msra.mxu0 %v1876
    %3039 = vmatprep.subr.mxu0 0.0
    %3040 = vmatpush1.msra.mxu0 %v1877
    %3041 = vmatprep.subr.mxu0 0.0
    %3042 = vmatpush1.msra.mxu0 %v1878
    %3043 = vmatprep.subr.mxu0 0.0
    %3044 = vmatpush1.msra.mxu0 %v1879
    %3045 = vmatprep.subr.mxu0 0.0
    %3046 = vmatpush1.msra.mxu0 %v1880
    %3047 = vmatprep.subr.mxu0 0.0
    %3048 = vmatpush1.msra.mxu0 %v1881
    %3049 = vmatprep.subr.mxu0 0.0
    %3050 = vmatpush1.msra.mxu0 %v1882
    %3051 = vmatprep.subr.mxu0 0.0
    %3052 = vmatpush1.msra.mxu0 0.0
    %3053 = vmatprep.subr.mxu0 0.0
    %3054 = vmatpush1.msra.mxu0 0.0
    %3055 = vmatprep.subr.mxu0 0.0
    %3056 = vmatpush1.msra.mxu0 0.0
    %3057 = vmatprep.subr.mxu0 0.0
    %3058 = vmatpush1.msra.mxu0 0.0
    %3059 = vmatprep.subr.mxu0 0.0
    %3060 = vmatpush1.msra.mxu0 0.0
    %3061 = vmatprep.subr.mxu0 0.0
    %3062 = vmatpush1.msra.mxu0 0.0
    %3063 = vmatprep.subr.mxu0 0.0
    %3064 = vmatpush1.msra.mxu0 0.0
    %3065 = vmatprep.subr.mxu0 0.0
    %3066 = vmatpush1.msra.mxu0 0.0
    %3067 = vmatprep.subr.mxu0 0.0
    %3068 = vmatpush1.msra.mxu0 0.0
    %3069 = vmatprep.subr.mxu0 0.0
    %3070 = vmatpush1.msra.mxu0 0.0
    %3071 = vmatprep.subr.mxu0 0.0
    %3072 = vmatpush1.msra.mxu0 0.0
    %3073 = vmatprep.subr.mxu0 0.0
    %3074 = vmatpush1.msra.mxu0 0.0
    %3075 = vmatprep.subr.mxu0 0.0
    %3076 = vmatpush1.msra.mxu0 0.0
    %3077 = vmatprep.subr.mxu0 0.0
    %3078 = vmatpush1.msra.mxu0 0.0
    %3079 = vmatprep.subr.mxu0 0.0
    %3080 = vmatpush1.msra.mxu0 0.0
    %3081 = vmatprep.subr.mxu0 0.0
    %3082 = vmatpush1.msra.mxu0 0.0
    %3083 = vmatprep.mubr.f32.mxu0 0.0
    %3084 = vmatmul.mubr.f32.gmra.mrb[0].mxu0 %v3017
    %v3085 = vpop.f32.mrb[0].mxu0
    %v3086 = vadd.f32 0.0, %v3085
    %v3087 = vpop.f32.mrb[0].mxu0
    %3088 = vdwg.mxu0
    %v3089 = vadd.f32 %v3012, %v3086
    %v3090 = vadd.f32 %v3089, %v2106
    %3092 = vrot.lane.b32.xlu0 %v2866, 96
    %v3093 = vpop.permute.xlu0 %3092
    %v3094 = vsel %vm2115, %v3093, 0
    %3096 = vmatprep.subr.mxu0 0.0
    %3097 = vmatpush1.msra.mxu0 %v1883
    %3098 = vmatprep.subr.mxu0 0.0
    %3099 = vmatpush1.msra.mxu0 %v1884
    %3100 = vmatprep.subr.mxu0 0.0
    %3101 = vmatpush1.msra.mxu0 %v1885
    %3102 = vmatprep.subr.mxu0 0.0
    %3103 = vmatpush1.msra.mxu0 %v1886
    %3104 = vmatprep.subr.mxu0 0.0
    %3105 = vmatpush1.msra.mxu0 0.0
    %3106 = vmatprep.subr.mxu0 0.0
    %3107 = vmatpush1.msra.mxu0 0.0
    %3108 = vmatprep.subr.mxu0 0.0
    %3109 = vmatpush1.msra.mxu0 0.0
    %3110 = vmatprep.subr.mxu0 0.0
    %3111 = vmatpush1.msra.mxu0 0.0
    %3112 = vmatprep.subr.mxu0 0.0
    %3113 = vmatpush1.msra.mxu0 0.0
    %3114 = vmatprep.subr.mxu0 0.0
    %3115 = vmatpush1.msra.mxu0 0.0
    %3116 = vmatprep.subr.mxu0 0.0
    %3117 = vmatpush1.msra.mxu0 0.0
    %3118 = vmatprep.subr.mxu0 0.0
    %3119 = vmatpush1.msra.mxu0 0.0
    %3120 = vmatprep.subr.mxu0 0.0
    %3121 = vmatpush1.msra.mxu0 0.0
    %3122 = vmatprep.subr.mxu0 0.0
    %3123 = vmatpush1.msra.mxu0 0.0
    %3124 = vmatprep.subr.mxu0 0.0
    %3125 = vmatpush1.msra.mxu0 0.0
    %3126 = vmatprep.subr.mxu0 0.0
    %3127 = vmatpush1.msra.mxu0 0.0
    %3128 = vmatprep.subr.mxu0 0.0
    %3129 = vmatpush1.msra.mxu0 0.0
    %3130 = vmatprep.subr.mxu0 0.0
    %3131 = vmatpush1.msra.mxu0 0.0
    %3132 = vmatprep.subr.mxu0 0.0
    %3133 = vmatpush1.msra.mxu0 0.0
    %3134 = vmatprep.subr.mxu0 0.0
    %3135 = vmatpush1.msra.mxu0 0.0
    %3136 = vmatprep.subr.mxu0 0.0
    %3137 = vmatpush1.msra.mxu0 0.0
    %3138 = vmatprep.subr.mxu0 0.0
    %3139 = vmatpush1.msra.mxu0 0.0
    %3140 = vmatprep.subr.mxu0 0.0
    %3141 = vmatpush1.msra.mxu0 0.0
    %3142 = vmatprep.subr.mxu0 0.0
    %3143 = vmatpush1.msra.mxu0 0.0
    %3144 = vmatprep.subr.mxu0 0.0
    %3145 = vmatpush1.msra.mxu0 0.0
    %3146 = vmatprep.subr.mxu0 0.0
    %3147 = vmatpush1.msra.mxu0 0.0
    %3148 = vmatprep.subr.mxu0 0.0
    %3149 = vmatpush1.msra.mxu0 0.0
    %3150 = vmatprep.subr.mxu0 0.0
    %3151 = vmatpush1.msra.mxu0 0.0
    %3152 = vmatprep.subr.mxu0 0.0
    %3153 = vmatpush1.msra.mxu0 0.0
    %3154 = vmatprep.subr.mxu0 0.0
    %3155 = vmatpush1.msra.mxu0 0.0
    %3156 = vmatprep.subr.mxu0 0.0
    %3157 = vmatpush1.msra.mxu0 0.0
    %3158 = vmatprep.subr.mxu0 0.0
    %3159 = vmatpush1.msra.mxu0 0.0
    %3160 = vmatprep.mubr.f32.mxu0 0.0
    %3161 = vmatmul.mubr.f32.gmra.mrb[0].mxu0 %v3094
    %v3162 = vpop.f32.mrb[0].mxu0
    %v3163 = vadd.f32 %v2113, %v3162
    %v3164 = vpop.f32.mrb[0].mxu0
    %3165 = vdwg.mxu0
    %v3166 = vadd.f32 %v3090, %v3163
    %v3167 = vxor.u32 %v3166, 2147483648
    %v3168 = vmul.f32 %v3167, 1.442695
    %v3169 = vpow.pop %v3168
    %v3170 = vadd.f32 %v3169, 1.0
    %v3171 = vrcp.pop %v3170
    %v3172 = vmul.f32 1.0, %v3171
    %3174 = vrot.lane.b32.xlu0 %v3163, 64
    %v3175 = vpop.permute.xlu0 %3174
    %v3177 = vmul.f32 %v3172, %v3175
    %3179 = vrot.lane.b32.xlu0 %v3177, 64
    %v3180 = vpop.permute.xlu0 %3179
    %v3182 = vadd.f32 %v3090, %v3180
    %v3183 = vtanh.pop %v3182
    %v3184 = vsub.f32 1.0, %v3172
    %3186 = vrot.lane.b32.xlu0 %v3183, 96
    %v3187 = vpop.permute.xlu0 %3186
    %v3189 = vmul.f32 %v3184, %v3187
    %v3190 = vmul.f32 %v3172, %v2866
    %v3191 = vadd.f32 %v3189, %v3190
    %v3192 = vld [vmem:[#allocation32] sm:$0xff]
    %v3193 = vld [vmem:[#allocation32 + $0x8] sm:$0xff]
    %v3194 = vld [vmem:[#allocation32 + $0x10] sm:$0xff]
    %v3195 = vld [vmem:[#allocation32 + $0x18] sm:$0xff]
    %v3196 = vld [vmem:[%s59] sm:$0x1]
    %v3198 = vlaneseq
    %v3199 = vshrl.u32 %v3198, 7
    %v3200 = vsub.s32 0, %v3199
    %v3201 = vrot.slane %v3196, %v3200
    %3204 = vrot.lane.b32.xlu0 %v3191, 96
    %v3205 = vpop.permute.xlu0 %3204
    %v3206 = vsel %vm2115, %v3205, 0
    %3208 = vmatprep.subr.mxu0 0.0
    %3209 = vmatpush1.msra.mxu0 %v3192
    %3210 = vmatprep.subr.mxu0 0.0
    %3211 = vmatpush1.msra.mxu0 %v3193
    %3212 = vmatprep.subr.mxu0 0.0
    %3213 = vmatpush1.msra.mxu0 %v3194
    %3214 = vmatprep.subr.mxu0 0.0
    %3215 = vmatpush1.msra.mxu0 %v3195
    %3216 = vmatprep.subr.mxu0 0.0
    %3217 = vmatpush1.msra.mxu0 0.0
    %3218 = vmatprep.subr.mxu0 0.0
    %3219 = vmatpush1.msra.mxu0 0.0
    %3220 = vmatprep.subr.mxu0 0.0
    %3221 = vmatpush1.msra.mxu0 0.0
    %3222 = vmatprep.subr.mxu0 0.0
    %3223 = vmatpush1.msra.mxu0 0.0
    %3224 = vmatprep.subr.mxu0 0.0
    %3225 = vmatpush1.msra.mxu0 0.0
    %3226 = vmatprep.subr.mxu0 0.0
    %3227 = vmatpush1.msra.mxu0 0.0
    %3228 = vmatprep.subr.mxu0 0.0
    %3229 = vmatpush1.msra.mxu0 0.0
    %3230 = vmatprep.subr.mxu0 0.0
    %3231 = vmatpush1.msra.mxu0 0.0
    %3232 = vmatprep.subr.mxu0 0.0
    %3233 = vmatpush1.msra.mxu0 0.0
    %3234 = vmatprep.subr.mxu0 0.0
    %3235 = vmatpush1.msra.mxu0 0.0
    %3236 = vmatprep.subr.mxu0 0.0
    %3237 = vmatpush1.msra.mxu0 0.0
    %3238 = vmatprep.subr.mxu0 0.0
    %3239 = vmatpush1.msra.mxu0 0.0
    %3240 = vmatprep.subr.mxu0 0.0
    %3241 = vmatpush1.msra.mxu0 0.0
    %3242 = vmatprep.subr.mxu0 0.0
    %3243 = vmatpush1.msra.mxu0 0.0
    %3244 = vmatprep.subr.mxu0 0.0
    %3245 = vmatpush1.msra.mxu0 0.0
    %3246 = vmatprep.subr.mxu0 0.0
    %3247 = vmatpush1.msra.mxu0 0.0
    %3248 = vmatprep.subr.mxu0 0.0
    %3249 = vmatpush1.msra.mxu0 0.0
    %3250 = vmatprep.subr.mxu0 0.0
    %3251 = vmatpush1.msra.mxu0 0.0
    %3252 = vmatprep.subr.mxu0 0.0
    %3253 = vmatpush1.msra.mxu0 0.0
    %3254 = vmatprep.subr.mxu0 0.0
    %3255 = vmatpush1.msra.mxu0 0.0
    %3256 = vmatprep.subr.mxu0 0.0
    %3257 = vmatpush1.msra.mxu0 0.0
    %3258 = vmatprep.subr.mxu0 0.0
    %3259 = vmatpush1.msra.mxu0 0.0
    %3260 = vmatprep.subr.mxu0 0.0
    %3261 = vmatpush1.msra.mxu0 0.0
    %3262 = vmatprep.subr.mxu0 0.0
    %3263 = vmatpush1.msra.mxu0 0.0
    %3264 = vmatprep.subr.mxu0 0.0
    %3265 = vmatpush1.msra.mxu0 0.0
    %3266 = vmatprep.subr.mxu0 0.0
    %3267 = vmatpush1.msra.mxu0 0.0
    %3268 = vmatprep.subr.mxu0 0.0
    %3269 = vmatpush1.msra.mxu0 0.0
    %3270 = vmatprep.subr.mxu0 0.0
    %3271 = vmatpush1.msra.mxu0 0.0
    %3272 = vmatprep.mubr.f32.mxu0 0.0
    %3273 = vmatmul.mubr.f32.gmra.mrb[0].mxu0 %v3206
    %v3274 = vpop.f32.mrb[0].mxu0
    %v3275 = vadd.f32 %v3201, %v3274
    %v3276 = vpop.f32.mrb[0].mxu0
    %3277 = vdwg.mxu0
    %vm3278 = vcmp.ge.f32.partialorder %v3275, 0.0
    %v3279 = vmul.f32 %v3275, 0.01
    %v3280 = vsel %vm3278, %v3275, %v3279
    %v3281 = vld [vmem:[#allocation34] sm:$0xff]
    %v3282 = vld [vmem:[#allocation34 + $0x8] sm:$0xff]
    %v3283 = vld [vmem:[#allocation34 + $0x10] sm:$0xff]
    %v3284 = vld [vmem:[#allocation34 + $0x18] sm:$0xff]
    %v3285 = vld [vmem:[#allocation34 + $0x20] sm:$0xff]
    %v3286 = vld [vmem:[#allocation34 + $0x28] sm:$0xff]
    %v3287 = vld [vmem:[#allocation34 + $0x30] sm:$0xff]
    %v3288 = vld [vmem:[#allocation34 + $0x38] sm:$0xff]
    %v3289 = vld [vmem:[#allocation34 + $0x40] sm:$0xff]
    %v3290 = vld [vmem:[#allocation34 + $0x48] sm:$0xff]
    %v3291 = vld [vmem:[#allocation34 + $0x50] sm:$0xff]
    %v3292 = vld [vmem:[#allocation34 + $0x58] sm:$0xff]
    %v3293 = vld [vmem:[#allocation34 + $0x60] sm:$0xff]
    %v3294 = vld [vmem:[#allocation34 + $0x68] sm:$0xff]
    %v3295 = vld [vmem:[#allocation34 + $0x70] sm:$0xff]
    %v3296 = vld [vmem:[#allocation34 + $0x78] sm:$0xff]
    %v3297 = vld [vmem:[#allocation35] sm:$0xff]
    %v3298 = vld [vmem:[#allocation35 + $0x8] sm:$0xff]
    %v3299 = vld [vmem:[#allocation35 + $0x10] sm:$0xff]
    %v3300 = vld [vmem:[#allocation35 + $0x18] sm:$0xff]
    %v3301 = vld [vmem:[#allocation35 + $0x20] sm:$0xff]
    %v3302 = vld [vmem:[#allocation35 + $0x28] sm:$0xff]
    %v3303 = vld [vmem:[#allocation35 + $0x30] sm:$0xff]
    %v3304 = vld [vmem:[#allocation35 + $0x38] sm:$0xff]
    %v3305 = vld [vmem:[#allocation35 + $0x40] sm:$0xff]
    %v3306 = vld [vmem:[#allocation35 + $0x48] sm:$0xff]
    %v3307 = vld [vmem:[#allocation35 + $0x50] sm:$0xff]
    %v3308 = vld [vmem:[#allocation35 + $0x58] sm:$0xff]
    %v3309 = vld [vmem:[#allocation35 + $0x60] sm:$0xff]
    %v3310 = vld [vmem:[#allocation35 + $0x68] sm:$0xff]
    %v3311 = vld [vmem:[#allocation35 + $0x70] sm:$0xff]
    %v3312 = vld [vmem:[#allocation35 + $0x78] sm:$0xff]
    %3313 = vmatprep.subr.mxu0 0.0
    %3314 = vmatpush1.msra.mxu0 %v3297
    %3315 = vmatprep.subr.mxu0 0.0
    %3316 = vmatpush1.msra.mxu0 %v3298
    %3317 = vmatprep.subr.mxu0 0.0
    %3318 = vmatpush1.msra.mxu0 %v3299
    %3319 = vmatprep.subr.mxu0 0.0
    %3320 = vmatpush1.msra.mxu0 %v3300
    %3321 = vmatprep.subr.mxu0 0.0
    %3322 = vmatpush1.msra.mxu0 %v3301
    %3323 = vmatprep.subr.mxu0 0.0
    %3324 = vmatpush1.msra.mxu0 %v3302
    %3325 = vmatprep.subr.mxu0 0.0
    %3326 = vmatpush1.msra.mxu0 %v3303
    %3327 = vmatprep.subr.mxu0 0.0
    %3328 = vmatpush1.msra.mxu0 %v3304
    %3329 = vmatprep.subr.mxu0 0.0
    %3330 = vmatpush1.msra.mxu0 %v3305
    %3331 = vmatprep.subr.mxu0 0.0
    %3332 = vmatpush1.msra.mxu0 %v3306
    %3333 = vmatprep.subr.mxu0 0.0
    %3334 = vmatpush1.msra.mxu0 %v3307
    %3335 = vmatprep.subr.mxu0 0.0
    %3336 = vmatpush1.msra.mxu0 %v3308
    %3337 = vmatprep.subr.mxu0 0.0
    %3338 = vmatpush1.msra.mxu0 %v3309
    %3339 = vmatprep.subr.mxu0 0.0
    %3340 = vmatpush1.msra.mxu0 %v3310
    %3341 = vmatprep.subr.mxu0 0.0
    %3342 = vmatpush1.msra.mxu0 %v3311
    %3343 = vmatprep.subr.mxu0 0.0
    %3344 = vmatpush1.msra.mxu0 %v3312
    %3345 = vmatprep.subr.mxu0 0.0
    %3346 = vmatpush1.msra.mxu0 0.0
    %3347 = vmatprep.subr.mxu0 0.0
    %3348 = vmatpush1.msra.mxu0 0.0
    %3349 = vmatprep.subr.mxu0 0.0
    %3350 = vmatpush1.msra.mxu0 0.0
    %3351 = vmatprep.subr.mxu0 0.0
    %3352 = vmatpush1.msra.mxu0 0.0
    %3353 = vmatprep.subr.mxu0 0.0
    %3354 = vmatpush1.msra.mxu0 0.0
    %3355 = vmatprep.subr.mxu0 0.0
    %3356 = vmatpush1.msra.mxu0 0.0
    %3357 = vmatprep.subr.mxu0 0.0
    %3358 = vmatpush1.msra.mxu0 0.0
    %3359 = vmatprep.subr.mxu0 0.0
    %3360 = vmatpush1.msra.mxu0 0.0
    %3361 = vmatprep.subr.mxu0 0.0
    %3362 = vmatpush1.msra.mxu0 0.0
    %3363 = vmatprep.subr.mxu0 0.0
    %3364 = vmatpush1.msra.mxu0 0.0
    %3365 = vmatprep.subr.mxu0 0.0
    %3366 = vmatpush1.msra.mxu0 0.0
    %3367 = vmatprep.subr.mxu0 0.0
    %3368 = vmatpush1.msra.mxu0 0.0
    %3369 = vmatprep.subr.mxu0 0.0
    %3370 = vmatpush1.msra.mxu0 0.0
    %3371 = vmatprep.subr.mxu0 0.0
    %3372 = vmatpush1.msra.mxu0 0.0
    %3373 = vmatprep.subr.mxu0 0.0
    %3374 = vmatpush1.msra.mxu0 0.0
    %3375 = vmatprep.subr.mxu0 0.0
    %3376 = vmatpush1.msra.mxu0 0.0
    %3377 = vmatprep.mubr.f32.mxu0 0.0
    %3378 = vmatmul.mubr.f32.gmra.mrb[0].mxu0 %v1035
    %v3379 = vpop.f32.mrb[0].mxu0
    %v3380 = vadd.f32 0.0, %v3379
    %v3381 = vpop.f32.mrb[0].mxu0
    %3382 = vdwg.mxu0
    %3383 = vmatprep.subr.mxu0 0.0
    %3384 = vmatpush1.msra.mxu0 %v3281
    %3385 = vmatprep.subr.mxu0 0.0
    %3386 = vmatpush1.msra.mxu0 %v3282
    %3387 = vmatprep.subr.mxu0 0.0
    %3388 = vmatpush1.msra.mxu0 %v3283
    %3389 = vmatprep.subr.mxu0 0.0
    %3390 = vmatpush1.msra.mxu0 %v3284
    %3391 = vmatprep.subr.mxu0 0.0
    %3392 = vmatpush1.msra.mxu0 %v3285
    %3393 = vmatprep.subr.mxu0 0.0
    %3394 = vmatpush1.msra.mxu0 %v3286
    %3395 = vmatprep.subr.mxu0 0.0
    %3396 = vmatpush1.msra.mxu0 %v3287
    %3397 = vmatprep.subr.mxu0 0.0
    %3398 = vmatpush1.msra.mxu0 %v3288
    %3399 = vmatprep.subr.mxu0 0.0
    %3400 = vmatpush1.msra.mxu0 %v3289
    %3401 = vmatprep.subr.mxu0 0.0
    %3402 = vmatpush1.msra.mxu0 %v3290
    %3403 = vmatprep.subr.mxu0 0.0
    %3404 = vmatpush1.msra.mxu0 %v3291
    %3405 = vmatprep.subr.mxu0 0.0
    %3406 = vmatpush1.msra.mxu0 %v3292
    %3407 = vmatprep.subr.mxu0 0.0
    %3408 = vmatpush1.msra.mxu0 %v3293
    %3409 = vmatprep.subr.mxu0 0.0
    %3410 = vmatpush1.msra.mxu0 %v3294
    %3411 = vmatprep.subr.mxu0 0.0
    %3412 = vmatpush1.msra.mxu0 %v3295
    %3413 = vmatprep.subr.mxu0 0.0
    %3414 = vmatpush1.msra.mxu0 %v3296
    %3415 = vmatprep.subr.mxu0 0.0
    %3416 = vmatpush1.msra.mxu0 0.0
    %3417 = vmatprep.subr.mxu0 0.0
    %3418 = vmatpush1.msra.mxu0 0.0
    %3419 = vmatprep.subr.mxu0 0.0
    %3420 = vmatpush1.msra.mxu0 0.0
    %3421 = vmatprep.subr.mxu0 0.0
    %3422 = vmatpush1.msra.mxu0 0.0
    %3423 = vmatprep.subr.mxu0 0.0
    %3424 = vmatpush1.msra.mxu0 0.0
    %3425 = vmatprep.subr.mxu0 0.0
    %3426 = vmatpush1.msra.mxu0 0.0
    %3427 = vmatprep.subr.mxu0 0.0
    %3428 = vmatpush1.msra.mxu0 0.0
    %3429 = vmatprep.subr.mxu0 0.0
    %3430 = vmatpush1.msra.mxu0 0.0
    %3431 = vmatprep.subr.mxu0 0.0
    %3432 = vmatpush1.msra.mxu0 0.0
    %3433 = vmatprep.subr.mxu0 0.0
    %3434 = vmatpush1.msra.mxu0 0.0
    %3435 = vmatprep.subr.mxu0 0.0
    %3436 = vmatpush1.msra.mxu0 0.0
    %3437 = vmatprep.subr.mxu0 0.0
    %3438 = vmatpush1.msra.mxu0 0.0
    %3439 = vmatprep.subr.mxu0 0.0
    %3440 = vmatpush1.msra.mxu0 0.0
    %3441 = vmatprep.subr.mxu0 0.0
    %3442 = vmatpush1.msra.mxu0 0.0
    %3443 = vmatprep.subr.mxu0 0.0
    %3444 = vmatpush1.msra.mxu0 0.0
    %3445 = vmatprep.subr.mxu0 0.0
    %3446 = vmatpush1.msra.mxu0 0.0
    %3447 = vmatprep.mubr.f32.mxu0 0.0
    %3448 = vmatmul.mubr.f32.gmra.mrb[0].mxu0 %v3280
    %v3449 = vpop.f32.mrb[0].mxu0
    %v3450 = vadd.f32 %v3380, %v3449
    %v3451 = vpop.f32.mrb[0].mxu0
    %3452 = vdwg.mxu0
    %v3453 = vld [vmem:[%s65] sm:$0x1]
    %v3455 = vlaneseq
    %v3456 = vshrl.u32 %v3455, 7
    %v3457 = vsub.s32 0, %v3456
    %v3458 = vrot.slane %v3453, %v3457
    %v3460 = vadd.f32 %v3450, %v3458
    %v3461 = vxor.u32 %v3460, 2147483648
    %v3462 = vmul.f32 %v3461, 1.442695
    %v3463 = vpow.pop %v3462
    %v3464 = vadd.f32 %v3463, 1.0
    %v3465 = vrcp.pop %v3464
    %v3466 = vmul.f32 1.0, %v3465
    %3467 = vst [vmem:[#allocation37] sm:$0x3] %v3466
    // Predicated region
    $region222: #{tpu_custom_call.1} parent=1 // pred_check
      _
    $region223: #{tpu_custom_call.1} parent=1 // pred_check_branch
      %3469 = sbr.rel (0) target = $region225
    $region224: #{tpu_custom_call.1} parent=1 // pred_region
      %s3471 = ssub.s32 32, 32
      %3472 = vsyncadd [#allocation4], %s3471
      %s3474 = sshll.u32 [#allocation37], 4
      %s3475 = int_to_ptr.vmem [resolvable:$true] %s3474
      %3477 = dma.vmem_to_hbm [thread:$0]  %s3475, 32, %s67, [#allocation4]
    $region225: #{tpu_custom_call.1} parent=1 // pred_fallthru
      _
    // Predicated region
    $region226: #{tpu_custom_call.1} parent=1 // pred_check
      _
    $region227: #{tpu_custom_call.1} parent=1 // pred_check_branch
      %3479 = sbr.rel (0) target = $region229
    $region228: #{tpu_custom_call.1} parent=1 // pred_region
      %3480 = dma.done [#allocation4], 32
    $region229: #{tpu_custom_call.1} parent=1 // pred_fallthru
      _
    %3481 = vsyncpa [#allocation3], 1
    %3482 = vsyncpa [#allocation6], 1
    %3483 = vsyncpa [#allocation9], 1
    %3484 = vsyncpa [#allocation12], 1
    %3485 = vsyncpa [#allocation15], 1
    %3486 = vsyncpa [#allocation18], 1
    %3487 = vsyncpa [#allocation21], 1
    %3488 = vsyncpa [#allocation24], 1
    %3489 = vsyncpa [#allocation27], 1
    %3490 = vsyncpa [#allocation30], 1
    %3491 = vsyncpa [#allocation33], 1
    %3492 = vsyncpa [#allocation36], 1
    %3493 = vsyncpa [#allocation4], 1

</llo_original>
